<compile_context>
chip_gen: v7x
topology: tpu7x:2x2x1
jax: 0.10.0
libtpu: 0.0.40
codegen_flags: <defaults>
</compile_context>

<pallas_src>
import functools

import jax
import jax.numpy as jnp
from jax.experimental import pallas as pl
from jax.experimental.pallas import tpu as pltpu

K_BRANCHES = 5  # ESPModule K
_VMEM_LIMIT = 32 * 1024 * 1024


def _round_up(x, m):
    return ((x + m - 1) // m) * m


@functools.lru_cache(maxsize=1)
def _target_lanes():
    # 128 MXU columns on v5-class and older chips, 256 on v6e / v7x.
    try:
        kind = jax.devices()[0].device_kind.lower()
    except Exception:
        return 256
    if any(t in kind for t in ("v2", "v3", "v4", "v5")):
        return 128
    return 256


def _fold_factor(m, cout, target_lanes):
    """Rows-per-fold r (power of two) so r*cout ~ MXU / vreg lane width."""
    r = max(1, target_lanes // max(cout, 1))
    r = 1 << (r.bit_length() - 1)
    while r > 1 and (m + r - 1) // r < 8:  # keep at least 8 folded rows
        r //= 2
    return r


def _fold_rows(a2d, r):
    """(M, C) -> (ceil(M/r), r*C): r consecutive rows folded into lanes (free reshape)."""
    m, c = a2d.shape
    mp = _round_up(m, r)
    if mp != m:
        a2d = jnp.pad(a2d, ((0, mp - m), (0, 0)))
    return a2d.reshape(mp // r, r * c)


def _block_diag_rep(w, r):
    """(K, N) -> (r*K, r*N) block-diagonal replication (matches _fold_rows layout)."""
    if r == 1:
        return w
    k, n = w.shape
    out = jnp.zeros((r * k, r * n), w.dtype)
    for i in range(r):
        out = out.at[i * k:(i + 1) * k, i * n:(i + 1) * n].set(w)
    return out


def _pick_tm(m, cap=1024):
    """Row-tile: as large as possible but >= 2 grid steps (v7x megacore)."""
    if m <= 8:
        return 8
    tm = _round_up((m + 1) // 2, 8)
    return int(max(8, min(cap, tm)))


# ----------------------------------------------------------------------------
# Pallas kernels
# ----------------------------------------------------------------------------
def _matmul_kernel(x_ref, w_ref, o_ref):
    # (TM, K) @ (K, N) : fused / folded 1x1 convolutions (bf16 in, f32 acc).
    x = x_ref[...]
    if x.dtype != jnp.bfloat16:
        x = x.astype(jnp.bfloat16)
    o_ref[...] = jnp.dot(
        x, w_ref[...], preferred_element_type=jnp.float32
    ).astype(o_ref.dtype)


def _esp_fused_kernel(has_residual, *refs):
    # Fused: dilated 3x3 branches (taps folded into K, rows folded into lanes)
    # + folded BN shift + PReLU + HFF prefix adds (bf16 0/1 matrix) + residual.
    if has_residual:
        taps_ref, w_ref, shift_ref, alpha_ref, hff_ref, res_ref, o_ref = refs
    else:
        taps_ref, w_ref, shift_ref, alpha_ref, hff_ref, o_ref = refs
        res_ref = None
    x = taps_ref[...]
    if x.dtype != jnp.bfloat16:
        x = x.astype(jnp.bfloat16)
    acc = jnp.dot(x, w_ref[...], preferred_element_type=jnp.float32)
    y = acc + shift_ref[...]                                  # folded BN (eval)
    y = jnp.where(y >= 0.0, y, alpha_ref[...] * y)            # PReLU
    y = jnp.dot(y.astype(jnp.bfloat16), hff_ref[...],         # HFF prefix adds
                preferred_element_type=jnp.float32)
    if res_ref is not None:
        y = y + res_ref[...].astype(jnp.float32)              # fused skip add
    o_ref[...] = y.astype(o_ref.dtype)


# ----------------------------------------------------------------------------
# Pallas wrappers
# ----------------------------------------------------------------------------
def matmul_pallas(x, w, out_dtype=jnp.bfloat16):
    """Row-tiled (M, K) @ (K, N) — bf16 inputs, f32 accumulation."""
    m, cin = x.shape
    cout = w.shape[1]
    tm = _pick_tm(m)
    mp = _round_up(m, tm)
    if mp != m:
        x = jnp.pad(x, ((0, mp - m), (0, 0)))
    out = pl.pallas_call(
        _matmul_kernel,
        out_shape=jax.ShapeDtypeStruct((mp, cout), out_dtype),
        grid=(mp // tm,),
        in_specs=[
            pl.BlockSpec((tm, cin), lambda i: (i, 0)),
            pl.BlockSpec((cin, cout), lambda i: (0, 0)),
        ],
        out_specs=pl.BlockSpec((tm, cout), lambda i: (i, 0)),
        compiler_params=pltpu.CompilerParams(
            dimension_semantics=("parallel",),
            vmem_limit_bytes=_VMEM_LIMIT,
        ),
    )(x, w)
    return out[:m] if mp != m else out


def conv1x1_pallas(x2d, w):
    """Lane-dense 1x1 conv: rows folded into lanes + block-diagonal weight."""
    m, _ = x2d.shape
    cout = w.shape[1]
    r = _fold_factor(m, cout, _target_lanes())
    xf = _fold_rows(x2d, r)
    wf = _block_diag_rep(w.astype(jnp.bfloat16), r)
    yf = matmul_pallas(xf, wf)
    return yf.reshape(-1, cout)[:m]


def esp_fused_pallas(taps, wd, shift, alpha, hff, residual=None):
    """Fused ESP branch stack on row-folded inputs: (M', r*Ktot) -> (M', r*out_c)."""
    m, ktot = taps.shape
    cout = wd.shape[1]
    tm = _pick_tm(m)
    mp = _round_up(m, tm)
    if mp != m:
        taps = jnp.pad(taps, ((0, mp - m), (0, 0)))
        if residual is not None:
            residual = jnp.pad(residual, ((0, mp - m), (0, 0)))
    has_res = residual is not None

    in_specs = [
        pl.BlockSpec((tm, ktot), lambda i: (i, 0)),
        pl.BlockSpec((ktot, cout), lambda i: (0, 0)),
        pl.BlockSpec((1, cout), lambda i: (0, 0)),
        pl.BlockSpec((1, cout), lambda i: (0, 0)),
        pl.BlockSpec((cout, cout), lambda i: (0, 0)),
    ]
    args = [taps, wd, shift.reshape(1, -1), alpha.reshape(1, -1), hff]
    if has_res:
        in_specs.append(pl.BlockSpec((tm, cout), lambda i: (i, 0)))
        args.append(residual)

    out = pl.pallas_call(
        functools.partial(_esp_fused_kernel, has_res),
        out_shape=jax.ShapeDtypeStruct((mp, cout), jnp.bfloat16),
        grid=(mp // tm,),
        in_specs=in_specs,
        out_specs=pl.BlockSpec((tm, cout), lambda i: (i, 0)),
        compiler_params=pltpu.CompilerParams(
            dimension_semantics=("parallel",),
            vmem_limit_bytes=_VMEM_LIMIT,
        ),
    )(*args)
    return out[:m] if mp != m else out


# ----------------------------------------------------------------------------
# Module forward (JAX glue around the Pallas kernels)
# ----------------------------------------------------------------------------
def esp_forward(p, x_nhwc):
    """ESPModule forward.

    Reference ordering: per-branch Conv -> BN(eval) -> PReLU, then HFF prefix
    adds, then channel concat + residual — all fused into one Pallas kernel.
    """
    K = len(p["branch_ch"])
    stride = p["stride"]
    out_c = p["out_c"]
    residual = x_nhwc if p["use_skip"] else None
    x_s = x_nhwc[:, ::stride, ::stride, :] if stride > 1 else x_nhwc
    n, h, w, cin = x_s.shape
    m = n * h * w

    fuse = p["fuse_reduce"]
    if fuse:
        # conv1: the 1x1 reduce is composed into the branch weights -> one kernel.
        src_img = x_s.astype(jnp.bfloat16)
        src_slices = [(0, cin)] * K
    else:
        pre = conv1x1_pallas(x_s.reshape(m, cin).astype(jnp.bfloat16), p["w1x1"])
        src_img = pre.reshape(n, h, w, p["c_pre"])
        src_slices = p["branch_in"]

    # Build the tap slab (taps folded into the matmul K dim) and the matching
    # block-concatenated weight.  Taps whose dilated offset falls completely
    # outside the (h, w) window contribute exactly zero and are pruned.
    # TODO(synk): for large feature maps, build the taps in-kernel from a
    # haloed VMEM tile (manual make_async_copy) instead of materializing the
    # ~9x tap slab in HBM.
    tap_views = []
    wd_blocks = []
    for b in range(K):
        d = p["dilations"][b]
        cb = p["branch_ch"][b]
        c0, c1 = src_slices[b]
        src_c = c1 - c0
        w9 = p["branches"][b]["w"]                       # (3,3,cb,cb), BN folded
        w1b = (p["w1x1"][:, p["branch_in"][b][0]:p["branch_in"][b][1]]
               if fuse else None)
        xb = src_img[..., c0:c1]
        kept = [(ky, kx) for ky in range(3) for kx in range(3)
                if abs((ky - 1) * d) < h and abs((kx - 1) * d) < w]
        if kept != [(1, 1)]:
            xpad = jnp.pad(xb, ((0, 0), (d, d), (d, d), (0, 0)))
        rows_b = []
        for ky, kx in kept:
            if (ky, kx) == (1, 1):
                tap_views.append(xb.reshape(m, src_c))
            else:
                tap_views.append(
                    xpad[:, ky * d:ky * d + h, kx * d:kx * d + w, :].reshape(m, src_c))
            wtap = w9[ky, kx]                            # (cb, cb)
            if fuse:
                wtap = w1b @ wtap                        # composite (cin, cb)
            rows_b.append(wtap)
        wd_blocks.append(jnp.concatenate(rows_b, axis=0))  # (len(kept)*src_c, cb)

    taps = jnp.concatenate(tap_views, axis=1)            # (M, Ktot), bf16
    ktot = taps.shape[1]
    wd = jnp.zeros((ktot, out_c), jnp.float32)
    row = col = 0
    for b in range(K):
        blk = wd_blocks[b]
        cb = p["branch_ch"][b]
        wd = wd.at[row:row + blk.shape[0], col:col + cb].set(blk)
        row += blk.shape[0]
        col += cb

    # Lane-dense fold: r consecutive rows -> lanes; all per-layer constants are
    # replicated r times block-diagonally so the output tile is r*out_c lanes
    # wide (128 on v5-class, 256 on v6e/v7x) -> unmasked stores, full MXU width.
    r = _fold_factor(m, out_c, _target_lanes())
    taps_f = _fold_rows(taps, r)
    wd_f = _block_diag_rep(wd.astype(jnp.bfloat16), r)
    hff_f = _block_diag_rep(p["hff"].astype(jnp.bfloat16), r)
    shift_f = jnp.tile(p["shift"], r)
    alpha_f = jnp.tile(p["alpha"], r)
    res_f = None
    if residual is not None:
        res_f = _fold_rows(residual.reshape(m, out_c).astype(jnp.bfloat16), r)

    out_f = esp_fused_pallas(taps_f, wd_f, shift_f, alpha_f, hff_f, res_f)
    out = out_f.reshape(-1, out_c)[:m]
    return out.reshape(n, h, w, out_c)


def bilinear_align_corners_nhwc(x, oh, ow):
    """F.interpolate(mode='bilinear', align_corners=True) equivalent (JAX glue)."""
    n, H, W, c = x.shape
    ys = jnp.linspace(0.0, H - 1.0, oh) if oh > 1 else jnp.zeros((oh,))
    xs = jnp.linspace(0.0, W - 1.0, ow) if ow > 1 else jnp.zeros((ow,))
    y0 = jnp.floor(ys).astype(jnp.int32)
    x0 = jnp.floor(xs).astype(jnp.int32)
    y1 = jnp.minimum(y0 + 1, H - 1)
    x1 = jnp.minimum(x0 + 1, W - 1)
    wy = (ys - y0.astype(jnp.float32))[None, :, None, None]
    wx = (xs - x0.astype(jnp.float32))[None, None, :, None]

    def g(yi, xi):
        return x[:, yi][:, :, xi]  # (n, oh, ow, c)

    top = g(y0, x0) * (1.0 - wx) + g(y0, x1) * wx
    bot = g(y1, x0) * (1.0 - wx) + g(y1, x1) * wx
    return top * (1.0 - wy) + bot * wy


def l2block_forward(params, x_nhwc, x_input_nhwc=None):
    x = esp_forward(params["conv1"], x_nhwc)
    skip = x if params["use_skip"] else None
    for lp in params["layers"]:
        x = esp_forward(lp, x)
    if params["use_skip"]:
        x = jnp.concatenate([x, skip], axis=-1)
    if params["reinforce"]:
        oh, ow = x.shape[1], x.shape[2]
        x_quarter = bilinear_align_corners_nhwc(x_input_nhwc, oh, ow)
        x = jnp.concatenate([x, x_quarter.astype(x.dtype)], axis=-1)
    return x


# ----------------------------------------------------------------------------
# Deterministic parameter initialization (synthetic weights, BN pre-folded)
# ----------------------------------------------------------------------------
def init_convbnact(key, ch):
    k1, k2, k3, k4, k5, k6 = jax.random.split(key, 6)
    w = 0.1 * jax.random.normal(k1, (3, 3, ch, ch), jnp.float32)  # (ky,kx,Cin,Cout)
    gamma = 1.0 + 0.1 * jax.random.normal(k2, (ch,), jnp.float32)
    beta = 0.1 * jax.random.normal(k3, (ch,), jnp.float32)
    mean = 0.1 * jax.random.normal(k4, (ch,), jnp.float32)
    var = jnp.abs(jax.random.normal(k5, (ch,), jnp.float32)) + 0.5
    alpha = 0.25 + 0.05 * jax.random.normal(k6, (ch,), jnp.float32)  # PReLU
    eps = 1e-5
    scale = gamma / jnp.sqrt(var + eps)
    shift = beta - mean * scale
    w_folded = w * scale[None, None, None, :]  # fold BN scale into conv weight
    return dict(w=w_folded, shift=shift, alpha=alpha)


def init_esp(key, in_c, out_c, stride, K=K_BRANCHES):
    ckn = out_c // K
    ck1 = out_c - (K - 1) * ckn
    perfect = ck1 == ckn
    use_skip = in_c == out_c and stride == 1
    keys = jax.random.split(key, K + 2)

    if perfect:
        w1 = 0.1 * jax.random.normal(keys[0], (in_c, ckn), jnp.float32)
        c_pre = ckn
        branch_in = [(0, ckn)] * K
    else:
        wk1 = 0.1 * jax.random.normal(keys[0], (in_c, ck1), jnp.float32)
        wkn = 0.1 * jax.random.normal(keys[1], (in_c, ckn), jnp.float32)
        w1 = jnp.concatenate([wk1, wkn], axis=1)
        c_pre = ck1 + ckn
        branch_in = [(0, ck1)] + [(ck1, c_pre)] * (K - 1)

    branch_ch = [ck1] + [ckn] * (K - 1)
    dilations = [2 ** b for b in range(K)]
    branches = [init_convbnact(keys[2 + b], branch_ch[b]) for b in range(K)]

    shift = jnp.concatenate([br["shift"] for br in branches])
    alpha = jnp.concatenate([br["alpha"] for br in branches])

    # HFF prefix-sum mixing matrix (applied after per-branch PReLU, before the
    # residual), 0/1 entries -> exact in bf16.
    col_offs = []
    c = 0
    for b in range(K):
        col_offs.append(c)
        c += branch_ch[b]
    hff = jnp.zeros((out_c, out_c), jnp.float32)
    for j in range(K):
        for i in range(K):
            contrib = (i <= j) if perfect else ((i == 0 and j == 0) or (1 <= i <= j))
            if contrib:
                hff = hff.at[
                    col_offs[i]:col_offs[i] + branch_ch[i],
                    col_offs[j]:col_offs[j] + branch_ch[j],
                ].set(jnp.eye(branch_ch[i], dtype=jnp.float32))

    # Fuse the 1x1 reduce into the branch weights when the raw input is at
    # most as wide as the reduced feature map (conv1: cin=7 <= c_pre=14).
    fuse_reduce = in_c <= c_pre

    return dict(
        stride=stride,
        use_skip=use_skip,
        out_c=out_c,
        c_pre=c_pre,
        branch_in=branch_in,
        branch_ch=branch_ch,
        dilations=dilations,
        perfect=perfect,
        fuse_reduce=fuse_reduce,
        w1x1=w1,
        branches=branches,
        shift=shift,
        alpha=alpha,
        hff=hff,
    )


def init_l2block(key, in_c, hid_c, alpha, use_skip, reinforce):
    if reinforce:
        in_c += 3
    keys = jax.random.split(key, alpha + 1)
    return dict(
        use_skip=use_skip,
        reinforce=reinforce,
        conv1=init_esp(keys[0], in_c, hid_c, 2),
        layers=[init_esp(keys[1 + i], hid_c, hid_c, 1) for i in range(alpha)],
    )


# ----------------------------------------------------------------------------
if __name__ == "__main__":
    key = jax.random.PRNGKey(0)
    kp, kx, kxi = jax.random.split(key, 3)

    in_channels, hid_channels, alpha = 4, 32, 1
    use_skip, reinforce = True, True

    params = init_l2block(kp, in_channels, hid_channels, alpha, use_skip, reinforce)

    # PyTorch-convention NCHW inputs; with reinforce the block input already
    # carries the extra 3 "image" channels (in_channels + 3 = 7).
    x_nchw = jax.random.normal(kx, (2, in_channels + 3, 16, 16), jnp.float32)
    x_input_nchw = jax.random.normal(kxi, (2, 3, 32, 32), jnp.float32)

    x_nhwc = jnp.transpose(x_nchw, (0, 2, 3, 1))
    x_in_nhwc = jnp.transpose(x_input_nchw, (0, 2, 3, 1))

    fwd = jax.jit(functools.partial(l2block_forward, params))
    out_nhwc = fwd(x_nhwc, x_in_nhwc)
    out_nchw = jnp.transpose(out_nhwc, (0, 3, 1, 2))
    jax.block_until_ready(out_nchw)

    # conv1 halves spatial (stride 2); use_skip doubles channels; reinforce +3.
    expected = (2, 2 * hid_channels + 3, 8, 8)
    assert out_nchw.shape == expected, (out_nchw.shape, expected)
    assert bool(jnp.all(jnp.isfinite(out_nchw.astype(jnp.float32))))
    print("KERNEL_OK")
</pallas_src>

<mosaic_0001>
module attributes {stable_mosaic.version = 11 : i64} {
  func.func @_esp_fused_kernel(%arg0: i32, %arg1: memref<8x1624xbf16, #tpu.memory_space<vmem>>, %arg2: memref<1624x256xbf16, #tpu.memory_space<vmem>>, %arg3: memref<1x256xf32, #tpu.memory_space<vmem>>, %arg4: memref<1x256xf32, #tpu.memory_space<vmem>>, %arg5: memref<256x256xbf16, #tpu.memory_space<vmem>>, %arg6: memref<8x256xbf16, #tpu.memory_space<vmem>>) attributes {dimension_semantics = [#tpu.dimension_semantics<parallel>], iteration_bounds = array<i64: 2>, scalar_prefetch = 0 : i64, scratch_operands = 0 : i64, tpu.core_type = #tpu.core_type<tc>, window_params = [{transform_indices = @transform_0, window_bounds = array<i64: 8, 1624>}, {pipeline_mode = #tpu.pipeline_mode<synchronous>, transform_indices = @transform_1, window_bounds = array<i64: 1624, 256>}, {pipeline_mode = #tpu.pipeline_mode<synchronous>, transform_indices = @transform_2, window_bounds = array<i64: 1, 256>}, {pipeline_mode = #tpu.pipeline_mode<synchronous>, transform_indices = @transform_3, window_bounds = array<i64: 1, 256>}, {pipeline_mode = #tpu.pipeline_mode<synchronous>, transform_indices = @transform_4, window_bounds = array<i64: 256, 256>}, {transform_indices = @transform_5, window_bounds = array<i64: 8, 256>}]} {
    %c0 = arith.constant 0 : index
    %c0_0 = arith.constant 0 : index
    %0 = vector.load %arg1[%c0, %c0_0] : memref<8x1624xbf16, #tpu.memory_space<vmem>>, vector<8x1624xbf16>
    %c0_1 = arith.constant 0 : index
    %c0_2 = arith.constant 0 : index
    %1 = vector.load %arg2[%c0_1, %c0_2] : memref<1624x256xbf16, #tpu.memory_space<vmem>>, vector<1624x256xbf16>
    %cst = arith.constant dense<0.000000e+00> : vector<8x256xf32>
    %2 = tpu.matmul %0, %1, %cst {dimension_numbers = #tpu.dot_dimension_numbers<[1], [0], [0], [1], [0, 0, 1, 1], [], []>} : vector<8x1624xbf16>, vector<1624x256xbf16>, vector<8x256xf32> -> vector<8x256xf32>
    %c0_3 = arith.constant 0 : index
    %c0_4 = arith.constant 0 : index
    %3 = vector.load %arg3[%c0_3, %c0_4] : memref<1x256xf32, #tpu.memory_space<vmem>>, vector<1x256xf32>
    %4 = vector.broadcast %3 : vector<1x256xf32> to vector<8x256xf32>
    %5 = arith.addf %2, %4 : vector<8x256xf32>
    %cst_5 = arith.constant 0.000000e+00 : f32
    %6 = vector.broadcast %cst_5 : f32 to vector<8x256xf32>
    %7 = arith.cmpf oge, %5, %6 : vector<8x256xf32>
    %c0_6 = arith.constant 0 : index
    %c0_7 = arith.constant 0 : index
    %8 = vector.load %arg4[%c0_6, %c0_7] : memref<1x256xf32, #tpu.memory_space<vmem>>, vector<1x256xf32>
    %9 = vector.broadcast %8 : vector<1x256xf32> to vector<8x256xf32>
    %10 = arith.mulf %9, %5 : vector<8x256xf32>
    %11 = arith.select %7, %5, %10 : vector<8x256xi1>, vector<8x256xf32>
    %12 = arith.truncf %11 : vector<8x256xf32> to vector<8x256xbf16>
    %c0_8 = arith.constant 0 : index
    %c0_9 = arith.constant 0 : index
    %13 = vector.load %arg5[%c0_8, %c0_9] : memref<256x256xbf16, #tpu.memory_space<vmem>>, vector<256x256xbf16>
    %cst_10 = arith.constant dense<0.000000e+00> : vector<8x256xf32>
    %14 = tpu.matmul %12, %13, %cst_10 {dimension_numbers = #tpu.dot_dimension_numbers<[1], [0], [0], [1], [0, 0, 1, 1], [], []>} : vector<8x256xbf16>, vector<256x256xbf16>, vector<8x256xf32> -> vector<8x256xf32>
    %15 = arith.truncf %14 : vector<8x256xf32> to vector<8x256xbf16>
    %c0_11 = arith.constant 0 : index
    %c0_12 = arith.constant 0 : index
    %16 = vector.load %arg6[%c0_11, %c0_12] : memref<8x256xbf16, #tpu.memory_space<vmem>>, vector<8x256xbf16>
    tpu.vector_store %arg6[%c0_11, %c0_12], %15 {strides = array<i32>} : memref<8x256xbf16, #tpu.memory_space<vmem>>, vector<8x256xbf16>,
    return
  }
  func.func @transform_0(%arg0: i32) -> (i32, i32) {
    %c0_i32 = arith.constant 0 : i32
    %c0_i32_0 = arith.constant 0 : i32
    return %arg0, %c0_i32 : i32, i32
  }
  func.func @transform_1(%arg0: i32) -> (i32, i32) {
    %c0_i32 = arith.constant 0 : i32
    %c0_i32_0 = arith.constant 0 : i32
    %c0_i32_1 = arith.constant 0 : i32
    return %c0_i32, %c0_i32_0 : i32, i32
  }
  func.func @transform_2(%arg0: i32) -> (i32, i32) {
    %c0_i32 = arith.constant 0 : i32
    %c0_i32_0 = arith.constant 0 : i32
    %c0_i32_1 = arith.constant 0 : i32
    return %c0_i32, %c0_i32_0 : i32, i32
  }
  func.func @transform_3(%arg0: i32) -> (i32, i32) {
    %c0_i32 = arith.constant 0 : i32
    %c0_i32_0 = arith.constant 0 : i32
    %c0_i32_1 = arith.constant 0 : i32
    return %c0_i32, %c0_i32_0 : i32, i32
  }
  func.func @transform_4(%arg0: i32) -> (i32, i32) {
    %c0_i32 = arith.constant 0 : i32
    %c0_i32_0 = arith.constant 0 : i32
    %c0_i32_1 = arith.constant 0 : i32
    return %c0_i32, %c0_i32_0 : i32, i32
  }
  func.func @transform_5(%arg0: i32) -> (i32, i32) {
    %c0_i32 = arith.constant 0 : i32
    %c0_i32_0 = arith.constant 0 : i32
    return %arg0, %c0_i32 : i32, i32
  }
}

module attributes {stable_mosaic.version = 11 : i64} {
  func.func @_matmul_kernel(%arg0: i32, %arg1: memref<8x512xbf16, #tpu.memory_space<vmem>>, %arg2: memref<512x224xbf16, #tpu.memory_space<vmem>>, %arg3: memref<8x224xbf16, #tpu.memory_space<vmem>>) attributes {dimension_semantics = [#tpu.dimension_semantics<parallel>], iteration_bounds = array<i64: 1>, scalar_prefetch = 0 : i64, scratch_operands = 0 : i64, tpu.core_type = #tpu.core_type<tc>, window_params = [{transform_indices = @transform_0, window_bounds = array<i64: 8, 512>}, {pipeline_mode = #tpu.pipeline_mode<synchronous>, transform_indices = @transform_1, window_bounds = array<i64: 512, 224>}, {transform_indices = @transform_2, window_bounds = array<i64: 8, 224>}]} {
    %c0 = arith.constant 0 : index
    %c0_0 = arith.constant 0 : index
    %0 = vector.load %arg1[%c0, %c0_0] : memref<8x512xbf16, #tpu.memory_space<vmem>>, vector<8x512xbf16>
    %c0_1 = arith.constant 0 : index
    %c0_2 = arith.constant 0 : index
    %1 = vector.load %arg2[%c0_1, %c0_2] : memref<512x224xbf16, #tpu.memory_space<vmem>>, vector<512x224xbf16>
    %cst = arith.constant dense<0.000000e+00> : vector<8x224xf32>
    %2 = tpu.matmul %0, %1, %cst {dimension_numbers = #tpu.dot_dimension_numbers<[1], [0], [0], [1], [0, 0, 1, 1], [], []>} : vector<8x512xbf16>, vector<512x224xbf16>, vector<8x224xf32> -> vector<8x224xf32>
    %3 = arith.truncf %2 : vector<8x224xf32> to vector<8x224xbf16>
    %c0_3 = arith.constant 0 : index
    %c0_4 = arith.constant 0 : index
    %4 = vector.load %arg3[%c0_3, %c0_4] : memref<8x224xbf16, #tpu.memory_space<vmem>>, vector<8x224xbf16>
    tpu.vector_store %arg3[%c0_3, %c0_4], %3 {strides = array<i32>} : memref<8x224xbf16, #tpu.memory_space<vmem>>, vector<8x224xbf16>,
    return
  }
  func.func @transform_0(%arg0: i32) -> (i32, i32) {
    %c0_i32 = arith.constant 0 : i32
    %c0_i32_0 = arith.constant 0 : i32
    return %arg0, %c0_i32 : i32, i32
  }
  func.func @transform_1(%arg0: i32) -> (i32, i32) {
    %c0_i32 = arith.constant 0 : i32
    %c0_i32_0 = arith.constant 0 : i32
    %c0_i32_1 = arith.constant 0 : i32
    return %c0_i32, %c0_i32_0 : i32, i32
  }
  func.func @transform_2(%arg0: i32) -> (i32, i32) {
    %c0_i32 = arith.constant 0 : i32
    %c0_i32_0 = arith.constant 0 : i32
    return %arg0, %c0_i32 : i32, i32
  }
}

module attributes {stable_mosaic.version = 11 : i64} {
  func.func @_esp_fused_kernel(%arg0: i32, %arg1: memref<8x1536xbf16, #tpu.memory_space<vmem>>, %arg2: memref<1536x256xbf16, #tpu.memory_space<vmem>>, %arg3: memref<1x256xf32, #tpu.memory_space<vmem>>, %arg4: memref<1x256xf32, #tpu.memory_space<vmem>>, %arg5: memref<256x256xbf16, #tpu.memory_space<vmem>>, %arg6: memref<8x256xbf16, #tpu.memory_space<vmem>>, %arg7: memref<8x256xbf16, #tpu.memory_space<vmem>>) attributes {dimension_semantics = [#tpu.dimension_semantics<parallel>], iteration_bounds = array<i64: 2>, scalar_prefetch = 0 : i64, scratch_operands = 0 : i64, tpu.core_type = #tpu.core_type<tc>, window_params = [{transform_indices = @transform_0, window_bounds = array<i64: 8, 1536>}, {pipeline_mode = #tpu.pipeline_mode<synchronous>, transform_indices = @transform_1, window_bounds = array<i64: 1536, 256>}, {pipeline_mode = #tpu.pipeline_mode<synchronous>, transform_indices = @transform_2, window_bounds = array<i64: 1, 256>}, {pipeline_mode = #tpu.pipeline_mode<synchronous>, transform_indices = @transform_3, window_bounds = array<i64: 1, 256>}, {pipeline_mode = #tpu.pipeline_mode<synchronous>, transform_indices = @transform_4, window_bounds = array<i64: 256, 256>}, {transform_indices = @transform_5, window_bounds = array<i64: 8, 256>}, {transform_indices = @transform_6, window_bounds = array<i64: 8, 256>}]} {
    %c0 = arith.constant 0 : index
    %c0_0 = arith.constant 0 : index
    %0 = vector.load %arg1[%c0, %c0_0] : memref<8x1536xbf16, #tpu.memory_space<vmem>>, vector<8x1536xbf16>
    %c0_1 = arith.constant 0 : index
    %c0_2 = arith.constant 0 : index
    %1 = vector.load %arg2[%c0_1, %c0_2] : memref<1536x256xbf16, #tpu.memory_space<vmem>>, vector<1536x256xbf16>
    %cst = arith.constant dense<0.000000e+00> : vector<8x256xf32>
    %2 = tpu.matmul %0, %1, %cst {dimension_numbers = #tpu.dot_dimension_numbers<[1], [0], [0], [1], [0, 0, 1, 1], [], []>} : vector<8x1536xbf16>, vector<1536x256xbf16>, vector<8x256xf32> -> vector<8x256xf32>
    %c0_3 = arith.constant 0 : index
    %c0_4 = arith.constant 0 : index
    %3 = vector.load %arg3[%c0_3, %c0_4] : memref<1x256xf32, #tpu.memory_space<vmem>>, vector<1x256xf32>
    %4 = vector.broadcast %3 : vector<1x256xf32> to vector<8x256xf32>
    %5 = arith.addf %2, %4 : vector<8x256xf32>
    %cst_5 = arith.constant 0.000000e+00 : f32
    %6 = vector.broadcast %cst_5 : f32 to vector<8x256xf32>
    %7 = arith.cmpf oge, %5, %6 : vector<8x256xf32>
    %c0_6 = arith.constant 0 : index
    %c0_7 = arith.constant 0 : index
    %8 = vector.load %arg4[%c0_6, %c0_7] : memref<1x256xf32, #tpu.memory_space<vmem>>, vector<1x256xf32>
    %9 = vector.broadcast %8 : vector<1x256xf32> to vector<8x256xf32>
    %10 = arith.mulf %9, %5 : vector<8x256xf32>
    %11 = arith.select %7, %5, %10 : vector<8x256xi1>, vector<8x256xf32>
    %12 = arith.truncf %11 : vector<8x256xf32> to vector<8x256xbf16>
    %c0_8 = arith.constant 0 : index
    %c0_9 = arith.constant 0 : index
    %13 = vector.load %arg5[%c0_8, %c0_9] : memref<256x256xbf16, #tpu.memory_space<vmem>>, vector<256x256xbf16>
    %cst_10 = arith.constant dense<0.000000e+00> : vector<8x256xf32>
    %14 = tpu.matmul %12, %13, %cst_10 {dimension_numbers = #tpu.dot_dimension_numbers<[1], [0], [0], [1], [0, 0, 1, 1], [], []>} : vector<8x256xbf16>, vector<256x256xbf16>, vector<8x256xf32> -> vector<8x256xf32>
    %c0_11 = arith.constant 0 : index
    %c0_12 = arith.constant 0 : index
    %15 = vector.load %arg6[%c0_11, %c0_12] : memref<8x256xbf16, #tpu.memory_space<vmem>>, vector<8x256xbf16>
    %16 = arith.extf %15 : vector<8x256xbf16> to vector<8x256xf32>
    %17 = arith.addf %14, %16 : vector<8x256xf32>
    %18 = arith.truncf %17 : vector<8x256xf32> to vector<8x256xbf16>
    %c0_13 = arith.constant 0 : index
    %c0_14 = arith.constant 0 : index
    %19 = vector.load %arg7[%c0_13, %c0_14] : memref<8x256xbf16, #tpu.memory_space<vmem>>, vector<8x256xbf16>
    tpu.vector_store %arg7[%c0_13, %c0_14], %18 {strides = array<i32>} : memref<8x256xbf16, #tpu.memory_space<vmem>>, vector<8x256xbf16>,
    return
  }
  func.func @transform_0(%arg0: i32) -> (i32, i32) {
    %c0_i32 = arith.constant 0 : i32
    %c0_i32_0 = arith.constant 0 : i32
    return %arg0, %c0_i32 : i32, i32
  }
  func.func @transform_1(%arg0: i32) -> (i32, i32) {
    %c0_i32 = arith.constant 0 : i32
    %c0_i32_0 = arith.constant 0 : i32
    %c0_i32_1 = arith.constant 0 : i32
    return %c0_i32, %c0_i32_0 : i32, i32
  }
  func.func @transform_2(%arg0: i32) -> (i32, i32) {
    %c0_i32 = arith.constant 0 : i32
    %c0_i32_0 = arith.constant 0 : i32
    %c0_i32_1 = arith.constant 0 : i32
    return %c0_i32, %c0_i32_0 : i32, i32
  }
  func.func @transform_3(%arg0: i32) -> (i32, i32) {
    %c0_i32 = arith.constant 0 : i32
    %c0_i32_0 = arith.constant 0 : i32
    %c0_i32_1 = arith.constant 0 : i32
    return %c0_i32, %c0_i32_0 : i32, i32
  }
  func.func @transform_4(%arg0: i32) -> (i32, i32) {
    %c0_i32 = arith.constant 0 : i32
    %c0_i32_0 = arith.constant 0 : i32
    %c0_i32_1 = arith.constant 0 : i32
    return %c0_i32, %c0_i32_0 : i32, i32
  }
  func.func @transform_5(%arg0: i32) -> (i32, i32) {
    %c0_i32 = arith.constant 0 : i32
    %c0_i32_0 = arith.constant 0 : i32
    return %arg0, %c0_i32 : i32, i32
  }
  func.func @transform_6(%arg0: i32) -> (i32, i32) {
    %c0_i32 = arith.constant 0 : i32
    %c0_i32_0 = arith.constant 0 : i32
    return %arg0, %c0_i32 : i32, i32
  }
}

</mosaic_0001>

<llo_original>
// kernel: tile.18
$region0: #{tile.18}
  #allocation0 [shape = 's32[1]{0}', space=sflag, size = 0x4, scoped, tag = 'scoped memory for tile.18']
  %s0 = inlined_call_operand.vmem [shape: f32[32], index: 0, kind: input, shape index: {}]
  %s1 = inlined_call_operand.vmem [shape: f32[8,32], index: 1, kind: output, shape index: {}]
  // Predicated region
  $region2: #{tile.18} parent=0 // pred_check
    _
  $region3: #{tile.18} parent=0 // pred_check_branch
    %3 = sbr.rel (0) target = $region5
  $region4: #{tile.18} parent=0 // pred_region
    _
  $region5: #{tile.18} parent=0 // pred_fallthru
    _
  %v4 = vld [vmem:[%s0] ss:$0 sm:$0xff]
  %5 = vst [vmem:[%s1] sm:$0xff] %v4

// kernel: tile.22
$region0: #{tile.22}
  %s0 = inlined_call_operand.vmem [shape: f32[8,32], index: 0, kind: input, shape index: {}]
  %s1 = inlined_call_operand.vmem [shape: f32[1,256], index: 1, kind: output, shape index: {}]
  $region1: #{tile.22} parent=0
    #allocation0 [shape = 'u8[8192]{0}', space=vmem, size = 0x2000, scoped, tag = 'scoped mem for output reshape']
    %s2 = smov 3
    %v3 = vld [vmem:[%s0] ss:$4 sm:%s2]
    %vm4 = vcmask 261120
    %5 = vst.msk [vmem:[#allocation0] ss:$8 sm:$0x3] %vm4, %v3
    %s6 = scalar_lea.vmem %s0, 3
    %s7 = smov 3
    %v8 = vld [vmem:[%s6] ss:$4 sm:%s7]
    %9 = vrot.lane.b32.xlu0 %v8, 96
    %v10 = vpop.permute.xlu0 %9
    %vm11 = vcmask 1048320
    %12 = vst.msk [vmem:[#allocation0] ss:$8 sm:$0x3] %vm11, %v10
    %s13 = scalar_lea.vmem %s0, 2
    %s14 = smov 3
    %v15 = vld [vmem:[%s13] ss:$4 sm:%s14]
    %16 = vrot.lane.b32.xlu0 %v15, 64
    %v17 = vpop.permute.xlu0 %16
    %vm18 = vcmask 785920
    %19 = vst.msk [vmem:[#allocation0] ss:$8 sm:$0x3] %vm18, %v17
    %s20 = scalar_lea.vmem %s0, 1
    %s21 = smov 3
    %v22 = vld [vmem:[%s20] ss:$4 sm:%s21]
    %23 = vrot.lane.b32.xlu0 %v22, 32
    %v24 = vpop.permute.xlu0 %23
    %vm25 = vcmask 523520
    %26 = vst.msk [vmem:[#allocation0] ss:$8 sm:$0x3] %vm25, %v24
    %s28 = sshllo.u32 0, 1
    %v30 = vld [vmem:[#allocation0] sm:%s28]
    %s31 = sshllo.u32 0, 1
    %32 = vst [vmem:[%s1] sm:%s31] %v30
    %s33 = scalar_lea.vmem [#allocation0], 8
    %v34 = vld [vmem:[%s33] sm:%s28]
    %s35 = sshllo.u32 0, 1
    %s36 = scalar_lea.vmem %s1, 1
    %37 = vst [vmem:[%s36] sm:%s35] %v34

// kernel: l2block_forward.4
$region0: #{l2block_forward.4}
  #allocation0 [shape = 'u32[]', space=smem, size = 0x4, offset = 0x4, fixed_abs, tag = 'smem constant byte address 0x4 - core index']
  #allocation1 [shape = 'u32[144,128]{1,0:T(1,128)}', space=vmem, size = 0x12000, scoped, tag = 'internal scratch']
  %s0 = inlined_call_operand.vmem [shape: bf16[8,512], index: 0, kind: input, shape index: {}]
  %s1 = inlined_call_operand.vmem [shape: bf16[512,224], index: 1, kind: input, shape index: {}]
  %s2 = inlined_call_operand.vmem [shape: bf16[8,224], index: 2, kind: output, shape index: {}]
  %s3 = sld [smem:[#allocation0]]
  $region18: #{l2block_forward.4} parent=0
    _
  %s5 = ssub.s32 1, %s3
  %s6 = scalar_select 0, %s5, %s3
  // Predicated region
  $region2: #{l2block_forward.4} parent=0 // pred_check
    _
  $region3: #{l2block_forward.4} parent=0 // pred_check_branch
    %8 = sbr.rel (0) target = $region5
  $region4: #{l2block_forward.4} parent=0 // pred_region
    _
  $region5: #{l2block_forward.4} parent=0 // pred_fallthru
    _
  // Predicated region
  $region6: #{l2block_forward.4} parent=0 // pred_check
    _
  $region7: #{l2block_forward.4} parent=0 // pred_check_branch
    %10 = sbr.rel (0) target = $region9
  $region8: #{l2block_forward.4} parent=0 // pred_region
    _
  $region9: #{l2block_forward.4} parent=0 // pred_fallthru
    _
  %v11 = vld [vmem:[%s0] sm:$0xff]
  %v12 = vld [vmem:[%s0 + $0x8] sm:$0xff]
  %v13 = vld [vmem:[%s1] sm:$0xff]
  %v14 = vld [vmem:[%s1 + $0x8] sm:$0xff]
  %v15 = vld [vmem:[%s1 + $0x10] sm:$0xff]
  %v16 = vld [vmem:[%s1 + $0x18] sm:$0xff]
  %v17 = vld [vmem:[%s1 + $0x20] sm:$0xff]
  %v18 = vld [vmem:[%s1 + $0x28] sm:$0xff]
  %v19 = vld [vmem:[%s1 + $0x30] sm:$0xff]
  %v20 = vld [vmem:[%s1 + $0x38] sm:$0xff]
  %v21 = vld [vmem:[%s1 + $0x40] sm:$0xff]
  %v22 = vld [vmem:[%s1 + $0x48] sm:$0xff]
  %v23 = vld [vmem:[%s1 + $0x50] sm:$0xff]
  %v24 = vld [vmem:[%s1 + $0x58] sm:$0xff]
  %v25 = vld [vmem:[%s1 + $0x60] sm:$0xff]
  %v26 = vld [vmem:[%s1 + $0x68] sm:$0xff]
  %v27 = vld [vmem:[%s1 + $0x70] sm:$0xff]
  %v28 = vld [vmem:[%s1 + $0x78] sm:$0xff]
  %v29 = vld [vmem:[%s1 + $0x80] sm:$0xff]
  %v30 = vld [vmem:[%s1 + $0x88] sm:$0xff]
  %v31 = vld [vmem:[%s1 + $0x90] sm:$0xff]
  %v32 = vld [vmem:[%s1 + $0x98] sm:$0xff]
  %v33 = vld [vmem:[%s1 + $0xa0] sm:$0xff]
  %v34 = vld [vmem:[%s1 + $0xa8] sm:$0xff]
  %v35 = vld [vmem:[%s1 + $0xb0] sm:$0xff]
  %v36 = vld [vmem:[%s1 + $0xb8] sm:$0xff]
  %v37 = vld [vmem:[%s1 + $0xc0] sm:$0xff]
  %v38 = vld [vmem:[%s1 + $0xc8] sm:$0xff]
  %v39 = vld [vmem:[%s1 + $0xd0] sm:$0xff]
  %v40 = vld [vmem:[%s1 + $0xd8] sm:$0xff]
  %v41 = vld [vmem:[%s1 + $0xe0] sm:$0xff]
  %v42 = vld [vmem:[%s1 + $0xe8] sm:$0xff]
  %v43 = vld [vmem:[%s1 + $0xf0] sm:$0xff]
  %v44 = vld [vmem:[%s1 + $0xf8] sm:$0xff]
  %v45 = vld [vmem:[%s1 + $0x100] sm:$0xff]
  %v46 = vld [vmem:[%s1 + $0x108] sm:$0xff]
  %v47 = vld [vmem:[%s1 + $0x110] sm:$0xff]
  %v48 = vld [vmem:[%s1 + $0x118] sm:$0xff]
  %v49 = vld [vmem:[%s1 + $0x120] sm:$0xff]
  %v50 = vld [vmem:[%s1 + $0x128] sm:$0xff]
  %v51 = vld [vmem:[%s1 + $0x130] sm:$0xff]
  %v52 = vld [vmem:[%s1 + $0x138] sm:$0xff]
  %v53 = vld [vmem:[%s1 + $0x140] sm:$0xff]
  %v54 = vld [vmem:[%s1 + $0x148] sm:$0xff]
  %v55 = vld [vmem:[%s1 + $0x150] sm:$0xff]
  %v56 = vld [vmem:[%s1 + $0x158] sm:$0xff]
  %v57 = vld [vmem:[%s1 + $0x160] sm:$0xff]
  %v58 = vld [vmem:[%s1 + $0x168] sm:$0xff]
  %v59 = vld [vmem:[%s1 + $0x170] sm:$0xff]
  %v60 = vld [vmem:[%s1 + $0x178] sm:$0xff]
  %v61 = vld [vmem:[%s1 + $0x180] sm:$0xff]
  %v62 = vld [vmem:[%s1 + $0x188] sm:$0xff]
  %v63 = vld [vmem:[%s1 + $0x190] sm:$0xff]
  %v64 = vld [vmem:[%s1 + $0x198] sm:$0xff]
  %v65 = vld [vmem:[%s1 + $0x1a0] sm:$0xff]
  %v66 = vld [vmem:[%s1 + $0x1a8] sm:$0xff]
  %v67 = vld [vmem:[%s1 + $0x1b0] sm:$0xff]
  %v68 = vld [vmem:[%s1 + $0x1b8] sm:$0xff]
  %v69 = vld [vmem:[%s1 + $0x1c0] sm:$0xff]
  %v70 = vld [vmem:[%s1 + $0x1c8] sm:$0xff]
  %v71 = vld [vmem:[%s1 + $0x1d0] sm:$0xff]
  %v72 = vld [vmem:[%s1 + $0x1d8] sm:$0xff]
  %v73 = vld [vmem:[%s1 + $0x1e0] sm:$0xff]
  %v74 = vld [vmem:[%s1 + $0x1e8] sm:$0xff]
  %v75 = vld [vmem:[%s1 + $0x1f0] sm:$0xff]
  %v76 = vld [vmem:[%s1 + $0x1f8] sm:$0xff]
  %v79 = vunpack.c.l.b16 %v11
  %v80 = vunpack.c.h.b16 %v11
  %v81 = vunpack.c.l.b16 %v12
  %v82 = vunpack.c.h.b16 %v12
  %v83 = vpack.c.b16 %v79, %v79
  %v84 = vpack.c.b16 %v80, %v80
  %v85 = vpack.c.b16 %v81, %v81
  %v86 = vpack.c.b16 %v82, %v82
  %v155 = vunpack.c.l.b16 %v13
  %v156 = vunpack.c.h.b16 %v13
  %v157 = vunpack.c.l.b16 %v14
  %v158 = vunpack.c.h.b16 %v14
  %v159 = vunpack.c.l.b16 %v15
  %v160 = vunpack.c.h.b16 %v15
  %v161 = vunpack.c.l.b16 %v16
  %v162 = vunpack.c.h.b16 %v16
  %v163 = vunpack.c.l.b16 %v17
  %v164 = vunpack.c.h.b16 %v17
  %v165 = vunpack.c.l.b16 %v18
  %v166 = vunpack.c.h.b16 %v18
  %v167 = vunpack.c.l.b16 %v19
  %v168 = vunpack.c.h.b16 %v19
  %v169 = vunpack.c.l.b16 %v20
  %v170 = vunpack.c.h.b16 %v20
  %v171 = vunpack.c.l.b16 %v21
  %v172 = vunpack.c.h.b16 %v21
  %v173 = vunpack.c.l.b16 %v22
  %v174 = vunpack.c.h.b16 %v22
  %v175 = vunpack.c.l.b16 %v23
  %v176 = vunpack.c.h.b16 %v23
  %v177 = vunpack.c.l.b16 %v24
  %v178 = vunpack.c.h.b16 %v24
  %v179 = vunpack.c.l.b16 %v25
  %v180 = vunpack.c.h.b16 %v25
  %v181 = vunpack.c.l.b16 %v26
  %v182 = vunpack.c.h.b16 %v26
  %v183 = vunpack.c.l.b16 %v27
  %v184 = vunpack.c.h.b16 %v27
  %v185 = vunpack.c.l.b16 %v28
  %v186 = vunpack.c.h.b16 %v28
  %v187 = vunpack.c.l.b16 %v29
  %v188 = vunpack.c.h.b16 %v29
  %v189 = vunpack.c.l.b16 %v30
  %v190 = vunpack.c.h.b16 %v30
  %v191 = vunpack.c.l.b16 %v31
  %v192 = vunpack.c.h.b16 %v31
  %v193 = vunpack.c.l.b16 %v32
  %v194 = vunpack.c.h.b16 %v32
  %v195 = vunpack.c.l.b16 %v33
  %v196 = vunpack.c.h.b16 %v33
  %v197 = vunpack.c.l.b16 %v34
  %v198 = vunpack.c.h.b16 %v34
  %v199 = vunpack.c.l.b16 %v35
  %v200 = vunpack.c.h.b16 %v35
  %v201 = vunpack.c.l.b16 %v36
  %v202 = vunpack.c.h.b16 %v36
  %v203 = vunpack.c.l.b16 %v37
  %v204 = vunpack.c.h.b16 %v37
  %v205 = vunpack.c.l.b16 %v38
  %v206 = vunpack.c.h.b16 %v38
  %v207 = vunpack.c.l.b16 %v39
  %v208 = vunpack.c.h.b16 %v39
  %v209 = vunpack.c.l.b16 %v40
  %v210 = vunpack.c.h.b16 %v40
  %v211 = vunpack.c.l.b16 %v41
  %v212 = vunpack.c.h.b16 %v41
  %v213 = vunpack.c.l.b16 %v42
  %v214 = vunpack.c.h.b16 %v42
  %v215 = vunpack.c.l.b16 %v43
  %v216 = vunpack.c.h.b16 %v43
  %v217 = vunpack.c.l.b16 %v44
  %v218 = vunpack.c.h.b16 %v44
  %v219 = vunpack.c.l.b16 %v45
  %v220 = vunpack.c.h.b16 %v45
  %v221 = vunpack.c.l.b16 %v46
  %v222 = vunpack.c.h.b16 %v46
  %v223 = vunpack.c.l.b16 %v47
  %v224 = vunpack.c.h.b16 %v47
  %v225 = vunpack.c.l.b16 %v48
  %v226 = vunpack.c.h.b16 %v48
  %v227 = vunpack.c.l.b16 %v49
  %v228 = vunpack.c.h.b16 %v49
  %v229 = vunpack.c.l.b16 %v50
  %v230 = vunpack.c.h.b16 %v50
  %v231 = vunpack.c.l.b16 %v51
  %v232 = vunpack.c.h.b16 %v51
  %v233 = vunpack.c.l.b16 %v52
  %v234 = vunpack.c.h.b16 %v52
  %v235 = vunpack.c.l.b16 %v53
  %v236 = vunpack.c.h.b16 %v53
  %v237 = vunpack.c.l.b16 %v54
  %v238 = vunpack.c.h.b16 %v54
  %v239 = vunpack.c.l.b16 %v55
  %v240 = vunpack.c.h.b16 %v55
  %v241 = vunpack.c.l.b16 %v56
  %v242 = vunpack.c.h.b16 %v56
  %v243 = vunpack.c.l.b16 %v57
  %v244 = vunpack.c.h.b16 %v57
  %v245 = vunpack.c.l.b16 %v58
  %v246 = vunpack.c.h.b16 %v58
  %v247 = vunpack.c.l.b16 %v59
  %v248 = vunpack.c.h.b16 %v59
  %v249 = vunpack.c.l.b16 %v60
  %v250 = vunpack.c.h.b16 %v60
  %v251 = vunpack.c.l.b16 %v61
  %v252 = vunpack.c.h.b16 %v61
  %v253 = vunpack.c.l.b16 %v62
  %v254 = vunpack.c.h.b16 %v62
  %v255 = vunpack.c.l.b16 %v63
  %v256 = vunpack.c.h.b16 %v63
  %v257 = vunpack.c.l.b16 %v64
  %v258 = vunpack.c.h.b16 %v64
  %v259 = vunpack.c.l.b16 %v65
  %v260 = vunpack.c.h.b16 %v65
  %v261 = vunpack.c.l.b16 %v66
  %v262 = vunpack.c.h.b16 %v66
  %v263 = vunpack.c.l.b16 %v67
  %v264 = vunpack.c.h.b16 %v67
  %v265 = vunpack.c.l.b16 %v68
  %v266 = vunpack.c.h.b16 %v68
  %v267 = vunpack.c.l.b16 %v69
  %v268 = vunpack.c.h.b16 %v69
  %v269 = vunpack.c.l.b16 %v70
  %v270 = vunpack.c.h.b16 %v70
  %v271 = vunpack.c.l.b16 %v71
  %v272 = vunpack.c.h.b16 %v71
  %v273 = vunpack.c.l.b16 %v72
  %v274 = vunpack.c.h.b16 %v72
  %v275 = vunpack.c.l.b16 %v73
  %v276 = vunpack.c.h.b16 %v73
  %v277 = vunpack.c.l.b16 %v74
  %v278 = vunpack.c.h.b16 %v74
  %v279 = vunpack.c.l.b16 %v75
  %v280 = vunpack.c.h.b16 %v75
  %v281 = vunpack.c.l.b16 %v76
  %v282 = vunpack.c.h.b16 %v76
  %v283 = vpack.c.b16 %v157, %v155
  %v284 = vpack.c.b16 %v158, %v156
  %v285 = vpack.c.b16 %v161, %v159
  %v286 = vpack.c.b16 %v162, %v160
  %v287 = vpack.c.b16 %v165, %v163
  %v288 = vpack.c.b16 %v166, %v164
  %v289 = vpack.c.b16 %v169, %v167
  %v290 = vpack.c.b16 %v170, %v168
  %v291 = vpack.c.b16 %v173, %v171
  %v292 = vpack.c.b16 %v174, %v172
  %v293 = vpack.c.b16 %v177, %v175
  %v294 = vpack.c.b16 %v178, %v176
  %v295 = vpack.c.b16 %v181, %v179
  %v296 = vpack.c.b16 %v182, %v180
  %v297 = vpack.c.b16 %v185, %v183
  %v298 = vpack.c.b16 %v186, %v184
  %v299 = vpack.c.b16 %v189, %v187
  %v300 = vpack.c.b16 %v190, %v188
  %v301 = vpack.c.b16 %v193, %v191
  %v302 = vpack.c.b16 %v194, %v192
  %v303 = vpack.c.b16 %v197, %v195
  %v304 = vpack.c.b16 %v198, %v196
  %v305 = vpack.c.b16 %v201, %v199
  %v306 = vpack.c.b16 %v202, %v200
  %v307 = vpack.c.b16 %v205, %v203
  %v308 = vpack.c.b16 %v206, %v204
  %v309 = vpack.c.b16 %v209, %v207
  %v310 = vpack.c.b16 %v210, %v208
  %v311 = vpack.c.b16 %v213, %v211
  %v312 = vpack.c.b16 %v214, %v212
  %v313 = vpack.c.b16 %v217, %v215
  %v314 = vpack.c.b16 %v218, %v216
  %v315 = vpack.c.b16 %v221, %v219
  %v316 = vpack.c.b16 %v222, %v220
  %v317 = vpack.c.b16 %v225, %v223
  %v318 = vpack.c.b16 %v226, %v224
  %v319 = vpack.c.b16 %v229, %v227
  %v320 = vpack.c.b16 %v230, %v228
  %v321 = vpack.c.b16 %v233, %v231
  %v322 = vpack.c.b16 %v234, %v232
  %v323 = vpack.c.b16 %v237, %v235
  %v324 = vpack.c.b16 %v238, %v236
  %v325 = vpack.c.b16 %v241, %v239
  %v326 = vpack.c.b16 %v242, %v240
  %v327 = vpack.c.b16 %v245, %v243
  %v328 = vpack.c.b16 %v246, %v244
  %v329 = vpack.c.b16 %v249, %v247
  %v330 = vpack.c.b16 %v250, %v248
  %v331 = vpack.c.b16 %v253, %v251
  %v332 = vpack.c.b16 %v254, %v252
  %v333 = vpack.c.b16 %v257, %v255
  %v334 = vpack.c.b16 %v258, %v256
  %v335 = vpack.c.b16 %v261, %v259
  %v336 = vpack.c.b16 %v262, %v260
  %v337 = vpack.c.b16 %v265, %v263
  %v338 = vpack.c.b16 %v266, %v264
  %v339 = vpack.c.b16 %v269, %v267
  %v340 = vpack.c.b16 %v270, %v268
  %v341 = vpack.c.b16 %v273, %v271
  %v342 = vpack.c.b16 %v274, %v272
  %v343 = vpack.c.b16 %v277, %v275
  %v344 = vpack.c.b16 %v278, %v276
  %v345 = vpack.c.b16 %v281, %v279
  %v346 = vpack.c.b16 %v282, %v280
  %411 = vmatprep.subr.bf16.mxu0 %v284
  %412 = vmatpush1.bf16.msra.mxu0 %v283
  %413 = vmatprep.subr.bf16.mxu0 %v286
  %414 = vmatpush1.bf16.msra.mxu0 %v285
  %415 = vmatprep.subr.bf16.mxu0 %v288
  %416 = vmatpush1.bf16.msra.mxu0 %v287
  %417 = vmatprep.subr.bf16.mxu0 %v290
  %418 = vmatpush1.bf16.msra.mxu0 %v289
  %419 = vmatprep.subr.bf16.mxu0 %v292
  %420 = vmatpush1.bf16.msra.mxu0 %v291
  %421 = vmatprep.subr.bf16.mxu0 %v294
  %422 = vmatpush1.bf16.msra.mxu0 %v293
  %423 = vmatprep.subr.bf16.mxu0 %v296
  %424 = vmatpush1.bf16.msra.mxu0 %v295
  %425 = vmatprep.subr.bf16.mxu0 %v298
  %426 = vmatpush1.bf16.msra.mxu0 %v297
  %427 = vmatprep.subr.bf16.mxu0 %v300
  %428 = vmatpush1.bf16.msra.mxu0 %v299
  %429 = vmatprep.subr.bf16.mxu0 %v302
  %430 = vmatpush1.bf16.msra.mxu0 %v301
  %431 = vmatprep.subr.bf16.mxu0 %v304
  %432 = vmatpush1.bf16.msra.mxu0 %v303
  %433 = vmatprep.subr.bf16.mxu0 %v306
  %434 = vmatpush1.bf16.msra.mxu0 %v305
  %435 = vmatprep.subr.bf16.mxu0 %v308
  %436 = vmatpush1.bf16.msra.mxu0 %v307
  %437 = vmatprep.subr.bf16.mxu0 %v310
  %438 = vmatpush1.bf16.msra.mxu0 %v309
  %439 = vmatprep.subr.bf16.mxu0 %v312
  %440 = vmatpush1.bf16.msra.mxu0 %v311
  %441 = vmatprep.subr.bf16.mxu0 %v314
  %442 = vmatpush1.bf16.msra.mxu0 %v313
  %443 = vmatprep.mubr.bf16.mxu0 %v84
  %444 = vmatmul.mubr.bf16.gmra.mrb[0].mxu0 %v83
  %v445 = vpop.f32.mrb[0].mxu0
  %v446 = vadd.f32 0.0, %v445
  %v447 = vpop.f32.mrb[0].mxu0
  %v448 = vadd.f32 0.0, %v447
  %v449 = vpop.f32.mrb[0].mxu0
  %v450 = vpop.f32.mrb[0].mxu0
  %451 = vdwg.mxu0
  %452 = vmatprep.subr.bf16.mxu0 %v316
  %453 = vmatpush1.bf16.msra.mxu0 %v315
  %454 = vmatprep.subr.bf16.mxu0 %v318
  %455 = vmatpush1.bf16.msra.mxu0 %v317
  %456 = vmatprep.subr.bf16.mxu0 %v320
  %457 = vmatpush1.bf16.msra.mxu0 %v319
  %458 = vmatprep.subr.bf16.mxu0 %v322
  %459 = vmatpush1.bf16.msra.mxu0 %v321
  %460 = vmatprep.subr.bf16.mxu0 %v324
  %461 = vmatpush1.bf16.msra.mxu0 %v323
  %462 = vmatprep.subr.bf16.mxu0 %v326
  %463 = vmatpush1.bf16.msra.mxu0 %v325
  %464 = vmatprep.subr.bf16.mxu0 %v328
  %465 = vmatpush1.bf16.msra.mxu0 %v327
  %466 = vmatprep.subr.bf16.mxu0 %v330
  %467 = vmatpush1.bf16.msra.mxu0 %v329
  %468 = vmatprep.subr.bf16.mxu0 %v332
  %469 = vmatpush1.bf16.msra.mxu0 %v331
  %470 = vmatprep.subr.bf16.mxu0 %v334
  %471 = vmatpush1.bf16.msra.mxu0 %v333
  %472 = vmatprep.subr.bf16.mxu0 %v336
  %473 = vmatpush1.bf16.msra.mxu0 %v335
  %474 = vmatprep.subr.bf16.mxu0 %v338
  %475 = vmatpush1.bf16.msra.mxu0 %v337
  %476 = vmatprep.subr.bf16.mxu0 %v340
  %477 = vmatpush1.bf16.msra.mxu0 %v339
  %478 = vmatprep.subr.bf16.mxu0 %v342
  %479 = vmatpush1.bf16.msra.mxu0 %v341
  %480 = vmatprep.subr.bf16.mxu0 %v344
  %481 = vmatpush1.bf16.msra.mxu0 %v343
  %482 = vmatprep.subr.bf16.mxu0 %v346
  %483 = vmatpush1.bf16.msra.mxu0 %v345
  %484 = vmatprep.mubr.bf16.mxu0 %v86
  %485 = vmatmul.mubr.bf16.gmra.mrb[0].mxu0 %v85
  %v486 = vpop.f32.mrb[0].mxu0
  %v487 = vadd.f32 %v446, %v486
  %v488 = vpop.f32.mrb[0].mxu0
  %v489 = vadd.f32 %v448, %v488
  %v490 = vpop.f32.mrb[0].mxu0
  %v491 = vpop.f32.mrb[0].mxu0
  %492 = vdwg.mxu0
  %v493 = vpack.c.bf16 %v487, %v487
  %v494 = vpack.c.bf16 %v489, %v489
  %v497 = vunpack.c.l.b16 %v493
  %v498 = vunpack.c.l.b16 %v494
  %v499 = vpack.c.b16 %v498, %v497
  %vm501 = vcmask 1043456
  %vm502 = vcmask 785412
  %vm503 = vmor %vm502, %vm501
  %504 = vst.msk [vmem:[%s2] sm:$0xff] %vm503, %v499
  // Predicated region
  $region10: #{l2block_forward.4} parent=0 // pred_check
    _
  $region11: #{l2block_forward.4} parent=0 // pred_check_branch
    %506 = sbr.rel (0) target = $region13
  $region12: #{l2block_forward.4} parent=0 // pred_region
    _
  $region13: #{l2block_forward.4} parent=0 // pred_fallthru
    _
  // Predicated region
  $region14: #{l2block_forward.4} parent=0 // pred_check
    _
  $region15: #{l2block_forward.4} parent=0 // pred_check_branch
    %508 = sbr.rel (0) target = $region17
  $region16: #{l2block_forward.4} parent=0 // pred_region
    _
  $region17: #{l2block_forward.4} parent=0 // pred_fallthru
    _

// kernel: l2block_forward.3
$region0: #{l2block_forward.3}
  #allocation0 [shape = 'u32[]', space=smem, size = 0x4, offset = 0x4, fixed_abs, tag = 'smem constant byte address 0x4 - core index']
  #allocation1 [shape = 'u32[144,128]{1,0:T(1,128)}', space=vmem, size = 0x12000, scoped, tag = 'internal scratch']
  %s0 = inlined_call_operand.vmem [shape: bf16[16,1624], index: 0, kind: input, shape index: {}]
  %s1 = inlined_call_operand.vmem [shape: bf16[1624,256], index: 1, kind: input, shape index: {}]
  %s2 = inlined_call_operand.vmem [shape: f32[1,256], index: 2, kind: input, shape index: {}]
  %s3 = inlined_call_operand.vmem [shape: f32[1,256], index: 3, kind: input, shape index: {}]
  %s4 = inlined_call_operand.vmem [shape: bf16[256,256], index: 4, kind: input, shape index: {}]
  %s5 = inlined_call_operand.vmem [shape: bf16[16,256], index: 5, kind: output, shape index: {}]
  %s6 = sld [smem:[#allocation0]]
  $region53: #{l2block_forward.3} parent=0
    _
  %s8 = ssub.s32 1, %s6
  %s9 = scalar_select 0, %s8, %s6
  loop: start=0, step=1, limit=4
  $region2: #{l2block_forward.3} parent=0 // loop_pre_header
    _
  $region3: #{l2block_forward.3} parent=0 // loop_header
    %s11 = sphi 0, %s15
    %p12 = scmp.ge.s32.totalorder %s11, 4
    %s21 = sphi 0, %s23
    %s24 = sphi 0, %s21
    %s25 = sphi 0, %s24
    %s41 = sphi 0, %s25
    %s45 = sphi 0, %s45
    %s47 = sphi 0, %s45
    %s48 = sphi 0, %s47
    %s62 = sphi 0, %s48
    %s66 = sphi 0, %s66
    %s68 = sphi 0, %s66
    %s69 = sphi 0, %s68
    %s83 = sphi 0, %s69
    %s87 = sphi 0, %s87
    %s89 = sphi 0, %s87
    %s90 = sphi 0, %s89
    %s104 = sphi 0, %s90
    %s108 = sphi 0, %s108
    %s110 = sphi 0, %s108
    %s111 = sphi 0, %s110
    %s125 = sphi 0, %s111
    %s131 = sphi 0, %s133
    %s134 = sphi 0, %s131
    %s135 = sphi 0, %s134
    %s151 = sphi 0, %s135
  $region4: #{l2block_forward.3} parent=0 // loop_header_branch
    %14 = sbr.rel (%p12) target = $region8
  $region5: #{l2block_forward.3} parent=0 // loop_body
    %s16 = ssub.s32 %s11, 1
    %s17 = ssub.s32 %s11, 2
    %s18 = sadd.s32 %s11, 1
    %s19 = ssub.s32 %s11, %s18
    %p20 = scmp.eq.s32.totalorder %s19, 0
    %s22 = sadd.s32 %s21, 1
    %s23 = scalar_select %p20, %s21, %s22
    %p26 = pneg %p20
    %p27 = scmp.eq.s32.totalorder %s11, 1
    %p28 = por %p26, %p27
    %p29 = scmp.ne.s32.totalorder %s21, %s24
    %p30 = scmp.eq.s32.totalorder %s11, 0
    %p31 = por %p29, %p30
    %p32 = scmp.ne.s32.totalorder %s21, %s24
    %p33 = scmp.eq.s32.totalorder %s16, 1
    %p34 = por %p32, %p33
    %p35 = scmp.ne.s32.totalorder %s24, %s25
    %p36 = scmp.eq.s32.totalorder %s16, 0
    %p37 = por %p35, %p36
    %p38 = scmp.ne.s32.totalorder %s24, %s25
    %p39 = scmp.eq.s32.totalorder %s17, 1
    %p40 = por %p38, %p39
    %p42 = scmp.ne.s32.totalorder %s25, %s41
    %p43 = scmp.eq.s32.totalorder %s17, 0
    %p44 = por %p42, %p43
    %s46 = sadd.s32 %s45, 1
    %p49 = scmp.eq.s32.totalorder %s11, 1
    %p50 = scmp.ne.s32.totalorder %s45, %s47
    %p51 = scmp.eq.s32.totalorder %s11, 0
    %p52 = por %p50, %p51
    %p53 = scmp.ne.s32.totalorder %s45, %s47
    %p54 = scmp.eq.s32.totalorder %s16, 1
    %p55 = por %p53, %p54
    %p56 = scmp.ne.s32.totalorder %s47, %s48
    %p57 = scmp.eq.s32.totalorder %s16, 0
    %p58 = por %p56, %p57
    %p59 = scmp.ne.s32.totalorder %s47, %s48
    %p60 = scmp.eq.s32.totalorder %s17, 1
    %p61 = por %p59, %p60
    %p63 = scmp.ne.s32.totalorder %s48, %s62
    %p64 = scmp.eq.s32.totalorder %s17, 0
    %p65 = por %p63, %p64
    %s67 = sadd.s32 %s66, 1
    %p70 = scmp.eq.s32.totalorder %s11, 1
    %p71 = scmp.ne.s32.totalorder %s66, %s68
    %p72 = scmp.eq.s32.totalorder %s11, 0
    %p73 = por %p71, %p72
    %p74 = scmp.ne.s32.totalorder %s66, %s68
    %p75 = scmp.eq.s32.totalorder %s16, 1
    %p76 = por %p74, %p75
    %p77 = scmp.ne.s32.totalorder %s68, %s69
    %p78 = scmp.eq.s32.totalorder %s16, 0
    %p79 = por %p77, %p78
    %p80 = scmp.ne.s32.totalorder %s68, %s69
    %p81 = scmp.eq.s32.totalorder %s17, 1
    %p82 = por %p80, %p81
    %p84 = scmp.ne.s32.totalorder %s69, %s83
    %p85 = scmp.eq.s32.totalorder %s17, 0
    %p86 = por %p84, %p85
    %s88 = sadd.s32 %s87, 1
    %p91 = scmp.eq.s32.totalorder %s11, 1
    %p92 = scmp.ne.s32.totalorder %s87, %s89
    %p93 = scmp.eq.s32.totalorder %s11, 0
    %p94 = por %p92, %p93
    %p95 = scmp.ne.s32.totalorder %s87, %s89
    %p96 = scmp.eq.s32.totalorder %s16, 1
    %p97 = por %p95, %p96
    %p98 = scmp.ne.s32.totalorder %s89, %s90
    %p99 = scmp.eq.s32.totalorder %s16, 0
    %p100 = por %p98, %p99
    %p101 = scmp.ne.s32.totalorder %s89, %s90
    %p102 = scmp.eq.s32.totalorder %s17, 1
    %p103 = por %p101, %p102
    %p105 = scmp.ne.s32.totalorder %s90, %s104
    %p106 = scmp.eq.s32.totalorder %s17, 0
    %p107 = por %p105, %p106
    %s109 = sadd.s32 %s108, 1
    %p112 = scmp.eq.s32.totalorder %s11, 1
    %p113 = scmp.ne.s32.totalorder %s108, %s110
    %p114 = scmp.eq.s32.totalorder %s11, 0
    %p115 = por %p113, %p114
    %p116 = scmp.ne.s32.totalorder %s108, %s110
    %p117 = scmp.eq.s32.totalorder %s16, 1
    %p118 = por %p116, %p117
    %p119 = scmp.ne.s32.totalorder %s110, %s111
    %p120 = scmp.eq.s32.totalorder %s16, 0
    %p121 = por %p119, %p120
    %p122 = scmp.ne.s32.totalorder %s110, %s111
    %p123 = scmp.eq.s32.totalorder %s17, 1
    %p124 = por %p122, %p123
    %p126 = scmp.ne.s32.totalorder %s111, %s125
    %p127 = scmp.eq.s32.totalorder %s17, 0
    %p128 = por %p126, %p127
    %s129 = ssub.s32 %s11, %s18
    %p130 = scmp.eq.s32.totalorder %s129, 0
    %s132 = sadd.s32 %s131, 1
    %s133 = scalar_select %p130, %s131, %s132
    %p136 = pneg %p130
    %p137 = scmp.eq.s32.totalorder %s11, 1
    %p138 = por %p136, %p137
    %p139 = scmp.ne.s32.totalorder %s131, %s134
    %p140 = scmp.eq.s32.totalorder %s11, 0
    %p141 = por %p139, %p140
    %p142 = scmp.ne.s32.totalorder %s131, %s134
    %p143 = scmp.eq.s32.totalorder %s16, 1
    %p144 = por %p142, %p143
    %p145 = scmp.ne.s32.totalorder %s134, %s135
    %p146 = scmp.eq.s32.totalorder %s16, 0
    %p147 = por %p145, %p146
    %p148 = scmp.ne.s32.totalorder %s134, %s135
    %p149 = scmp.eq.s32.totalorder %s17, 1
    %p150 = por %p148, %p149
    %p152 = scmp.ne.s32.totalorder %s135, %s151
    %p153 = scmp.eq.s32.totalorder %s17, 0
    %p154 = por %p152, %p153
    %p155 = scmp.le.s32.totalorder 1, %s11
    %p156 = scmp.lt.s32.totalorder %s11, 3
    %p157 = pnand %p155, %p156
    %p158 = pneg %p157
    // Predicated region
    $region9: #{l2block_forward.3} parent=5 // pred_check
      _
    $region10: #{l2block_forward.3} parent=5 // pred_check_branch
      %160 = sbr.rel (%p157) target = $region12
    $region11: #{l2block_forward.3} parent=5 // pred_region
      %s161 = ssub.s32 %s11, 1
      // Predicated region
      $region13: #{l2block_forward.3} parent=11 // pred_check
        %p162 = pneg %p58
      $region14: #{l2block_forward.3} parent=11 // pred_check_branch
        %164 = sbr.rel (%p162) target = $region16
      $region15: #{l2block_forward.3} parent=11 // pred_region
        _
      $region16: #{l2block_forward.3} parent=11 // pred_fallthru
        _
      // Predicated region
      $region17: #{l2block_forward.3} parent=11 // pred_check
        %p165 = pneg %p79
      $region18: #{l2block_forward.3} parent=11 // pred_check_branch
        %167 = sbr.rel (%p165) target = $region20
      $region19: #{l2block_forward.3} parent=11 // pred_region
        _
      $region20: #{l2block_forward.3} parent=11 // pred_fallthru
        _
      // Predicated region
      $region21: #{l2block_forward.3} parent=11 // pred_check
        %p168 = pneg %p100
      $region22: #{l2block_forward.3} parent=11 // pred_check_branch
        %170 = sbr.rel (%p168) target = $region24
      $region23: #{l2block_forward.3} parent=11 // pred_region
        _
      $region24: #{l2block_forward.3} parent=11 // pred_fallthru
        _
      // Predicated region
      $region25: #{l2block_forward.3} parent=11 // pred_check
        %p171 = pneg %p121
      $region26: #{l2block_forward.3} parent=11 // pred_check_branch
        %173 = sbr.rel (%p171) target = $region28
      $region27: #{l2block_forward.3} parent=11 // pred_region
        _
      $region28: #{l2block_forward.3} parent=11 // pred_fallthru
        _
    $region12: #{l2block_forward.3} parent=5 // pred_fallthru
      _
    %p174 = scmp.lt.s32.totalorder %s11, 2
    // Predicated region
    $region29: #{l2block_forward.3} parent=5 // pred_check
      %p175 = pneg %p174
    $region30: #{l2block_forward.3} parent=5 // pred_check_branch
      %177 = sbr.rel (%p175) target = $region32
    $region31: #{l2block_forward.3} parent=5 // pred_region
      // Predicated region
      $region33: #{l2block_forward.3} parent=31 // pred_check
        %p178 = pneg %p31
      $region34: #{l2block_forward.3} parent=31 // pred_check_branch
        %180 = sbr.rel (%p178) target = $region36
      $region35: #{l2block_forward.3} parent=31 // pred_region
        %p181 = scmp.lt.s32.totalorder %s11, 1
        %s182 = scalar_select %p181, %s11, 1
        %s183 = smul.addr %s182, 13
        %s184 = smul.addr %s183, 4
        %s185 = scalar_lea.vmem %s0, %s184
      $region36: #{l2block_forward.3} parent=31 // pred_fallthru
        _
    $region32: #{l2block_forward.3} parent=5 // pred_fallthru
      _
    %p186 = scmp.le.s32.totalorder 1, %s11
    %p187 = scmp.lt.s32.totalorder %s11, 3
    %p188 = pnand %p186, %p187
    %p189 = pneg %p188
    // Predicated region
    $region37: #{l2block_forward.3} parent=5 // pred_check
      _
    $region38: #{l2block_forward.3} parent=5 // pred_check_branch
      %191 = sbr.rel (%p188) target = $region40
    $region39: #{l2block_forward.3} parent=5 // pred_region
      %s192 = ssub.s32 %s11, 1
      %p193 = scmp.lt.s32.totalorder %s16, 1
      %s194 = scalar_select %p193, %s16, 1
      %s195 = smul.addr %s194, 13
      %s196 = smul.addr %s195, 4
      %s197 = scalar_lea.vmem %s0, %s196
      %p198 = pneg %p37
      %p199 = pneg %p34
      %p200 = pneg %p58
      %p201 = pneg %p55
      %p202 = pneg %p79
      %p203 = pneg %p76
      %p204 = pneg %p100
      %p205 = pneg %p97
      %p206 = pneg %p121
      %p207 = pneg %p118
      %p208 = pneg %p147
      %p209 = pneg %p144
      %p210 = scmp.lt.s32.totalorder %s16, 1
      %s211 = scalar_select %p210, %s16, 1
      %s212 = smul.addr %s211, 2
      %s213 = smul.addr %s212, 4
      %s214 = scalar_lea.vmem %s5, %s213
      %p215 = scmp.lt.s32.totalorder %s16, 1
      %s216 = scalar_select %p215, %s16, 1
      %s217 = smul.addr %s216, 13
      %s218 = smul.addr %s217, 4
      %s219 = scalar_lea.vmem %s0, %s218
      %p220 = scmp.lt.s32.totalorder %s16, 1
      %s221 = scalar_select %p220, %s16, 1
      %s222 = smul.addr %s221, 2
      %s223 = smul.addr %s222, 4
      %s224 = scalar_lea.vmem %s5, %s223
      %v226 = vld [vmem:[%s219] sm:$0xff]
      %v227 = vld [vmem:[%s219 + $0x8] sm:$0xff]
      %v228 = vld [vmem:[%s219 + $0x10] sm:$0xff]
      %v229 = vld [vmem:[%s219 + $0x18] sm:$0xff]
      %v230 = vld [vmem:[%s219 + $0x20] sm:$0xff]
      %v231 = vld [vmem:[%s219 + $0x28] sm:$0xff]
      %v232 = vld [vmem:[%s219 + $0x30] sm:$0xf]
      %v233 = vld [vmem:[%s1] sm:$0xff]
      %v234 = vld [vmem:[%s1 + $0x8] sm:$0xff]
      %v235 = vld [vmem:[%s1 + $0x10] sm:$0xff]
      %v236 = vld [vmem:[%s1 + $0x18] sm:$0xff]
      %v237 = vld [vmem:[%s1 + $0x20] sm:$0xff]
      %v238 = vld [vmem:[%s1 + $0x28] sm:$0xff]
      %v239 = vld [vmem:[%s1 + $0x30] sm:$0xff]
      %v240 = vld [vmem:[%s1 + $0x38] sm:$0xff]
      %v241 = vld [vmem:[%s1 + $0x40] sm:$0xff]
      %v242 = vld [vmem:[%s1 + $0x48] sm:$0xff]
      %v243 = vld [vmem:[%s1 + $0x50] sm:$0xff]
      %v244 = vld [vmem:[%s1 + $0x58] sm:$0xff]
      %v245 = vld [vmem:[%s1 + $0x60] sm:$0xff]
      %v246 = vld [vmem:[%s1 + $0x68] sm:$0xff]
      %v247 = vld [vmem:[%s1 + $0x70] sm:$0xff]
      %v248 = vld [vmem:[%s1 + $0x78] sm:$0xff]
      %v249 = vld [vmem:[%s1 + $0x80] sm:$0xff]
      %v250 = vld [vmem:[%s1 + $0x88] sm:$0xff]
      %v251 = vld [vmem:[%s1 + $0x90] sm:$0xff]
      %v252 = vld [vmem:[%s1 + $0x98] sm:$0xff]
      %v253 = vld [vmem:[%s1 + $0xa0] sm:$0xff]
      %v254 = vld [vmem:[%s1 + $0xa8] sm:$0xff]
      %v255 = vld [vmem:[%s1 + $0xb0] sm:$0xff]
      %v256 = vld [vmem:[%s1 + $0xb8] sm:$0xff]
      %v257 = vld [vmem:[%s1 + $0xc0] sm:$0xff]
      %v258 = vld [vmem:[%s1 + $0xc8] sm:$0xff]
      %v259 = vld [vmem:[%s1 + $0xd0] sm:$0xff]
      %v260 = vld [vmem:[%s1 + $0xd8] sm:$0xff]
      %v261 = vld [vmem:[%s1 + $0xe0] sm:$0xff]
      %v262 = vld [vmem:[%s1 + $0xe8] sm:$0xff]
      %v263 = vld [vmem:[%s1 + $0xf0] sm:$0xff]
      %v264 = vld [vmem:[%s1 + $0xf8] sm:$0xff]
      %v265 = vld [vmem:[%s1 + $0x100] sm:$0xff]
      %v266 = vld [vmem:[%s1 + $0x108] sm:$0xff]
      %v267 = vld [vmem:[%s1 + $0x110] sm:$0xff]
      %v268 = vld [vmem:[%s1 + $0x118] sm:$0xff]
      %v269 = vld [vmem:[%s1 + $0x120] sm:$0xff]
      %v270 = vld [vmem:[%s1 + $0x128] sm:$0xff]
      %v271 = vld [vmem:[%s1 + $0x130] sm:$0xff]
      %v272 = vld [vmem:[%s1 + $0x138] sm:$0xff]
      %v273 = vld [vmem:[%s1 + $0x140] sm:$0xff]
      %v274 = vld [vmem:[%s1 + $0x148] sm:$0xff]
      %v275 = vld [vmem:[%s1 + $0x150] sm:$0xff]
      %v276 = vld [vmem:[%s1 + $0x158] sm:$0xff]
      %v277 = vld [vmem:[%s1 + $0x160] sm:$0xff]
      %v278 = vld [vmem:[%s1 + $0x168] sm:$0xff]
      %v279 = vld [vmem:[%s1 + $0x170] sm:$0xff]
      %v280 = vld [vmem:[%s1 + $0x178] sm:$0xff]
      %v281 = vld [vmem:[%s1 + $0x180] sm:$0xff]
      %v282 = vld [vmem:[%s1 + $0x188] sm:$0xff]
      %v283 = vld [vmem:[%s1 + $0x190] sm:$0xff]
      %v284 = vld [vmem:[%s1 + $0x198] sm:$0xff]
      %v285 = vld [vmem:[%s1 + $0x1a0] sm:$0xff]
      %v286 = vld [vmem:[%s1 + $0x1a8] sm:$0xff]
      %v287 = vld [vmem:[%s1 + $0x1b0] sm:$0xff]
      %v288 = vld [vmem:[%s1 + $0x1b8] sm:$0xff]
      %v289 = vld [vmem:[%s1 + $0x1c0] sm:$0xff]
      %v290 = vld [vmem:[%s1 + $0x1c8] sm:$0xff]
      %v291 = vld [vmem:[%s1 + $0x1d0] sm:$0xff]
      %v292 = vld [vmem:[%s1 + $0x1d8] sm:$0xff]
      %v293 = vld [vmem:[%s1 + $0x1e0] sm:$0xff]
      %v294 = vld [vmem:[%s1 + $0x1e8] sm:$0xff]
      %v295 = vld [vmem:[%s1 + $0x1f0] sm:$0xff]
      %v296 = vld [vmem:[%s1 + $0x1f8] sm:$0xff]
      %v297 = vld [vmem:[%s1 + $0x200] sm:$0xff]
      %v298 = vld [vmem:[%s1 + $0x208] sm:$0xff]
      %v299 = vld [vmem:[%s1 + $0x210] sm:$0xff]
      %v300 = vld [vmem:[%s1 + $0x218] sm:$0xff]
      %v301 = vld [vmem:[%s1 + $0x220] sm:$0xff]
      %v302 = vld [vmem:[%s1 + $0x228] sm:$0xff]
      %v303 = vld [vmem:[%s1 + $0x230] sm:$0xff]
      %v304 = vld [vmem:[%s1 + $0x238] sm:$0xff]
      %v305 = vld [vmem:[%s1 + $0x240] sm:$0xff]
      %v306 = vld [vmem:[%s1 + $0x248] sm:$0xff]
      %v307 = vld [vmem:[%s1 + $0x250] sm:$0xff]
      %v308 = vld [vmem:[%s1 + $0x258] sm:$0xff]
      %v309 = vld [vmem:[%s1 + $0x260] sm:$0xff]
      %v310 = vld [vmem:[%s1 + $0x268] sm:$0xff]
      %v311 = vld [vmem:[%s1 + $0x270] sm:$0xff]
      %v312 = vld [vmem:[%s1 + $0x278] sm:$0xff]
      %v313 = vld [vmem:[%s1 + $0x280] sm:$0xff]
      %v314 = vld [vmem:[%s1 + $0x288] sm:$0xff]
      %v315 = vld [vmem:[%s1 + $0x290] sm:$0xff]
      %v316 = vld [vmem:[%s1 + $0x298] sm:$0xff]
      %v317 = vld [vmem:[%s1 + $0x2a0] sm:$0xff]
      %v318 = vld [vmem:[%s1 + $0x2a8] sm:$0xff]
      %v319 = vld [vmem:[%s1 + $0x2b0] sm:$0xff]
      %v320 = vld [vmem:[%s1 + $0x2b8] sm:$0xff]
      %v321 = vld [vmem:[%s1 + $0x2c0] sm:$0xff]
      %v322 = vld [vmem:[%s1 + $0x2c8] sm:$0xff]
      %v323 = vld [vmem:[%s1 + $0x2d0] sm:$0xff]
      %v324 = vld [vmem:[%s1 + $0x2d8] sm:$0xff]
      %v325 = vld [vmem:[%s1 + $0x2e0] sm:$0xff]
      %v326 = vld [vmem:[%s1 + $0x2e8] sm:$0xff]
      %v327 = vld [vmem:[%s1 + $0x2f0] sm:$0xff]
      %v328 = vld [vmem:[%s1 + $0x2f8] sm:$0xff]
      %v329 = vld [vmem:[%s1 + $0x300] sm:$0xff]
      %v330 = vld [vmem:[%s1 + $0x308] sm:$0xff]
      %v331 = vld [vmem:[%s1 + $0x310] sm:$0xff]
      %v332 = vld [vmem:[%s1 + $0x318] sm:$0xff]
      %v333 = vld [vmem:[%s1 + $0x320] sm:$0xff]
      %v334 = vld [vmem:[%s1 + $0x328] sm:$0xff]
      %v335 = vld [vmem:[%s1 + $0x330] sm:$0xff]
      %v336 = vld [vmem:[%s1 + $0x338] sm:$0xff]
      %v337 = vld [vmem:[%s1 + $0x340] sm:$0xff]
      %v338 = vld [vmem:[%s1 + $0x348] sm:$0xff]
      %v339 = vld [vmem:[%s1 + $0x350] sm:$0xff]
      %v340 = vld [vmem:[%s1 + $0x358] sm:$0xff]
      %v341 = vld [vmem:[%s1 + $0x360] sm:$0xff]
      %v342 = vld [vmem:[%s1 + $0x368] sm:$0xff]
      %v343 = vld [vmem:[%s1 + $0x370] sm:$0xff]
      %v344 = vld [vmem:[%s1 + $0x378] sm:$0xff]
      %v345 = vld [vmem:[%s1 + $0x380] sm:$0xff]
      %v346 = vld [vmem:[%s1 + $0x388] sm:$0xff]
      %v347 = vld [vmem:[%s1 + $0x390] sm:$0xff]
      %v348 = vld [vmem:[%s1 + $0x398] sm:$0xff]
      %v349 = vld [vmem:[%s1 + $0x3a0] sm:$0xff]
      %v350 = vld [vmem:[%s1 + $0x3a8] sm:$0xff]
      %v351 = vld [vmem:[%s1 + $0x3b0] sm:$0xff]
      %v352 = vld [vmem:[%s1 + $0x3b8] sm:$0xff]
      %v353 = vld [vmem:[%s1 + $0x3c0] sm:$0xff]
      %v354 = vld [vmem:[%s1 + $0x3c8] sm:$0xff]
      %v355 = vld [vmem:[%s1 + $0x3d0] sm:$0xff]
      %v356 = vld [vmem:[%s1 + $0x3d8] sm:$0xff]
      %v357 = vld [vmem:[%s1 + $0x3e0] sm:$0xff]
      %v358 = vld [vmem:[%s1 + $0x3e8] sm:$0xff]
      %v359 = vld [vmem:[%s1 + $0x3f0] sm:$0xff]
      %v360 = vld [vmem:[%s1 + $0x3f8] sm:$0xff]
      %v361 = vld [vmem:[%s1 + $0x400] sm:$0xff]
      %v362 = vld [vmem:[%s1 + $0x408] sm:$0xff]
      %v363 = vld [vmem:[%s1 + $0x410] sm:$0xff]
      %v364 = vld [vmem:[%s1 + $0x418] sm:$0xff]
      %v365 = vld [vmem:[%s1 + $0x420] sm:$0xff]
      %v366 = vld [vmem:[%s1 + $0x428] sm:$0xff]
      %v367 = vld [vmem:[%s1 + $0x430] sm:$0xff]
      %v368 = vld [vmem:[%s1 + $0x438] sm:$0xff]
      %v369 = vld [vmem:[%s1 + $0x440] sm:$0xff]
      %v370 = vld [vmem:[%s1 + $0x448] sm:$0xff]
      %v371 = vld [vmem:[%s1 + $0x450] sm:$0xff]
      %v372 = vld [vmem:[%s1 + $0x458] sm:$0xff]
      %v373 = vld [vmem:[%s1 + $0x460] sm:$0xff]
      %v374 = vld [vmem:[%s1 + $0x468] sm:$0xff]
      %v375 = vld [vmem:[%s1 + $0x470] sm:$0xff]
      %v376 = vld [vmem:[%s1 + $0x478] sm:$0xff]
      %v377 = vld [vmem:[%s1 + $0x480] sm:$0xff]
      %v378 = vld [vmem:[%s1 + $0x488] sm:$0xff]
      %v379 = vld [vmem:[%s1 + $0x490] sm:$0xff]
      %v380 = vld [vmem:[%s1 + $0x498] sm:$0xff]
      %v381 = vld [vmem:[%s1 + $0x4a0] sm:$0xff]
      %v382 = vld [vmem:[%s1 + $0x4a8] sm:$0xff]
      %v383 = vld [vmem:[%s1 + $0x4b0] sm:$0xff]
      %v384 = vld [vmem:[%s1 + $0x4b8] sm:$0xff]
      %v385 = vld [vmem:[%s1 + $0x4c0] sm:$0xff]
      %v386 = vld [vmem:[%s1 + $0x4c8] sm:$0xff]
      %v387 = vld [vmem:[%s1 + $0x4d0] sm:$0xff]
      %v388 = vld [vmem:[%s1 + $0x4d8] sm:$0xff]
      %v389 = vld [vmem:[%s1 + $0x4e0] sm:$0xff]
      %v390 = vld [vmem:[%s1 + $0x4e8] sm:$0xff]
      %v391 = vld [vmem:[%s1 + $0x4f0] sm:$0xff]
      %v392 = vld [vmem:[%s1 + $0x4f8] sm:$0xff]
      %v393 = vld [vmem:[%s1 + $0x500] sm:$0xff]
      %v394 = vld [vmem:[%s1 + $0x508] sm:$0xff]
      %v395 = vld [vmem:[%s1 + $0x510] sm:$0xff]
      %v396 = vld [vmem:[%s1 + $0x518] sm:$0xff]
      %v397 = vld [vmem:[%s1 + $0x520] sm:$0xff]
      %v398 = vld [vmem:[%s1 + $0x528] sm:$0xff]
      %v399 = vld [vmem:[%s1 + $0x530] sm:$0xff]
      %v400 = vld [vmem:[%s1 + $0x538] sm:$0xff]
      %v401 = vld [vmem:[%s1 + $0x540] sm:$0xff]
      %v402 = vld [vmem:[%s1 + $0x548] sm:$0xff]
      %v403 = vld [vmem:[%s1 + $0x550] sm:$0xff]
      %v404 = vld [vmem:[%s1 + $0x558] sm:$0xff]
      %v405 = vld [vmem:[%s1 + $0x560] sm:$0xff]
      %v406 = vld [vmem:[%s1 + $0x568] sm:$0xff]
      %v407 = vld [vmem:[%s1 + $0x570] sm:$0xff]
      %v408 = vld [vmem:[%s1 + $0x578] sm:$0xff]
      %v409 = vld [vmem:[%s1 + $0x580] sm:$0xff]
      %v410 = vld [vmem:[%s1 + $0x588] sm:$0xff]
      %v411 = vld [vmem:[%s1 + $0x590] sm:$0xff]
      %v412 = vld [vmem:[%s1 + $0x598] sm:$0xff]
      %v413 = vld [vmem:[%s1 + $0x5a0] sm:$0xff]
      %v414 = vld [vmem:[%s1 + $0x5a8] sm:$0xff]
      %v415 = vld [vmem:[%s1 + $0x5b0] sm:$0xff]
      %v416 = vld [vmem:[%s1 + $0x5b8] sm:$0xff]
      %v417 = vld [vmem:[%s1 + $0x5c0] sm:$0xff]
      %v418 = vld [vmem:[%s1 + $0x5c8] sm:$0xff]
      %v419 = vld [vmem:[%s1 + $0x5d0] sm:$0xff]
      %v420 = vld [vmem:[%s1 + $0x5d8] sm:$0xff]
      %v421 = vld [vmem:[%s1 + $0x5e0] sm:$0xff]
      %v422 = vld [vmem:[%s1 + $0x5e8] sm:$0xff]
      %v423 = vld [vmem:[%s1 + $0x5f0] sm:$0xff]
      %v424 = vld [vmem:[%s1 + $0x5f8] sm:$0xff]
      %v425 = vld [vmem:[%s1 + $0x600] sm:$0xff]
      %v426 = vld [vmem:[%s1 + $0x608] sm:$0xff]
      %v427 = vld [vmem:[%s1 + $0x610] sm:$0xff]
      %v428 = vld [vmem:[%s1 + $0x618] sm:$0xff]
      %v429 = vld [vmem:[%s1 + $0x620] sm:$0xff]
      %v430 = vld [vmem:[%s1 + $0x628] sm:$0xff]
      %v431 = vld [vmem:[%s1 + $0x630] sm:$0xff]
      %v432 = vld [vmem:[%s1 + $0x638] sm:$0xff]
      %v433 = vld [vmem:[%s1 + $0x640] sm:$0xff]
      %v434 = vld [vmem:[%s1 + $0x648] sm:$0xff]
      %v435 = vld [vmem:[%s1 + $0x650] sm:$0xff]
      %v436 = vld [vmem:[%s2] sm:$0x3]
      %v438 = vlaneseq
      %v439 = vshrl.u32 %v438, 7
      %v440 = vsub.s32 0, %v439
      %v441 = vrot.slane %v436, %v440
      %v442 = vlaneseq
      %v443 = vshrl.u32 %v442, 7
      %v444 = vsub.s32 1, %v443
      %v445 = vrot.slane %v436, %v444
      %v455 = vunpack.c.l.b16 %v226
      %v456 = vunpack.c.h.b16 %v226
      %v457 = vunpack.c.l.b16 %v227
      %v458 = vunpack.c.h.b16 %v227
      %v459 = vunpack.c.l.b16 %v228
      %v460 = vunpack.c.h.b16 %v228
      %v461 = vunpack.c.l.b16 %v229
      %v462 = vunpack.c.h.b16 %v229
      %v463 = vunpack.c.l.b16 %v230
      %v464 = vunpack.c.h.b16 %v230
      %v465 = vunpack.c.l.b16 %v231
      %v466 = vunpack.c.h.b16 %v231
      %v467 = vunpack.c.l.b16 %v232
      %v468 = vpack.c.b16 %v455, %v455
      %v469 = vpack.c.b16 %v456, %v456
      %v470 = vpack.c.b16 %v457, %v457
      %v471 = vpack.c.b16 %v458, %v458
      %v472 = vpack.c.b16 %v459, %v459
      %v473 = vpack.c.b16 %v460, %v460
      %v474 = vpack.c.b16 %v461, %v461
      %v475 = vpack.c.b16 %v462, %v462
      %v476 = vpack.c.b16 %v463, %v463
      %v477 = vpack.c.b16 %v464, %v464
      %v478 = vpack.c.b16 %v465, %v465
      %v479 = vpack.c.b16 %v466, %v466
      %v480 = vpack.c.b16 %v467, %v467
      %v696 = vunpack.c.l.b16 %v233
      %v697 = vunpack.c.h.b16 %v233
      %v698 = vunpack.c.l.b16 %v234
      %v699 = vunpack.c.h.b16 %v234
      %v700 = vunpack.c.l.b16 %v235
      %v701 = vunpack.c.h.b16 %v235
      %v702 = vunpack.c.l.b16 %v236
      %v703 = vunpack.c.h.b16 %v236
      %v704 = vunpack.c.l.b16 %v237
      %v705 = vunpack.c.h.b16 %v237
      %v706 = vunpack.c.l.b16 %v238
      %v707 = vunpack.c.h.b16 %v238
      %v708 = vunpack.c.l.b16 %v239
      %v709 = vunpack.c.h.b16 %v239
      %v710 = vunpack.c.l.b16 %v240
      %v711 = vunpack.c.h.b16 %v240
      %v712 = vunpack.c.l.b16 %v241
      %v713 = vunpack.c.h.b16 %v241
      %v714 = vunpack.c.l.b16 %v242
      %v715 = vunpack.c.h.b16 %v242
      %v716 = vunpack.c.l.b16 %v243
      %v717 = vunpack.c.h.b16 %v243
      %v718 = vunpack.c.l.b16 %v244
      %v719 = vunpack.c.h.b16 %v244
      %v720 = vunpack.c.l.b16 %v245
      %v721 = vunpack.c.h.b16 %v245
      %v722 = vunpack.c.l.b16 %v246
      %v723 = vunpack.c.h.b16 %v246
      %v724 = vunpack.c.l.b16 %v247
      %v725 = vunpack.c.h.b16 %v247
      %v726 = vunpack.c.l.b16 %v248
      %v727 = vunpack.c.h.b16 %v248
      %v728 = vunpack.c.l.b16 %v249
      %v729 = vunpack.c.h.b16 %v249
      %v730 = vunpack.c.l.b16 %v250
      %v731 = vunpack.c.h.b16 %v250
      %v732 = vunpack.c.l.b16 %v251
      %v733 = vunpack.c.h.b16 %v251
      %v734 = vunpack.c.l.b16 %v252
      %v735 = vunpack.c.h.b16 %v252
      %v736 = vunpack.c.l.b16 %v253
      %v737 = vunpack.c.h.b16 %v253
      %v738 = vunpack.c.l.b16 %v254
      %v739 = vunpack.c.h.b16 %v254
      %v740 = vunpack.c.l.b16 %v255
      %v741 = vunpack.c.h.b16 %v255
      %v742 = vunpack.c.l.b16 %v256
      %v743 = vunpack.c.h.b16 %v256
      %v744 = vunpack.c.l.b16 %v257
      %v745 = vunpack.c.h.b16 %v257
      %v746 = vunpack.c.l.b16 %v258
      %v747 = vunpack.c.h.b16 %v258
      %v748 = vunpack.c.l.b16 %v259
      %v749 = vunpack.c.h.b16 %v259
      %v750 = vunpack.c.l.b16 %v260
      %v751 = vunpack.c.h.b16 %v260
      %v752 = vunpack.c.l.b16 %v261
      %v753 = vunpack.c.h.b16 %v261
      %v754 = vunpack.c.l.b16 %v262
      %v755 = vunpack.c.h.b16 %v262
      %v756 = vunpack.c.l.b16 %v263
      %v757 = vunpack.c.h.b16 %v263
      %v758 = vunpack.c.l.b16 %v264
      %v759 = vunpack.c.h.b16 %v264
      %v760 = vunpack.c.l.b16 %v265
      %v761 = vunpack.c.h.b16 %v265
      %v762 = vunpack.c.l.b16 %v266
      %v763 = vunpack.c.h.b16 %v266
      %v764 = vunpack.c.l.b16 %v267
      %v765 = vunpack.c.h.b16 %v267
      %v766 = vunpack.c.l.b16 %v268
      %v767 = vunpack.c.h.b16 %v268
      %v768 = vunpack.c.l.b16 %v269
      %v769 = vunpack.c.h.b16 %v269
      %v770 = vunpack.c.l.b16 %v270
      %v771 = vunpack.c.h.b16 %v270
      %v772 = vunpack.c.l.b16 %v271
      %v773 = vunpack.c.h.b16 %v271
      %v774 = vunpack.c.l.b16 %v272
      %v775 = vunpack.c.h.b16 %v272
      %v776 = vunpack.c.l.b16 %v273
      %v777 = vunpack.c.h.b16 %v273
      %v778 = vunpack.c.l.b16 %v274
      %v779 = vunpack.c.h.b16 %v274
      %v780 = vunpack.c.l.b16 %v275
      %v781 = vunpack.c.h.b16 %v275
      %v782 = vunpack.c.l.b16 %v276
      %v783 = vunpack.c.h.b16 %v276
      %v784 = vunpack.c.l.b16 %v277
      %v785 = vunpack.c.h.b16 %v277
      %v786 = vunpack.c.l.b16 %v278
      %v787 = vunpack.c.h.b16 %v278
      %v788 = vunpack.c.l.b16 %v279
      %v789 = vunpack.c.h.b16 %v279
      %v790 = vunpack.c.l.b16 %v280
      %v791 = vunpack.c.h.b16 %v280
      %v792 = vunpack.c.l.b16 %v281
      %v793 = vunpack.c.h.b16 %v281
      %v794 = vunpack.c.l.b16 %v282
      %v795 = vunpack.c.h.b16 %v282
      %v796 = vunpack.c.l.b16 %v283
      %v797 = vunpack.c.h.b16 %v283
      %v798 = vunpack.c.l.b16 %v284
      %v799 = vunpack.c.h.b16 %v284
      %v800 = vunpack.c.l.b16 %v285
      %v801 = vunpack.c.h.b16 %v285
      %v802 = vunpack.c.l.b16 %v286
      %v803 = vunpack.c.h.b16 %v286
      %v804 = vunpack.c.l.b16 %v287
      %v805 = vunpack.c.h.b16 %v287
      %v806 = vunpack.c.l.b16 %v288
      %v807 = vunpack.c.h.b16 %v288
      %v808 = vunpack.c.l.b16 %v289
      %v809 = vunpack.c.h.b16 %v289
      %v810 = vunpack.c.l.b16 %v290
      %v811 = vunpack.c.h.b16 %v290
      %v812 = vunpack.c.l.b16 %v291
      %v813 = vunpack.c.h.b16 %v291
      %v814 = vunpack.c.l.b16 %v292
      %v815 = vunpack.c.h.b16 %v292
      %v816 = vunpack.c.l.b16 %v293
      %v817 = vunpack.c.h.b16 %v293
      %v818 = vunpack.c.l.b16 %v294
      %v819 = vunpack.c.h.b16 %v294
      %v820 = vunpack.c.l.b16 %v295
      %v821 = vunpack.c.h.b16 %v295
      %v822 = vunpack.c.l.b16 %v296
      %v823 = vunpack.c.h.b16 %v296
      %v824 = vunpack.c.l.b16 %v297
      %v825 = vunpack.c.h.b16 %v297
      %v826 = vunpack.c.l.b16 %v298
      %v827 = vunpack.c.h.b16 %v298
      %v828 = vunpack.c.l.b16 %v299
      %v829 = vunpack.c.h.b16 %v299
      %v830 = vunpack.c.l.b16 %v300
      %v831 = vunpack.c.h.b16 %v300
      %v832 = vunpack.c.l.b16 %v301
      %v833 = vunpack.c.h.b16 %v301
      %v834 = vunpack.c.l.b16 %v302
      %v835 = vunpack.c.h.b16 %v302
      %v836 = vunpack.c.l.b16 %v303
      %v837 = vunpack.c.h.b16 %v303
      %v838 = vunpack.c.l.b16 %v304
      %v839 = vunpack.c.h.b16 %v304
      %v840 = vunpack.c.l.b16 %v305
      %v841 = vunpack.c.h.b16 %v305
      %v842 = vunpack.c.l.b16 %v306
      %v843 = vunpack.c.h.b16 %v306
      %v844 = vunpack.c.l.b16 %v307
      %v845 = vunpack.c.h.b16 %v307
      %v846 = vunpack.c.l.b16 %v308
      %v847 = vunpack.c.h.b16 %v308
      %v848 = vunpack.c.l.b16 %v309
      %v849 = vunpack.c.h.b16 %v309
      %v850 = vunpack.c.l.b16 %v310
      %v851 = vunpack.c.h.b16 %v310
      %v852 = vunpack.c.l.b16 %v311
      %v853 = vunpack.c.h.b16 %v311
      %v854 = vunpack.c.l.b16 %v312
      %v855 = vunpack.c.h.b16 %v312
      %v856 = vunpack.c.l.b16 %v313
      %v857 = vunpack.c.h.b16 %v313
      %v858 = vunpack.c.l.b16 %v314
      %v859 = vunpack.c.h.b16 %v314
      %v860 = vunpack.c.l.b16 %v315
      %v861 = vunpack.c.h.b16 %v315
      %v862 = vunpack.c.l.b16 %v316
      %v863 = vunpack.c.h.b16 %v316
      %v864 = vunpack.c.l.b16 %v317
      %v865 = vunpack.c.h.b16 %v317
      %v866 = vunpack.c.l.b16 %v318
      %v867 = vunpack.c.h.b16 %v318
      %v868 = vunpack.c.l.b16 %v319
      %v869 = vunpack.c.h.b16 %v319
      %v870 = vunpack.c.l.b16 %v320
      %v871 = vunpack.c.h.b16 %v320
      %v872 = vunpack.c.l.b16 %v321
      %v873 = vunpack.c.h.b16 %v321
      %v874 = vunpack.c.l.b16 %v322
      %v875 = vunpack.c.h.b16 %v322
      %v876 = vunpack.c.l.b16 %v323
      %v877 = vunpack.c.h.b16 %v323
      %v878 = vunpack.c.l.b16 %v324
      %v879 = vunpack.c.h.b16 %v324
      %v880 = vunpack.c.l.b16 %v325
      %v881 = vunpack.c.h.b16 %v325
      %v882 = vunpack.c.l.b16 %v326
      %v883 = vunpack.c.h.b16 %v326
      %v884 = vunpack.c.l.b16 %v327
      %v885 = vunpack.c.h.b16 %v327
      %v886 = vunpack.c.l.b16 %v328
      %v887 = vunpack.c.h.b16 %v328
      %v888 = vunpack.c.l.b16 %v329
      %v889 = vunpack.c.h.b16 %v329
      %v890 = vunpack.c.l.b16 %v330
      %v891 = vunpack.c.h.b16 %v330
      %v892 = vunpack.c.l.b16 %v331
      %v893 = vunpack.c.h.b16 %v331
      %v894 = vunpack.c.l.b16 %v332
      %v895 = vunpack.c.h.b16 %v332
      %v896 = vunpack.c.l.b16 %v333
      %v897 = vunpack.c.h.b16 %v333
      %v898 = vunpack.c.l.b16 %v334
      %v899 = vunpack.c.h.b16 %v334
      %v900 = vunpack.c.l.b16 %v335
      %v901 = vunpack.c.h.b16 %v335
      %v902 = vunpack.c.l.b16 %v336
      %v903 = vunpack.c.h.b16 %v336
      %v904 = vunpack.c.l.b16 %v337
      %v905 = vunpack.c.h.b16 %v337
      %v906 = vunpack.c.l.b16 %v338
      %v907 = vunpack.c.h.b16 %v338
      %v908 = vunpack.c.l.b16 %v339
      %v909 = vunpack.c.h.b16 %v339
      %v910 = vunpack.c.l.b16 %v340
      %v911 = vunpack.c.h.b16 %v340
      %v912 = vunpack.c.l.b16 %v341
      %v913 = vunpack.c.h.b16 %v341
      %v914 = vunpack.c.l.b16 %v342
      %v915 = vunpack.c.h.b16 %v342
      %v916 = vunpack.c.l.b16 %v343
      %v917 = vunpack.c.h.b16 %v343
      %v918 = vunpack.c.l.b16 %v344
      %v919 = vunpack.c.h.b16 %v344
      %v920 = vunpack.c.l.b16 %v345
      %v921 = vunpack.c.h.b16 %v345
      %v922 = vunpack.c.l.b16 %v346
      %v923 = vunpack.c.h.b16 %v346
      %v924 = vunpack.c.l.b16 %v347
      %v925 = vunpack.c.h.b16 %v347
      %v926 = vunpack.c.l.b16 %v348
      %v927 = vunpack.c.h.b16 %v348
      %v928 = vunpack.c.l.b16 %v349
      %v929 = vunpack.c.h.b16 %v349
      %v930 = vunpack.c.l.b16 %v350
      %v931 = vunpack.c.h.b16 %v350
      %v932 = vunpack.c.l.b16 %v351
      %v933 = vunpack.c.h.b16 %v351
      %v934 = vunpack.c.l.b16 %v352
      %v935 = vunpack.c.h.b16 %v352
      %v936 = vunpack.c.l.b16 %v353
      %v937 = vunpack.c.h.b16 %v353
      %v938 = vunpack.c.l.b16 %v354
      %v939 = vunpack.c.h.b16 %v354
      %v940 = vunpack.c.l.b16 %v355
      %v941 = vunpack.c.h.b16 %v355
      %v942 = vunpack.c.l.b16 %v356
      %v943 = vunpack.c.h.b16 %v356
      %v944 = vunpack.c.l.b16 %v357
      %v945 = vunpack.c.h.b16 %v357
      %v946 = vunpack.c.l.b16 %v358
      %v947 = vunpack.c.h.b16 %v358
      %v948 = vunpack.c.l.b16 %v359
      %v949 = vunpack.c.h.b16 %v359
      %v950 = vunpack.c.l.b16 %v360
      %v951 = vunpack.c.h.b16 %v360
      %v952 = vunpack.c.l.b16 %v361
      %v953 = vunpack.c.h.b16 %v361
      %v954 = vunpack.c.l.b16 %v362
      %v955 = vunpack.c.h.b16 %v362
      %v956 = vunpack.c.l.b16 %v363
      %v957 = vunpack.c.h.b16 %v363
      %v958 = vunpack.c.l.b16 %v364
      %v959 = vunpack.c.h.b16 %v364
      %v960 = vunpack.c.l.b16 %v365
      %v961 = vunpack.c.h.b16 %v365
      %v962 = vunpack.c.l.b16 %v366
      %v963 = vunpack.c.h.b16 %v366
      %v964 = vunpack.c.l.b16 %v367
      %v965 = vunpack.c.h.b16 %v367
      %v966 = vunpack.c.l.b16 %v368
      %v967 = vunpack.c.h.b16 %v368
      %v968 = vunpack.c.l.b16 %v369
      %v969 = vunpack.c.h.b16 %v369
      %v970 = vunpack.c.l.b16 %v370
      %v971 = vunpack.c.h.b16 %v370
      %v972 = vunpack.c.l.b16 %v371
      %v973 = vunpack.c.h.b16 %v371
      %v974 = vunpack.c.l.b16 %v372
      %v975 = vunpack.c.h.b16 %v372
      %v976 = vunpack.c.l.b16 %v373
      %v977 = vunpack.c.h.b16 %v373
      %v978 = vunpack.c.l.b16 %v374
      %v979 = vunpack.c.h.b16 %v374
      %v980 = vunpack.c.l.b16 %v375
      %v981 = vunpack.c.h.b16 %v375
      %v982 = vunpack.c.l.b16 %v376
      %v983 = vunpack.c.h.b16 %v376
      %v984 = vunpack.c.l.b16 %v377
      %v985 = vunpack.c.h.b16 %v377
      %v986 = vunpack.c.l.b16 %v378
      %v987 = vunpack.c.h.b16 %v378
      %v988 = vunpack.c.l.b16 %v379
      %v989 = vunpack.c.h.b16 %v379
      %v990 = vunpack.c.l.b16 %v380
      %v991 = vunpack.c.h.b16 %v380
      %v992 = vunpack.c.l.b16 %v381
      %v993 = vunpack.c.h.b16 %v381
      %v994 = vunpack.c.l.b16 %v382
      %v995 = vunpack.c.h.b16 %v382
      %v996 = vunpack.c.l.b16 %v383
      %v997 = vunpack.c.h.b16 %v383
      %v998 = vunpack.c.l.b16 %v384
      %v999 = vunpack.c.h.b16 %v384
      %v1000 = vunpack.c.l.b16 %v385
      %v1001 = vunpack.c.h.b16 %v385
      %v1002 = vunpack.c.l.b16 %v386
      %v1003 = vunpack.c.h.b16 %v386
      %v1004 = vunpack.c.l.b16 %v387
      %v1005 = vunpack.c.h.b16 %v387
      %v1006 = vunpack.c.l.b16 %v388
      %v1007 = vunpack.c.h.b16 %v388
      %v1008 = vunpack.c.l.b16 %v389
      %v1009 = vunpack.c.h.b16 %v389
      %v1010 = vunpack.c.l.b16 %v390
      %v1011 = vunpack.c.h.b16 %v390
      %v1012 = vunpack.c.l.b16 %v391
      %v1013 = vunpack.c.h.b16 %v391
      %v1014 = vunpack.c.l.b16 %v392
      %v1015 = vunpack.c.h.b16 %v392
      %v1016 = vunpack.c.l.b16 %v393
      %v1017 = vunpack.c.h.b16 %v393
      %v1018 = vunpack.c.l.b16 %v394
      %v1019 = vunpack.c.h.b16 %v394
      %v1020 = vunpack.c.l.b16 %v395
      %v1021 = vunpack.c.h.b16 %v395
      %v1022 = vunpack.c.l.b16 %v396
      %v1023 = vunpack.c.h.b16 %v396
      %v1024 = vunpack.c.l.b16 %v397
      %v1025 = vunpack.c.h.b16 %v397
      %v1026 = vunpack.c.l.b16 %v398
      %v1027 = vunpack.c.h.b16 %v398
      %v1028 = vunpack.c.l.b16 %v399
      %v1029 = vunpack.c.h.b16 %v399
      %v1030 = vunpack.c.l.b16 %v400
      %v1031 = vunpack.c.h.b16 %v400
      %v1032 = vunpack.c.l.b16 %v401
      %v1033 = vunpack.c.h.b16 %v401
      %v1034 = vunpack.c.l.b16 %v402
      %v1035 = vunpack.c.h.b16 %v402
      %v1036 = vunpack.c.l.b16 %v403
      %v1037 = vunpack.c.h.b16 %v403
      %v1038 = vunpack.c.l.b16 %v404
      %v1039 = vunpack.c.h.b16 %v404
      %v1040 = vunpack.c.l.b16 %v405
      %v1041 = vunpack.c.h.b16 %v405
      %v1042 = vunpack.c.l.b16 %v406
      %v1043 = vunpack.c.h.b16 %v406
      %v1044 = vunpack.c.l.b16 %v407
      %v1045 = vunpack.c.h.b16 %v407
      %v1046 = vunpack.c.l.b16 %v408
      %v1047 = vunpack.c.h.b16 %v408
      %v1048 = vunpack.c.l.b16 %v409
      %v1049 = vunpack.c.h.b16 %v409
      %v1050 = vunpack.c.l.b16 %v410
      %v1051 = vunpack.c.h.b16 %v410
      %v1052 = vunpack.c.l.b16 %v411
      %v1053 = vunpack.c.h.b16 %v411
      %v1054 = vunpack.c.l.b16 %v412
      %v1055 = vunpack.c.h.b16 %v412
      %v1056 = vunpack.c.l.b16 %v413
      %v1057 = vunpack.c.h.b16 %v413
      %v1058 = vunpack.c.l.b16 %v414
      %v1059 = vunpack.c.h.b16 %v414
      %v1060 = vunpack.c.l.b16 %v415
      %v1061 = vunpack.c.h.b16 %v415
      %v1062 = vunpack.c.l.b16 %v416
      %v1063 = vunpack.c.h.b16 %v416
      %v1064 = vunpack.c.l.b16 %v417
      %v1065 = vunpack.c.h.b16 %v417
      %v1066 = vunpack.c.l.b16 %v418
      %v1067 = vunpack.c.h.b16 %v418
      %v1068 = vunpack.c.l.b16 %v419
      %v1069 = vunpack.c.h.b16 %v419
      %v1070 = vunpack.c.l.b16 %v420
      %v1071 = vunpack.c.h.b16 %v420
      %v1072 = vunpack.c.l.b16 %v421
      %v1073 = vunpack.c.h.b16 %v421
      %v1074 = vunpack.c.l.b16 %v422
      %v1075 = vunpack.c.h.b16 %v422
      %v1076 = vunpack.c.l.b16 %v423
      %v1077 = vunpack.c.h.b16 %v423
      %v1078 = vunpack.c.l.b16 %v424
      %v1079 = vunpack.c.h.b16 %v424
      %v1080 = vunpack.c.l.b16 %v425
      %v1081 = vunpack.c.h.b16 %v425
      %v1082 = vunpack.c.l.b16 %v426
      %v1083 = vunpack.c.h.b16 %v426
      %v1084 = vunpack.c.l.b16 %v427
      %v1085 = vunpack.c.h.b16 %v427
      %v1086 = vunpack.c.l.b16 %v428
      %v1087 = vunpack.c.h.b16 %v428
      %v1088 = vunpack.c.l.b16 %v429
      %v1089 = vunpack.c.h.b16 %v429
      %v1090 = vunpack.c.l.b16 %v430
      %v1091 = vunpack.c.h.b16 %v430
      %v1092 = vunpack.c.l.b16 %v431
      %v1093 = vunpack.c.h.b16 %v431
      %v1094 = vunpack.c.l.b16 %v432
      %v1095 = vunpack.c.h.b16 %v432
      %v1096 = vunpack.c.l.b16 %v433
      %v1097 = vunpack.c.h.b16 %v433
      %v1098 = vunpack.c.l.b16 %v434
      %v1099 = vunpack.c.h.b16 %v434
      %v1100 = vunpack.c.l.b16 %v435
      %v1101 = vunpack.c.h.b16 %v435
      %v1102 = vpack.c.b16 %v698, %v696
      %v1103 = vpack.c.b16 %v699, %v697
      %v1104 = vpack.c.b16 %v702, %v700
      %v1105 = vpack.c.b16 %v703, %v701
      %v1106 = vpack.c.b16 %v706, %v704
      %v1107 = vpack.c.b16 %v707, %v705
      %v1108 = vpack.c.b16 %v710, %v708
      %v1109 = vpack.c.b16 %v711, %v709
      %v1110 = vpack.c.b16 %v714, %v712
      %v1111 = vpack.c.b16 %v715, %v713
      %v1112 = vpack.c.b16 %v718, %v716
      %v1113 = vpack.c.b16 %v719, %v717
      %v1114 = vpack.c.b16 %v722, %v720
      %v1115 = vpack.c.b16 %v723, %v721
      %v1116 = vpack.c.b16 %v726, %v724
      %v1117 = vpack.c.b16 %v727, %v725
      %v1118 = vpack.c.b16 %v730, %v728
      %v1119 = vpack.c.b16 %v731, %v729
      %v1120 = vpack.c.b16 %v734, %v732
      %v1121 = vpack.c.b16 %v735, %v733
      %v1122 = vpack.c.b16 %v738, %v736
      %v1123 = vpack.c.b16 %v739, %v737
      %v1124 = vpack.c.b16 %v742, %v740
      %v1125 = vpack.c.b16 %v743, %v741
      %v1126 = vpack.c.b16 %v746, %v744
      %v1127 = vpack.c.b16 %v747, %v745
      %v1128 = vpack.c.b16 %v750, %v748
      %v1129 = vpack.c.b16 %v751, %v749
      %v1130 = vpack.c.b16 %v754, %v752
      %v1131 = vpack.c.b16 %v755, %v753
      %v1132 = vpack.c.b16 %v758, %v756
      %v1133 = vpack.c.b16 %v759, %v757
      %v1134 = vpack.c.b16 %v762, %v760
      %v1135 = vpack.c.b16 %v763, %v761
      %v1136 = vpack.c.b16 %v766, %v764
      %v1137 = vpack.c.b16 %v767, %v765
      %v1138 = vpack.c.b16 %v770, %v768
      %v1139 = vpack.c.b16 %v771, %v769
      %v1140 = vpack.c.b16 %v774, %v772
      %v1141 = vpack.c.b16 %v775, %v773
      %v1142 = vpack.c.b16 %v778, %v776
      %v1143 = vpack.c.b16 %v779, %v777
      %v1144 = vpack.c.b16 %v782, %v780
      %v1145 = vpack.c.b16 %v783, %v781
      %v1146 = vpack.c.b16 %v786, %v784
      %v1147 = vpack.c.b16 %v787, %v785
      %v1148 = vpack.c.b16 %v790, %v788
      %v1149 = vpack.c.b16 %v791, %v789
      %v1150 = vpack.c.b16 %v794, %v792
      %v1151 = vpack.c.b16 %v795, %v793
      %v1152 = vpack.c.b16 %v798, %v796
      %v1153 = vpack.c.b16 %v799, %v797
      %v1154 = vpack.c.b16 %v802, %v800
      %v1155 = vpack.c.b16 %v803, %v801
      %v1156 = vpack.c.b16 %v806, %v804
      %v1157 = vpack.c.b16 %v807, %v805
      %v1158 = vpack.c.b16 %v810, %v808
      %v1159 = vpack.c.b16 %v811, %v809
      %v1160 = vpack.c.b16 %v814, %v812
      %v1161 = vpack.c.b16 %v815, %v813
      %v1162 = vpack.c.b16 %v818, %v816
      %v1163 = vpack.c.b16 %v819, %v817
      %v1164 = vpack.c.b16 %v822, %v820
      %v1165 = vpack.c.b16 %v823, %v821
      %v1166 = vpack.c.b16 %v826, %v824
      %v1167 = vpack.c.b16 %v827, %v825
      %v1168 = vpack.c.b16 %v830, %v828
      %v1169 = vpack.c.b16 %v831, %v829
      %v1170 = vpack.c.b16 %v834, %v832
      %v1171 = vpack.c.b16 %v835, %v833
      %v1172 = vpack.c.b16 %v838, %v836
      %v1173 = vpack.c.b16 %v839, %v837
      %v1174 = vpack.c.b16 %v842, %v840
      %v1175 = vpack.c.b16 %v843, %v841
      %v1176 = vpack.c.b16 %v846, %v844
      %v1177 = vpack.c.b16 %v847, %v845
      %v1178 = vpack.c.b16 %v850, %v848
      %v1179 = vpack.c.b16 %v851, %v849
      %v1180 = vpack.c.b16 %v854, %v852
      %v1181 = vpack.c.b16 %v855, %v853
      %v1182 = vpack.c.b16 %v858, %v856
      %v1183 = vpack.c.b16 %v859, %v857
      %v1184 = vpack.c.b16 %v862, %v860
      %v1185 = vpack.c.b16 %v863, %v861
      %v1186 = vpack.c.b16 %v866, %v864
      %v1187 = vpack.c.b16 %v867, %v865
      %v1188 = vpack.c.b16 %v870, %v868
      %v1189 = vpack.c.b16 %v871, %v869
      %v1190 = vpack.c.b16 %v874, %v872
      %v1191 = vpack.c.b16 %v875, %v873
      %v1192 = vpack.c.b16 %v878, %v876
      %v1193 = vpack.c.b16 %v879, %v877
      %v1194 = vpack.c.b16 %v882, %v880
      %v1195 = vpack.c.b16 %v883, %v881
      %v1196 = vpack.c.b16 %v886, %v884
      %v1197 = vpack.c.b16 %v887, %v885
      %v1198 = vpack.c.b16 %v890, %v888
      %v1199 = vpack.c.b16 %v891, %v889
      %v1200 = vpack.c.b16 %v894, %v892
      %v1201 = vpack.c.b16 %v895, %v893
      %v1202 = vpack.c.b16 %v898, %v896
      %v1203 = vpack.c.b16 %v899, %v897
      %v1204 = vpack.c.b16 %v902, %v900
      %v1205 = vpack.c.b16 %v903, %v901
      %v1206 = vpack.c.b16 %v906, %v904
      %v1207 = vpack.c.b16 %v907, %v905
      %v1208 = vpack.c.b16 %v910, %v908
      %v1209 = vpack.c.b16 %v911, %v909
      %v1210 = vpack.c.b16 %v914, %v912
      %v1211 = vpack.c.b16 %v915, %v913
      %v1212 = vpack.c.b16 %v918, %v916
      %v1213 = vpack.c.b16 %v919, %v917
      %v1214 = vpack.c.b16 %v922, %v920
      %v1215 = vpack.c.b16 %v923, %v921
      %v1216 = vpack.c.b16 %v926, %v924
      %v1217 = vpack.c.b16 %v927, %v925
      %v1218 = vpack.c.b16 %v930, %v928
      %v1219 = vpack.c.b16 %v931, %v929
      %v1220 = vpack.c.b16 %v934, %v932
      %v1221 = vpack.c.b16 %v935, %v933
      %v1222 = vpack.c.b16 %v938, %v936
      %v1223 = vpack.c.b16 %v939, %v937
      %v1224 = vpack.c.b16 %v942, %v940
      %v1225 = vpack.c.b16 %v943, %v941
      %v1226 = vpack.c.b16 %v946, %v944
      %v1227 = vpack.c.b16 %v947, %v945
      %v1228 = vpack.c.b16 %v950, %v948
      %v1229 = vpack.c.b16 %v951, %v949
      %v1230 = vpack.c.b16 %v954, %v952
      %v1231 = vpack.c.b16 %v955, %v953
      %v1232 = vpack.c.b16 %v958, %v956
      %v1233 = vpack.c.b16 %v959, %v957
      %v1234 = vpack.c.b16 %v962, %v960
      %v1235 = vpack.c.b16 %v963, %v961
      %v1236 = vpack.c.b16 %v966, %v964
      %v1237 = vpack.c.b16 %v967, %v965
      %v1238 = vpack.c.b16 %v970, %v968
      %v1239 = vpack.c.b16 %v971, %v969
      %v1240 = vpack.c.b16 %v974, %v972
      %v1241 = vpack.c.b16 %v975, %v973
      %v1242 = vpack.c.b16 %v978, %v976
      %v1243 = vpack.c.b16 %v979, %v977
      %v1244 = vpack.c.b16 %v982, %v980
      %v1245 = vpack.c.b16 %v983, %v981
      %v1246 = vpack.c.b16 %v986, %v984
      %v1247 = vpack.c.b16 %v987, %v985
      %v1248 = vpack.c.b16 %v990, %v988
      %v1249 = vpack.c.b16 %v991, %v989
      %v1250 = vpack.c.b16 %v994, %v992
      %v1251 = vpack.c.b16 %v995, %v993
      %v1252 = vpack.c.b16 %v998, %v996
      %v1253 = vpack.c.b16 %v999, %v997
      %v1254 = vpack.c.b16 %v1002, %v1000
      %v1255 = vpack.c.b16 %v1003, %v1001
      %v1256 = vpack.c.b16 %v1006, %v1004
      %v1257 = vpack.c.b16 %v1007, %v1005
      %v1258 = vpack.c.b16 %v1010, %v1008
      %v1259 = vpack.c.b16 %v1011, %v1009
      %v1260 = vpack.c.b16 %v1014, %v1012
      %v1261 = vpack.c.b16 %v1015, %v1013
      %v1262 = vpack.c.b16 %v1018, %v1016
      %v1263 = vpack.c.b16 %v1019, %v1017
      %v1264 = vpack.c.b16 %v1022, %v1020
      %v1265 = vpack.c.b16 %v1023, %v1021
      %v1266 = vpack.c.b16 %v1026, %v1024
      %v1267 = vpack.c.b16 %v1027, %v1025
      %v1268 = vpack.c.b16 %v1030, %v1028
      %v1269 = vpack.c.b16 %v1031, %v1029
      %v1270 = vpack.c.b16 %v1034, %v1032
      %v1271 = vpack.c.b16 %v1035, %v1033
      %v1272 = vpack.c.b16 %v1038, %v1036
      %v1273 = vpack.c.b16 %v1039, %v1037
      %v1274 = vpack.c.b16 %v1042, %v1040
      %v1275 = vpack.c.b16 %v1043, %v1041
      %v1276 = vpack.c.b16 %v1046, %v1044
      %v1277 = vpack.c.b16 %v1047, %v1045
      %v1278 = vpack.c.b16 %v1050, %v1048
      %v1279 = vpack.c.b16 %v1051, %v1049
      %v1280 = vpack.c.b16 %v1054, %v1052
      %v1281 = vpack.c.b16 %v1055, %v1053
      %v1282 = vpack.c.b16 %v1058, %v1056
      %v1283 = vpack.c.b16 %v1059, %v1057
      %v1284 = vpack.c.b16 %v1062, %v1060
      %v1285 = vpack.c.b16 %v1063, %v1061
      %v1286 = vpack.c.b16 %v1066, %v1064
      %v1287 = vpack.c.b16 %v1067, %v1065
      %v1288 = vpack.c.b16 %v1070, %v1068
      %v1289 = vpack.c.b16 %v1071, %v1069
      %v1290 = vpack.c.b16 %v1074, %v1072
      %v1291 = vpack.c.b16 %v1075, %v1073
      %v1292 = vpack.c.b16 %v1078, %v1076
      %v1293 = vpack.c.b16 %v1079, %v1077
      %v1294 = vpack.c.b16 %v1082, %v1080
      %v1295 = vpack.c.b16 %v1083, %v1081
      %v1296 = vpack.c.b16 %v1086, %v1084
      %v1297 = vpack.c.b16 %v1087, %v1085
      %v1298 = vpack.c.b16 %v1090, %v1088
      %v1299 = vpack.c.b16 %v1091, %v1089
      %v1300 = vpack.c.b16 %v1094, %v1092
      %v1301 = vpack.c.b16 %v1095, %v1093
      %v1302 = vpack.c.b16 %v1098, %v1096
      %v1303 = vpack.c.b16 %v1099, %v1097
      %v1304 = vpack.c.b16 %v1100, %v1100
      %v1305 = vpack.c.b16 %v1101, %v1101
      %vm1508 = vcmask 719872
      %v1510 = vsel %vm1508, %v480, 0
      %vm1512 = vcmask 1043456
      %v1514 = vsel %vm1512, %v1304, 0
      %v1517 = vsel %vm1512, %v1305, 0
      %1519 = vmatprep.subr.bf16.mxu0 %v1103
      %1520 = vmatpush1.bf16.msra.mxu0 %v1102
      %1521 = vmatprep.subr.bf16.mxu0 %v1105
      %1522 = vmatpush1.bf16.msra.mxu0 %v1104
      %1523 = vmatprep.subr.bf16.mxu0 %v1107
      %1524 = vmatpush1.bf16.msra.mxu0 %v1106
      %1525 = vmatprep.subr.bf16.mxu0 %v1109
      %1526 = vmatpush1.bf16.msra.mxu0 %v1108
      %1527 = vmatprep.subr.bf16.mxu0 %v1111
      %1528 = vmatpush1.bf16.msra.mxu0 %v1110
      %1529 = vmatprep.subr.bf16.mxu0 %v1113
      %1530 = vmatpush1.bf16.msra.mxu0 %v1112
      %1531 = vmatprep.subr.bf16.mxu0 %v1115
      %1532 = vmatpush1.bf16.msra.mxu0 %v1114
      %1533 = vmatprep.subr.bf16.mxu0 %v1117
      %1534 = vmatpush1.bf16.msra.mxu0 %v1116
      %1535 = vmatprep.subr.bf16.mxu0 %v1119
      %1536 = vmatpush1.bf16.msra.mxu0 %v1118
      %1537 = vmatprep.subr.bf16.mxu0 %v1121
      %1538 = vmatpush1.bf16.msra.mxu0 %v1120
      %1539 = vmatprep.subr.bf16.mxu0 %v1123
      %1540 = vmatpush1.bf16.msra.mxu0 %v1122
      %1541 = vmatprep.subr.bf16.mxu0 %v1125
      %1542 = vmatpush1.bf16.msra.mxu0 %v1124
      %1543 = vmatprep.subr.bf16.mxu0 %v1127
      %1544 = vmatpush1.bf16.msra.mxu0 %v1126
      %1545 = vmatprep.subr.bf16.mxu0 %v1129
      %1546 = vmatpush1.bf16.msra.mxu0 %v1128
      %1547 = vmatprep.subr.bf16.mxu0 %v1131
      %1548 = vmatpush1.bf16.msra.mxu0 %v1130
      %1549 = vmatprep.subr.bf16.mxu0 %v1133
      %1550 = vmatpush1.bf16.msra.mxu0 %v1132
      %1551 = vmatprep.mubr.bf16.mxu0 %v469
      %1552 = vmatmul.mubr.bf16.gmra.mrb[0].mxu0 %v468
      %v1553 = vpop.f32.mrb[0].mxu0
      %v1554 = vadd.f32 %v441, %v1553
      %v1555 = vpop.f32.mrb[0].mxu0
      %v1556 = vadd.f32 %v445, %v1555
      %v1557 = vpop.f32.mrb[0].mxu0
      %v1558 = vpop.f32.mrb[0].mxu0
      %1559 = vdwg.mxu0
      %1560 = vmatprep.subr.bf16.mxu0 %v1135
      %1561 = vmatpush1.bf16.msra.mxu0 %v1134
      %1562 = vmatprep.subr.bf16.mxu0 %v1137
      %1563 = vmatpush1.bf16.msra.mxu0 %v1136
      %1564 = vmatprep.subr.bf16.mxu0 %v1139
      %1565 = vmatpush1.bf16.msra.mxu0 %v1138
      %1566 = vmatprep.subr.bf16.mxu0 %v1141
      %1567 = vmatpush1.bf16.msra.mxu0 %v1140
      %1568 = vmatprep.subr.bf16.mxu0 %v1143
      %1569 = vmatpush1.bf16.msra.mxu0 %v1142
      %1570 = vmatprep.subr.bf16.mxu0 %v1145
      %1571 = vmatpush1.bf16.msra.mxu0 %v1144
      %1572 = vmatprep.subr.bf16.mxu0 %v1147
      %1573 = vmatpush1.bf16.msra.mxu0 %v1146
      %1574 = vmatprep.subr.bf16.mxu0 %v1149
      %1575 = vmatpush1.bf16.msra.mxu0 %v1148
      %1576 = vmatprep.subr.bf16.mxu0 %v1151
      %1577 = vmatpush1.bf16.msra.mxu0 %v1150
      %1578 = vmatprep.subr.bf16.mxu0 %v1153
      %1579 = vmatpush1.bf16.msra.mxu0 %v1152
      %1580 = vmatprep.subr.bf16.mxu0 %v1155
      %1581 = vmatpush1.bf16.msra.mxu0 %v1154
      %1582 = vmatprep.subr.bf16.mxu0 %v1157
      %1583 = vmatpush1.bf16.msra.mxu0 %v1156
      %1584 = vmatprep.subr.bf16.mxu0 %v1159
      %1585 = vmatpush1.bf16.msra.mxu0 %v1158
      %1586 = vmatprep.subr.bf16.mxu0 %v1161
      %1587 = vmatpush1.bf16.msra.mxu0 %v1160
      %1588 = vmatprep.subr.bf16.mxu0 %v1163
      %1589 = vmatpush1.bf16.msra.mxu0 %v1162
      %1590 = vmatprep.subr.bf16.mxu0 %v1165
      %1591 = vmatpush1.bf16.msra.mxu0 %v1164
      %1592 = vmatprep.mubr.bf16.mxu0 %v471
      %1593 = vmatmul.mubr.bf16.gmra.mrb[0].mxu0 %v470
      %v1594 = vpop.f32.mrb[0].mxu0
      %v1595 = vadd.f32 %v1554, %v1594
      %v1596 = vpop.f32.mrb[0].mxu0
      %v1597 = vadd.f32 %v1556, %v1596
      %v1598 = vpop.f32.mrb[0].mxu0
      %v1599 = vpop.f32.mrb[0].mxu0
      %1600 = vdwg.mxu0
      %1601 = vmatprep.subr.bf16.mxu0 %v1167
      %1602 = vmatpush1.bf16.msra.mxu0 %v1166
      %1603 = vmatprep.subr.bf16.mxu0 %v1169
      %1604 = vmatpush1.bf16.msra.mxu0 %v1168
      %1605 = vmatprep.subr.bf16.mxu0 %v1171
      %1606 = vmatpush1.bf16.msra.mxu0 %v1170
      %1607 = vmatprep.subr.bf16.mxu0 %v1173
      %1608 = vmatpush1.bf16.msra.mxu0 %v1172
      %1609 = vmatprep.subr.bf16.mxu0 %v1175
      %1610 = vmatpush1.bf16.msra.mxu0 %v1174
      %1611 = vmatprep.subr.bf16.mxu0 %v1177
      %1612 = vmatpush1.bf16.msra.mxu0 %v1176
      %1613 = vmatprep.subr.bf16.mxu0 %v1179
      %1614 = vmatpush1.bf16.msra.mxu0 %v1178
      %1615 = vmatprep.subr.bf16.mxu0 %v1181
      %1616 = vmatpush1.bf16.msra.mxu0 %v1180
      %1617 = vmatprep.subr.bf16.mxu0 %v1183
      %1618 = vmatpush1.bf16.msra.mxu0 %v1182
      %1619 = vmatprep.subr.bf16.mxu0 %v1185
      %1620 = vmatpush1.bf16.msra.mxu0 %v1184
      %1621 = vmatprep.subr.bf16.mxu0 %v1187
      %1622 = vmatpush1.bf16.msra.mxu0 %v1186
      %1623 = vmatprep.subr.bf16.mxu0 %v1189
      %1624 = vmatpush1.bf16.msra.mxu0 %v1188
      %1625 = vmatprep.subr.bf16.mxu0 %v1191
      %1626 = vmatpush1.bf16.msra.mxu0 %v1190
      %1627 = vmatprep.subr.bf16.mxu0 %v1193
      %1628 = vmatpush1.bf16.msra.mxu0 %v1192
      %1629 = vmatprep.subr.bf16.mxu0 %v1195
      %1630 = vmatpush1.bf16.msra.mxu0 %v1194
      %1631 = vmatprep.subr.bf16.mxu0 %v1197
      %1632 = vmatpush1.bf16.msra.mxu0 %v1196
      %1633 = vmatprep.mubr.bf16.mxu0 %v473
      %1634 = vmatmul.mubr.bf16.gmra.mrb[0].mxu0 %v472
      %v1635 = vpop.f32.mrb[0].mxu0
      %v1636 = vadd.f32 %v1595, %v1635
      %v1637 = vpop.f32.mrb[0].mxu0
      %v1638 = vadd.f32 %v1597, %v1637
      %v1639 = vpop.f32.mrb[0].mxu0
      %v1640 = vpop.f32.mrb[0].mxu0
      %1641 = vdwg.mxu0
      %1642 = vmatprep.subr.bf16.mxu0 %v1199
      %1643 = vmatpush1.bf16.msra.mxu0 %v1198
      %1644 = vmatprep.subr.bf16.mxu0 %v1201
      %1645 = vmatpush1.bf16.msra.mxu0 %v1200
      %1646 = vmatprep.subr.bf16.mxu0 %v1203
      %1647 = vmatpush1.bf16.msra.mxu0 %v1202
      %1648 = vmatprep.subr.bf16.mxu0 %v1205
      %1649 = vmatpush1.bf16.msra.mxu0 %v1204
      %1650 = vmatprep.subr.bf16.mxu0 %v1207
      %1651 = vmatpush1.bf16.msra.mxu0 %v1206
      %1652 = vmatprep.subr.bf16.mxu0 %v1209
      %1653 = vmatpush1.bf16.msra.mxu0 %v1208
      %1654 = vmatprep.subr.bf16.mxu0 %v1211
      %1655 = vmatpush1.bf16.msra.mxu0 %v1210
      %1656 = vmatprep.subr.bf16.mxu0 %v1213
      %1657 = vmatpush1.bf16.msra.mxu0 %v1212
      %1658 = vmatprep.subr.bf16.mxu0 %v1215
      %1659 = vmatpush1.bf16.msra.mxu0 %v1214
      %1660 = vmatprep.subr.bf16.mxu0 %v1217
      %1661 = vmatpush1.bf16.msra.mxu0 %v1216
      %1662 = vmatprep.subr.bf16.mxu0 %v1219
      %1663 = vmatpush1.bf16.msra.mxu0 %v1218
      %1664 = vmatprep.subr.bf16.mxu0 %v1221
      %1665 = vmatpush1.bf16.msra.mxu0 %v1220
      %1666 = vmatprep.subr.bf16.mxu0 %v1223
      %1667 = vmatpush1.bf16.msra.mxu0 %v1222
      %1668 = vmatprep.subr.bf16.mxu0 %v1225
      %1669 = vmatpush1.bf16.msra.mxu0 %v1224
      %1670 = vmatprep.subr.bf16.mxu0 %v1227
      %1671 = vmatpush1.bf16.msra.mxu0 %v1226
      %1672 = vmatprep.subr.bf16.mxu0 %v1229
      %1673 = vmatpush1.bf16.msra.mxu0 %v1228
      %1674 = vmatprep.mubr.bf16.mxu0 %v475
      %1675 = vmatmul.mubr.bf16.gmra.mrb[0].mxu0 %v474
      %v1676 = vpop.f32.mrb[0].mxu0
      %v1677 = vadd.f32 %v1636, %v1676
      %v1678 = vpop.f32.mrb[0].mxu0
      %v1679 = vadd.f32 %v1638, %v1678
      %v1680 = vpop.f32.mrb[0].mxu0
      %v1681 = vpop.f32.mrb[0].mxu0
      %1682 = vdwg.mxu0
      %1683 = vmatprep.subr.bf16.mxu0 %v1231
      %1684 = vmatpush1.bf16.msra.mxu0 %v1230
      %1685 = vmatprep.subr.bf16.mxu0 %v1233
      %1686 = vmatpush1.bf16.msra.mxu0 %v1232
      %1687 = vmatprep.subr.bf16.mxu0 %v1235
      %1688 = vmatpush1.bf16.msra.mxu0 %v1234
      %1689 = vmatprep.subr.bf16.mxu0 %v1237
      %1690 = vmatpush1.bf16.msra.mxu0 %v1236
      %1691 = vmatprep.subr.bf16.mxu0 %v1239
      %1692 = vmatpush1.bf16.msra.mxu0 %v1238
      %1693 = vmatprep.subr.bf16.mxu0 %v1241
      %1694 = vmatpush1.bf16.msra.mxu0 %v1240
      %1695 = vmatprep.subr.bf16.mxu0 %v1243
      %1696 = vmatpush1.bf16.msra.mxu0 %v1242
      %1697 = vmatprep.subr.bf16.mxu0 %v1245
      %1698 = vmatpush1.bf16.msra.mxu0 %v1244
      %1699 = vmatprep.subr.bf16.mxu0 %v1247
      %1700 = vmatpush1.bf16.msra.mxu0 %v1246
      %1701 = vmatprep.subr.bf16.mxu0 %v1249
      %1702 = vmatpush1.bf16.msra.mxu0 %v1248
      %1703 = vmatprep.subr.bf16.mxu0 %v1251
      %1704 = vmatpush1.bf16.msra.mxu0 %v1250
      %1705 = vmatprep.subr.bf16.mxu0 %v1253
      %1706 = vmatpush1.bf16.msra.mxu0 %v1252
      %1707 = vmatprep.subr.bf16.mxu0 %v1255
      %1708 = vmatpush1.bf16.msra.mxu0 %v1254
      %1709 = vmatprep.subr.bf16.mxu0 %v1257
      %1710 = vmatpush1.bf16.msra.mxu0 %v1256
      %1711 = vmatprep.subr.bf16.mxu0 %v1259
      %1712 = vmatpush1.bf16.msra.mxu0 %v1258
      %1713 = vmatprep.subr.bf16.mxu0 %v1261
      %1714 = vmatpush1.bf16.msra.mxu0 %v1260
      %1715 = vmatprep.mubr.bf16.mxu0 %v477
      %1716 = vmatmul.mubr.bf16.gmra.mrb[0].mxu0 %v476
      %v1717 = vpop.f32.mrb[0].mxu0
      %v1718 = vadd.f32 %v1677, %v1717
      %v1719 = vpop.f32.mrb[0].mxu0
      %v1720 = vadd.f32 %v1679, %v1719
      %v1721 = vpop.f32.mrb[0].mxu0
      %v1722 = vpop.f32.mrb[0].mxu0
      %1723 = vdwg.mxu0
      %1724 = vmatprep.subr.bf16.mxu0 %v1263
      %1725 = vmatpush1.bf16.msra.mxu0 %v1262
      %1726 = vmatprep.subr.bf16.mxu0 %v1265
      %1727 = vmatpush1.bf16.msra.mxu0 %v1264
      %1728 = vmatprep.subr.bf16.mxu0 %v1267
      %1729 = vmatpush1.bf16.msra.mxu0 %v1266
      %1730 = vmatprep.subr.bf16.mxu0 %v1269
      %1731 = vmatpush1.bf16.msra.mxu0 %v1268
      %1732 = vmatprep.subr.bf16.mxu0 %v1271
      %1733 = vmatpush1.bf16.msra.mxu0 %v1270
      %1734 = vmatprep.subr.bf16.mxu0 %v1273
      %1735 = vmatpush1.bf16.msra.mxu0 %v1272
      %1736 = vmatprep.subr.bf16.mxu0 %v1275
      %1737 = vmatpush1.bf16.msra.mxu0 %v1274
      %1738 = vmatprep.subr.bf16.mxu0 %v1277
      %1739 = vmatpush1.bf16.msra.mxu0 %v1276
      %1740 = vmatprep.subr.bf16.mxu0 %v1279
      %1741 = vmatpush1.bf16.msra.mxu0 %v1278
      %1742 = vmatprep.subr.bf16.mxu0 %v1281
      %1743 = vmatpush1.bf16.msra.mxu0 %v1280
      %1744 = vmatprep.subr.bf16.mxu0 %v1283
      %1745 = vmatpush1.bf16.msra.mxu0 %v1282
      %1746 = vmatprep.subr.bf16.mxu0 %v1285
      %1747 = vmatpush1.bf16.msra.mxu0 %v1284
      %1748 = vmatprep.subr.bf16.mxu0 %v1287
      %1749 = vmatpush1.bf16.msra.mxu0 %v1286
      %1750 = vmatprep.subr.bf16.mxu0 %v1289
      %1751 = vmatpush1.bf16.msra.mxu0 %v1288
      %1752 = vmatprep.subr.bf16.mxu0 %v1291
      %1753 = vmatpush1.bf16.msra.mxu0 %v1290
      %1754 = vmatprep.subr.bf16.mxu0 %v1293
      %1755 = vmatpush1.bf16.msra.mxu0 %v1292
      %1756 = vmatprep.mubr.bf16.mxu0 %v479
      %1757 = vmatmul.mubr.bf16.gmra.mrb[0].mxu0 %v478
      %v1758 = vpop.f32.mrb[0].mxu0
      %v1759 = vadd.f32 %v1718, %v1758
      %v1760 = vpop.f32.mrb[0].mxu0
      %v1761 = vadd.f32 %v1720, %v1760
      %v1762 = vpop.f32.mrb[0].mxu0
      %v1763 = vpop.f32.mrb[0].mxu0
      %1764 = vdwg.mxu0
      %1765 = vmatprep.subr.bf16.mxu0 %v1295
      %1766 = vmatpush1.bf16.msra.mxu0 %v1294
      %1767 = vmatprep.subr.bf16.mxu0 %v1297
      %1768 = vmatpush1.bf16.msra.mxu0 %v1296
      %1769 = vmatprep.subr.bf16.mxu0 %v1299
      %1770 = vmatpush1.bf16.msra.mxu0 %v1298
      %1771 = vmatprep.subr.bf16.mxu0 %v1301
      %1772 = vmatpush1.bf16.msra.mxu0 %v1300
      %1773 = vmatprep.subr.bf16.mxu0 %v1303
      %1774 = vmatpush1.bf16.msra.mxu0 %v1302
      %1775 = vmatprep.subr.bf16.mxu0 %v1517
      %1776 = vmatpush1.bf16.msra.mxu0 %v1514
      %1777 = vmatprep.subr.bf16.mxu0 0
      %1778 = vmatpush1.bf16.msra.mxu0 0
      %1779 = vmatprep.subr.bf16.mxu0 0
      %1780 = vmatpush1.bf16.msra.mxu0 0
      %1781 = vmatprep.subr.bf16.mxu0 0
      %1782 = vmatpush1.bf16.msra.mxu0 0
      %1783 = vmatprep.subr.bf16.mxu0 0
      %1784 = vmatpush1.bf16.msra.mxu0 0
      %1785 = vmatprep.subr.bf16.mxu0 0
      %1786 = vmatpush1.bf16.msra.mxu0 0
      %1787 = vmatprep.subr.bf16.mxu0 0
      %1788 = vmatpush1.bf16.msra.mxu0 0
      %1789 = vmatprep.subr.bf16.mxu0 0
      %1790 = vmatpush1.bf16.msra.mxu0 0
      %1791 = vmatprep.subr.bf16.mxu0 0
      %1792 = vmatpush1.bf16.msra.mxu0 0
      %1793 = vmatprep.subr.bf16.mxu0 0
      %1794 = vmatpush1.bf16.msra.mxu0 0
      %1795 = vmatprep.subr.bf16.mxu0 0
      %1796 = vmatpush1.bf16.msra.mxu0 0
      %1797 = vmatprep.mubr.bf16.mxu0 0
      %1798 = vmatmul.mubr.bf16.gmra.mrb[0].mxu0 %v1510
      %v1799 = vpop.f32.mrb[0].mxu0
      %v1800 = vadd.f32 %v1759, %v1799
      %v1801 = vpop.f32.mrb[0].mxu0
      %v1802 = vadd.f32 %v1761, %v1801
      %v1803 = vpop.f32.mrb[0].mxu0
      %v1804 = vpop.f32.mrb[0].mxu0
      %1805 = vdwg.mxu0
      %vm1806 = vcmp.ge.f32.partialorder %v1800, 0.0
      %vm1807 = vcmp.ge.f32.partialorder %v1802, 0.0
      %v1808 = vld [vmem:[%s3] sm:$0x3]
      %v1810 = vlaneseq
      %v1811 = vshrl.u32 %v1810, 7
      %v1812 = vsub.s32 0, %v1811
      %v1813 = vrot.slane %v1808, %v1812
      %v1814 = vlaneseq
      %v1815 = vshrl.u32 %v1814, 7
      %v1816 = vsub.s32 1, %v1815
      %v1817 = vrot.slane %v1808, %v1816
      %v1820 = vmul.f32 %v1813, %v1800
      %v1821 = vmul.f32 %v1817, %v1802
      %v1822 = vsel %vm1806, %v1800, %v1820
      %v1823 = vsel %vm1807, %v1802, %v1821
      %v1824 = vpack.c.bf16 %v1822, %v1822
      %v1825 = vpack.c.bf16 %v1823, %v1823
      %v1826 = vld [vmem:[%s4] sm:$0xff]
      %v1827 = vld [vmem:[%s4 + $0x8] sm:$0xff]
      %v1828 = vld [vmem:[%s4 + $0x10] sm:$0xff]
      %v1829 = vld [vmem:[%s4 + $0x18] sm:$0xff]
      %v1830 = vld [vmem:[%s4 + $0x20] sm:$0xff]
      %v1831 = vld [vmem:[%s4 + $0x28] sm:$0xff]
      %v1832 = vld [vmem:[%s4 + $0x30] sm:$0xff]
      %v1833 = vld [vmem:[%s4 + $0x38] sm:$0xff]
      %v1834 = vld [vmem:[%s4 + $0x40] sm:$0xff]
      %v1835 = vld [vmem:[%s4 + $0x48] sm:$0xff]
      %v1836 = vld [vmem:[%s4 + $0x50] sm:$0xff]
      %v1837 = vld [vmem:[%s4 + $0x58] sm:$0xff]
      %v1838 = vld [vmem:[%s4 + $0x60] sm:$0xff]
      %v1839 = vld [vmem:[%s4 + $0x68] sm:$0xff]
      %v1840 = vld [vmem:[%s4 + $0x70] sm:$0xff]
      %v1841 = vld [vmem:[%s4 + $0x78] sm:$0xff]
      %v1842 = vld [vmem:[%s4 + $0x80] sm:$0xff]
      %v1843 = vld [vmem:[%s4 + $0x88] sm:$0xff]
      %v1844 = vld [vmem:[%s4 + $0x90] sm:$0xff]
      %v1845 = vld [vmem:[%s4 + $0x98] sm:$0xff]
      %v1846 = vld [vmem:[%s4 + $0xa0] sm:$0xff]
      %v1847 = vld [vmem:[%s4 + $0xa8] sm:$0xff]
      %v1848 = vld [vmem:[%s4 + $0xb0] sm:$0xff]
      %v1849 = vld [vmem:[%s4 + $0xb8] sm:$0xff]
      %v1850 = vld [vmem:[%s4 + $0xc0] sm:$0xff]
      %v1851 = vld [vmem:[%s4 + $0xc8] sm:$0xff]
      %v1852 = vld [vmem:[%s4 + $0xd0] sm:$0xff]
      %v1853 = vld [vmem:[%s4 + $0xd8] sm:$0xff]
      %v1854 = vld [vmem:[%s4 + $0xe0] sm:$0xff]
      %v1855 = vld [vmem:[%s4 + $0xe8] sm:$0xff]
      %v1856 = vld [vmem:[%s4 + $0xf0] sm:$0xff]
      %v1857 = vld [vmem:[%s4 + $0xf8] sm:$0xff]
      %v1890 = vunpack.c.l.b16 %v1826
      %v1891 = vunpack.c.h.b16 %v1826
      %v1892 = vunpack.c.l.b16 %v1827
      %v1893 = vunpack.c.h.b16 %v1827
      %v1894 = vunpack.c.l.b16 %v1828
      %v1895 = vunpack.c.h.b16 %v1828
      %v1896 = vunpack.c.l.b16 %v1829
      %v1897 = vunpack.c.h.b16 %v1829
      %v1898 = vunpack.c.l.b16 %v1830
      %v1899 = vunpack.c.h.b16 %v1830
      %v1900 = vunpack.c.l.b16 %v1831
      %v1901 = vunpack.c.h.b16 %v1831
      %v1902 = vunpack.c.l.b16 %v1832
      %v1903 = vunpack.c.h.b16 %v1832
      %v1904 = vunpack.c.l.b16 %v1833
      %v1905 = vunpack.c.h.b16 %v1833
      %v1906 = vunpack.c.l.b16 %v1834
      %v1907 = vunpack.c.h.b16 %v1834
      %v1908 = vunpack.c.l.b16 %v1835
      %v1909 = vunpack.c.h.b16 %v1835
      %v1910 = vunpack.c.l.b16 %v1836
      %v1911 = vunpack.c.h.b16 %v1836
      %v1912 = vunpack.c.l.b16 %v1837
      %v1913 = vunpack.c.h.b16 %v1837
      %v1914 = vunpack.c.l.b16 %v1838
      %v1915 = vunpack.c.h.b16 %v1838
      %v1916 = vunpack.c.l.b16 %v1839
      %v1917 = vunpack.c.h.b16 %v1839
      %v1918 = vunpack.c.l.b16 %v1840
      %v1919 = vunpack.c.h.b16 %v1840
      %v1920 = vunpack.c.l.b16 %v1841
      %v1921 = vunpack.c.h.b16 %v1841
      %v1922 = vunpack.c.l.b16 %v1842
      %v1923 = vunpack.c.h.b16 %v1842
      %v1924 = vunpack.c.l.b16 %v1843
      %v1925 = vunpack.c.h.b16 %v1843
      %v1926 = vunpack.c.l.b16 %v1844
      %v1927 = vunpack.c.h.b16 %v1844
      %v1928 = vunpack.c.l.b16 %v1845
      %v1929 = vunpack.c.h.b16 %v1845
      %v1930 = vunpack.c.l.b16 %v1846
      %v1931 = vunpack.c.h.b16 %v1846
      %v1932 = vunpack.c.l.b16 %v1847
      %v1933 = vunpack.c.h.b16 %v1847
      %v1934 = vunpack.c.l.b16 %v1848
      %v1935 = vunpack.c.h.b16 %v1848
      %v1936 = vunpack.c.l.b16 %v1849
      %v1937 = vunpack.c.h.b16 %v1849
      %v1938 = vunpack.c.l.b16 %v1850
      %v1939 = vunpack.c.h.b16 %v1850
      %v1940 = vunpack.c.l.b16 %v1851
      %v1941 = vunpack.c.h.b16 %v1851
      %v1942 = vunpack.c.l.b16 %v1852
      %v1943 = vunpack.c.h.b16 %v1852
      %v1944 = vunpack.c.l.b16 %v1853
      %v1945 = vunpack.c.h.b16 %v1853
      %v1946 = vunpack.c.l.b16 %v1854
      %v1947 = vunpack.c.h.b16 %v1854
      %v1948 = vunpack.c.l.b16 %v1855
      %v1949 = vunpack.c.h.b16 %v1855
      %v1950 = vunpack.c.l.b16 %v1856
      %v1951 = vunpack.c.h.b16 %v1856
      %v1952 = vunpack.c.l.b16 %v1857
      %v1953 = vunpack.c.h.b16 %v1857
      %v1954 = vpack.c.b16 %v1892, %v1890
      %v1955 = vpack.c.b16 %v1893, %v1891
      %v1956 = vpack.c.b16 %v1896, %v1894
      %v1957 = vpack.c.b16 %v1897, %v1895
      %v1958 = vpack.c.b16 %v1900, %v1898
      %v1959 = vpack.c.b16 %v1901, %v1899
      %v1960 = vpack.c.b16 %v1904, %v1902
      %v1961 = vpack.c.b16 %v1905, %v1903
      %v1962 = vpack.c.b16 %v1908, %v1906
      %v1963 = vpack.c.b16 %v1909, %v1907
      %v1964 = vpack.c.b16 %v1912, %v1910
      %v1965 = vpack.c.b16 %v1913, %v1911
      %v1966 = vpack.c.b16 %v1916, %v1914
      %v1967 = vpack.c.b16 %v1917, %v1915
      %v1968 = vpack.c.b16 %v1920, %v1918
      %v1969 = vpack.c.b16 %v1921, %v1919
      %v1970 = vpack.c.b16 %v1924, %v1922
      %v1971 = vpack.c.b16 %v1925, %v1923
      %v1972 = vpack.c.b16 %v1928, %v1926
      %v1973 = vpack.c.b16 %v1929, %v1927
      %v1974 = vpack.c.b16 %v1932, %v1930
      %v1975 = vpack.c.b16 %v1933, %v1931
      %v1976 = vpack.c.b16 %v1936, %v1934
      %v1977 = vpack.c.b16 %v1937, %v1935
      %v1978 = vpack.c.b16 %v1940, %v1938
      %v1979 = vpack.c.b16 %v1941, %v1939
      %v1980 = vpack.c.b16 %v1944, %v1942
      %v1981 = vpack.c.b16 %v1945, %v1943
      %v1982 = vpack.c.b16 %v1948, %v1946
      %v1983 = vpack.c.b16 %v1949, %v1947
      %v1984 = vpack.c.b16 %v1952, %v1950
      %v1985 = vpack.c.b16 %v1953, %v1951
      %2018 = vmatprep.subr.bf16.mxu0 %v1955
      %2019 = vmatpush1.bf16.msra.mxu0 %v1954
      %2020 = vmatprep.subr.bf16.mxu0 %v1957
      %2021 = vmatpush1.bf16.msra.mxu0 %v1956
      %2022 = vmatprep.subr.bf16.mxu0 %v1959
      %2023 = vmatpush1.bf16.msra.mxu0 %v1958
      %2024 = vmatprep.subr.bf16.mxu0 %v1961
      %2025 = vmatpush1.bf16.msra.mxu0 %v1960
      %2026 = vmatprep.subr.bf16.mxu0 %v1963
      %2027 = vmatpush1.bf16.msra.mxu0 %v1962
      %2028 = vmatprep.subr.bf16.mxu0 %v1965
      %2029 = vmatpush1.bf16.msra.mxu0 %v1964
      %2030 = vmatprep.subr.bf16.mxu0 %v1967
      %2031 = vmatpush1.bf16.msra.mxu0 %v1966
      %2032 = vmatprep.subr.bf16.mxu0 %v1969
      %2033 = vmatpush1.bf16.msra.mxu0 %v1968
      %2034 = vmatprep.subr.bf16.mxu0 %v1971
      %2035 = vmatpush1.bf16.msra.mxu0 %v1970
      %2036 = vmatprep.subr.bf16.mxu0 %v1973
      %2037 = vmatpush1.bf16.msra.mxu0 %v1972
      %2038 = vmatprep.subr.bf16.mxu0 %v1975
      %2039 = vmatpush1.bf16.msra.mxu0 %v1974
      %2040 = vmatprep.subr.bf16.mxu0 %v1977
      %2041 = vmatpush1.bf16.msra.mxu0 %v1976
      %2042 = vmatprep.subr.bf16.mxu0 %v1979
      %2043 = vmatpush1.bf16.msra.mxu0 %v1978
      %2044 = vmatprep.subr.bf16.mxu0 %v1981
      %2045 = vmatpush1.bf16.msra.mxu0 %v1980
      %2046 = vmatprep.subr.bf16.mxu0 %v1983
      %2047 = vmatpush1.bf16.msra.mxu0 %v1982
      %2048 = vmatprep.subr.bf16.mxu0 %v1985
      %2049 = vmatpush1.bf16.msra.mxu0 %v1984
      %2050 = vmatprep.mubr.bf16.mxu0 %v1825
      %2051 = vmatmul.mubr.bf16.gmra.mrb[0].mxu0 %v1824
      %v2052 = vpop.f32.mrb[0].mxu0
      %v2053 = vadd.f32 0.0, %v2052
      %v2054 = vpop.f32.mrb[0].mxu0
      %v2055 = vadd.f32 0.0, %v2054
      %v2056 = vpop.f32.mrb[0].mxu0
      %v2057 = vpop.f32.mrb[0].mxu0
      %2058 = vdwg.mxu0
      %v2059 = vpack.c.bf16 %v2053, %v2053
      %v2060 = vpack.c.bf16 %v2055, %v2055
      %v2063 = vunpack.c.l.b16 %v2059
      %v2064 = vunpack.c.l.b16 %v2060
      %v2065 = vpack.c.b16 %v2064, %v2063
      %2067 = vst [vmem:[%s224] sm:$0xff] %v2065
      %p2068 = scmp.lt.s32.totalorder %s16, 1
      %s2069 = scalar_select %p2068, %s16, 1
      %s2070 = smul.addr %s2069, 2
      %s2071 = smul.addr %s2070, 4
      %s2072 = scalar_lea.vmem %s5, %s2071
      // Predicated region
      $region41: #{l2block_forward.3} parent=39 // pred_check
        %p2073 = pneg %p144
      $region42: #{l2block_forward.3} parent=39 // pred_check_branch
        %2075 = sbr.rel (%p2073) target = $region44
      $region43: #{l2block_forward.3} parent=39 // pred_region
        _
      $region44: #{l2block_forward.3} parent=39 // pred_fallthru
        _
    $region40: #{l2block_forward.3} parent=5 // pred_fallthru
      _
    %p2076 = scmp.le.s32.totalorder 2, %s11
    // Predicated region
    $region45: #{l2block_forward.3} parent=5 // pred_check
      %p2077 = pneg %p2076
    $region46: #{l2block_forward.3} parent=5 // pred_check_branch
      %2079 = sbr.rel (%p2077) target = $region48
    $region47: #{l2block_forward.3} parent=5 // pred_region
      %s2080 = ssub.s32 %s11, 2
      // Predicated region
      $region49: #{l2block_forward.3} parent=47 // pred_check
        %p2081 = pneg %p150
      $region50: #{l2block_forward.3} parent=47 // pred_check_branch
        %2083 = sbr.rel (%p2081) target = $region52
      $region51: #{l2block_forward.3} parent=47 // pred_region
        %p2084 = scmp.lt.s32.totalorder %s17, 1
        %s2085 = scalar_select %p2084, %s17, 1
        %s2086 = smul.addr %s2085, 2
        %s2087 = smul.addr %s2086, 4
        %s2088 = scalar_lea.vmem %s5, %s2087
      $region52: #{l2block_forward.3} parent=47 // pred_fallthru
        _
    $region48: #{l2block_forward.3} parent=5 // pred_fallthru
      _
  $region6: #{l2block_forward.3} parent=0 // loop_footer
    %s15 = sadd.s32 1, %s11
  $region7: #{l2block_forward.3} parent=0 // loop_footer_branch
    %10 = sbr.rel target = $region3
  $region8: #{l2block_forward.3} parent=0 // loop_exit
    _

// kernel: l2block_forward.5
$region0: #{l2block_forward.5}
  #allocation0 [shape = 'u32[]', space=smem, size = 0x4, offset = 0x4, fixed_abs, tag = 'smem constant byte address 0x4 - core index']
  #allocation1 [shape = 'u32[144,128]{1,0:T(1,128)}', space=vmem, size = 0x12000, scoped, tag = 'internal scratch']
  %s0 = inlined_call_operand.vmem [shape: bf16[16,1536], index: 0, kind: input, shape index: {}]
  %s1 = inlined_call_operand.vmem [shape: bf16[1536,256], index: 1, kind: input, shape index: {}]
  %s2 = inlined_call_operand.vmem [shape: f32[1,256], index: 2, kind: input, shape index: {}]
  %s3 = inlined_call_operand.vmem [shape: f32[1,256], index: 3, kind: input, shape index: {}]
  %s4 = inlined_call_operand.vmem [shape: bf16[256,256], index: 4, kind: input, shape index: {}]
  %s5 = inlined_call_operand.vmem [shape: bf16[16,256], index: 5, kind: input, shape index: {}]
  %s6 = inlined_call_operand.vmem [shape: bf16[16,256], index: 6, kind: output, shape index: {}]
  %s7 = sld [smem:[#allocation0]]
  $region57: #{l2block_forward.5} parent=0
    _
  %s9 = ssub.s32 1, %s7
  %s10 = scalar_select 0, %s9, %s7
  loop: start=0, step=1, limit=4
  $region2: #{l2block_forward.5} parent=0 // loop_pre_header
    _
  $region3: #{l2block_forward.5} parent=0 // loop_header
    %s12 = sphi 0, %s16
    %p13 = scmp.ge.s32.totalorder %s12, 4
    %s22 = sphi 0, %s24
    %s25 = sphi 0, %s22
    %s26 = sphi 0, %s25
    %s42 = sphi 0, %s26
    %s46 = sphi 0, %s46
    %s48 = sphi 0, %s46
    %s49 = sphi 0, %s48
    %s63 = sphi 0, %s49
    %s67 = sphi 0, %s67
    %s69 = sphi 0, %s67
    %s70 = sphi 0, %s69
    %s84 = sphi 0, %s70
    %s88 = sphi 0, %s88
    %s90 = sphi 0, %s88
    %s91 = sphi 0, %s90
    %s105 = sphi 0, %s91
    %s109 = sphi 0, %s109
    %s111 = sphi 0, %s109
    %s112 = sphi 0, %s111
    %s126 = sphi 0, %s112
    %s132 = sphi 0, %s134
    %s135 = sphi 0, %s132
    %s136 = sphi 0, %s135
    %s152 = sphi 0, %s136
    %s158 = sphi 0, %s160
    %s161 = sphi 0, %s158
    %s162 = sphi 0, %s161
    %s178 = sphi 0, %s162
  $region4: #{l2block_forward.5} parent=0 // loop_header_branch
    %15 = sbr.rel (%p13) target = $region8
  $region5: #{l2block_forward.5} parent=0 // loop_body
    %s17 = ssub.s32 %s12, 1
    %s18 = ssub.s32 %s12, 2
    %s19 = sadd.s32 %s12, 1
    %s20 = ssub.s32 %s12, %s19
    %p21 = scmp.eq.s32.totalorder %s20, 0
    %s23 = sadd.s32 %s22, 1
    %s24 = scalar_select %p21, %s22, %s23
    %p27 = pneg %p21
    %p28 = scmp.eq.s32.totalorder %s12, 1
    %p29 = por %p27, %p28
    %p30 = scmp.ne.s32.totalorder %s22, %s25
    %p31 = scmp.eq.s32.totalorder %s12, 0
    %p32 = por %p30, %p31
    %p33 = scmp.ne.s32.totalorder %s22, %s25
    %p34 = scmp.eq.s32.totalorder %s17, 1
    %p35 = por %p33, %p34
    %p36 = scmp.ne.s32.totalorder %s25, %s26
    %p37 = scmp.eq.s32.totalorder %s17, 0
    %p38 = por %p36, %p37
    %p39 = scmp.ne.s32.totalorder %s25, %s26
    %p40 = scmp.eq.s32.totalorder %s18, 1
    %p41 = por %p39, %p40
    %p43 = scmp.ne.s32.totalorder %s26, %s42
    %p44 = scmp.eq.s32.totalorder %s18, 0
    %p45 = por %p43, %p44
    %s47 = sadd.s32 %s46, 1
    %p50 = scmp.eq.s32.totalorder %s12, 1
    %p51 = scmp.ne.s32.totalorder %s46, %s48
    %p52 = scmp.eq.s32.totalorder %s12, 0
    %p53 = por %p51, %p52
    %p54 = scmp.ne.s32.totalorder %s46, %s48
    %p55 = scmp.eq.s32.totalorder %s17, 1
    %p56 = por %p54, %p55
    %p57 = scmp.ne.s32.totalorder %s48, %s49
    %p58 = scmp.eq.s32.totalorder %s17, 0
    %p59 = por %p57, %p58
    %p60 = scmp.ne.s32.totalorder %s48, %s49
    %p61 = scmp.eq.s32.totalorder %s18, 1
    %p62 = por %p60, %p61
    %p64 = scmp.ne.s32.totalorder %s49, %s63
    %p65 = scmp.eq.s32.totalorder %s18, 0
    %p66 = por %p64, %p65
    %s68 = sadd.s32 %s67, 1
    %p71 = scmp.eq.s32.totalorder %s12, 1
    %p72 = scmp.ne.s32.totalorder %s67, %s69
    %p73 = scmp.eq.s32.totalorder %s12, 0
    %p74 = por %p72, %p73
    %p75 = scmp.ne.s32.totalorder %s67, %s69
    %p76 = scmp.eq.s32.totalorder %s17, 1
    %p77 = por %p75, %p76
    %p78 = scmp.ne.s32.totalorder %s69, %s70
    %p79 = scmp.eq.s32.totalorder %s17, 0
    %p80 = por %p78, %p79
    %p81 = scmp.ne.s32.totalorder %s69, %s70
    %p82 = scmp.eq.s32.totalorder %s18, 1
    %p83 = por %p81, %p82
    %p85 = scmp.ne.s32.totalorder %s70, %s84
    %p86 = scmp.eq.s32.totalorder %s18, 0
    %p87 = por %p85, %p86
    %s89 = sadd.s32 %s88, 1
    %p92 = scmp.eq.s32.totalorder %s12, 1
    %p93 = scmp.ne.s32.totalorder %s88, %s90
    %p94 = scmp.eq.s32.totalorder %s12, 0
    %p95 = por %p93, %p94
    %p96 = scmp.ne.s32.totalorder %s88, %s90
    %p97 = scmp.eq.s32.totalorder %s17, 1
    %p98 = por %p96, %p97
    %p99 = scmp.ne.s32.totalorder %s90, %s91
    %p100 = scmp.eq.s32.totalorder %s17, 0
    %p101 = por %p99, %p100
    %p102 = scmp.ne.s32.totalorder %s90, %s91
    %p103 = scmp.eq.s32.totalorder %s18, 1
    %p104 = por %p102, %p103
    %p106 = scmp.ne.s32.totalorder %s91, %s105
    %p107 = scmp.eq.s32.totalorder %s18, 0
    %p108 = por %p106, %p107
    %s110 = sadd.s32 %s109, 1
    %p113 = scmp.eq.s32.totalorder %s12, 1
    %p114 = scmp.ne.s32.totalorder %s109, %s111
    %p115 = scmp.eq.s32.totalorder %s12, 0
    %p116 = por %p114, %p115
    %p117 = scmp.ne.s32.totalorder %s109, %s111
    %p118 = scmp.eq.s32.totalorder %s17, 1
    %p119 = por %p117, %p118
    %p120 = scmp.ne.s32.totalorder %s111, %s112
    %p121 = scmp.eq.s32.totalorder %s17, 0
    %p122 = por %p120, %p121
    %p123 = scmp.ne.s32.totalorder %s111, %s112
    %p124 = scmp.eq.s32.totalorder %s18, 1
    %p125 = por %p123, %p124
    %p127 = scmp.ne.s32.totalorder %s112, %s126
    %p128 = scmp.eq.s32.totalorder %s18, 0
    %p129 = por %p127, %p128
    %s130 = ssub.s32 %s12, %s19
    %p131 = scmp.eq.s32.totalorder %s130, 0
    %s133 = sadd.s32 %s132, 1
    %s134 = scalar_select %p131, %s132, %s133
    %p137 = pneg %p131
    %p138 = scmp.eq.s32.totalorder %s12, 1
    %p139 = por %p137, %p138
    %p140 = scmp.ne.s32.totalorder %s132, %s135
    %p141 = scmp.eq.s32.totalorder %s12, 0
    %p142 = por %p140, %p141
    %p143 = scmp.ne.s32.totalorder %s132, %s135
    %p144 = scmp.eq.s32.totalorder %s17, 1
    %p145 = por %p143, %p144
    %p146 = scmp.ne.s32.totalorder %s135, %s136
    %p147 = scmp.eq.s32.totalorder %s17, 0
    %p148 = por %p146, %p147
    %p149 = scmp.ne.s32.totalorder %s135, %s136
    %p150 = scmp.eq.s32.totalorder %s18, 1
    %p151 = por %p149, %p150
    %p153 = scmp.ne.s32.totalorder %s136, %s152
    %p154 = scmp.eq.s32.totalorder %s18, 0
    %p155 = por %p153, %p154
    %s156 = ssub.s32 %s12, %s19
    %p157 = scmp.eq.s32.totalorder %s156, 0
    %s159 = sadd.s32 %s158, 1
    %s160 = scalar_select %p157, %s158, %s159
    %p163 = pneg %p157
    %p164 = scmp.eq.s32.totalorder %s12, 1
    %p165 = por %p163, %p164
    %p166 = scmp.ne.s32.totalorder %s158, %s161
    %p167 = scmp.eq.s32.totalorder %s12, 0
    %p168 = por %p166, %p167
    %p169 = scmp.ne.s32.totalorder %s158, %s161
    %p170 = scmp.eq.s32.totalorder %s17, 1
    %p171 = por %p169, %p170
    %p172 = scmp.ne.s32.totalorder %s161, %s162
    %p173 = scmp.eq.s32.totalorder %s17, 0
    %p174 = por %p172, %p173
    %p175 = scmp.ne.s32.totalorder %s161, %s162
    %p176 = scmp.eq.s32.totalorder %s18, 1
    %p177 = por %p175, %p176
    %p179 = scmp.ne.s32.totalorder %s162, %s178
    %p180 = scmp.eq.s32.totalorder %s18, 0
    %p181 = por %p179, %p180
    %p182 = scmp.le.s32.totalorder 1, %s12
    %p183 = scmp.lt.s32.totalorder %s12, 3
    %p184 = pnand %p182, %p183
    %p185 = pneg %p184
    // Predicated region
    $region9: #{l2block_forward.5} parent=5 // pred_check
      _
    $region10: #{l2block_forward.5} parent=5 // pred_check_branch
      %187 = sbr.rel (%p184) target = $region12
    $region11: #{l2block_forward.5} parent=5 // pred_region
      %s188 = ssub.s32 %s12, 1
      // Predicated region
      $region13: #{l2block_forward.5} parent=11 // pred_check
        %p189 = pneg %p59
      $region14: #{l2block_forward.5} parent=11 // pred_check_branch
        %191 = sbr.rel (%p189) target = $region16
      $region15: #{l2block_forward.5} parent=11 // pred_region
        _
      $region16: #{l2block_forward.5} parent=11 // pred_fallthru
        _
      // Predicated region
      $region17: #{l2block_forward.5} parent=11 // pred_check
        %p192 = pneg %p80
      $region18: #{l2block_forward.5} parent=11 // pred_check_branch
        %194 = sbr.rel (%p192) target = $region20
      $region19: #{l2block_forward.5} parent=11 // pred_region
        _
      $region20: #{l2block_forward.5} parent=11 // pred_fallthru
        _
      // Predicated region
      $region21: #{l2block_forward.5} parent=11 // pred_check
        %p195 = pneg %p101
      $region22: #{l2block_forward.5} parent=11 // pred_check_branch
        %197 = sbr.rel (%p195) target = $region24
      $region23: #{l2block_forward.5} parent=11 // pred_region
        _
      $region24: #{l2block_forward.5} parent=11 // pred_fallthru
        _
      // Predicated region
      $region25: #{l2block_forward.5} parent=11 // pred_check
        %p198 = pneg %p122
      $region26: #{l2block_forward.5} parent=11 // pred_check_branch
        %200 = sbr.rel (%p198) target = $region28
      $region27: #{l2block_forward.5} parent=11 // pred_region
        _
      $region28: #{l2block_forward.5} parent=11 // pred_fallthru
        _
    $region12: #{l2block_forward.5} parent=5 // pred_fallthru
      _
    %p201 = scmp.lt.s32.totalorder %s12, 2
    // Predicated region
    $region29: #{l2block_forward.5} parent=5 // pred_check
      %p202 = pneg %p201
    $region30: #{l2block_forward.5} parent=5 // pred_check_branch
      %204 = sbr.rel (%p202) target = $region32
    $region31: #{l2block_forward.5} parent=5 // pred_region
      // Predicated region
      $region33: #{l2block_forward.5} parent=31 // pred_check
        %p205 = pneg %p32
      $region34: #{l2block_forward.5} parent=31 // pred_check_branch
        %207 = sbr.rel (%p205) target = $region36
      $region35: #{l2block_forward.5} parent=31 // pred_region
        %p208 = scmp.lt.s32.totalorder %s12, 1
        %s209 = scalar_select %p208, %s12, 1
        %s210 = smul.addr %s209, 12
        %s211 = smul.addr %s210, 4
        %s212 = scalar_lea.vmem %s0, %s211
      $region36: #{l2block_forward.5} parent=31 // pred_fallthru
        _
      // Predicated region
      $region37: #{l2block_forward.5} parent=31 // pred_check
        %p213 = pneg %p142
      $region38: #{l2block_forward.5} parent=31 // pred_check_branch
        %215 = sbr.rel (%p213) target = $region40
      $region39: #{l2block_forward.5} parent=31 // pred_region
        %p216 = scmp.lt.s32.totalorder %s12, 1
        %s217 = scalar_select %p216, %s12, 1
        %s218 = smul.addr %s217, 2
        %s219 = smul.addr %s218, 4
        %s220 = scalar_lea.vmem %s5, %s219
      $region40: #{l2block_forward.5} parent=31 // pred_fallthru
        _
    $region32: #{l2block_forward.5} parent=5 // pred_fallthru
      _
    %p221 = scmp.le.s32.totalorder 1, %s12
    %p222 = scmp.lt.s32.totalorder %s12, 3
    %p223 = pnand %p221, %p222
    %p224 = pneg %p223
    // Predicated region
    $region41: #{l2block_forward.5} parent=5 // pred_check
      _
    $region42: #{l2block_forward.5} parent=5 // pred_check_branch
      %226 = sbr.rel (%p223) target = $region44
    $region43: #{l2block_forward.5} parent=5 // pred_region
      %s227 = ssub.s32 %s12, 1
      %p228 = scmp.lt.s32.totalorder %s17, 1
      %s229 = scalar_select %p228, %s17, 1
      %s230 = smul.addr %s229, 12
      %s231 = smul.addr %s230, 4
      %s232 = scalar_lea.vmem %s0, %s231
      %p233 = pneg %p38
      %p234 = pneg %p35
      %p235 = pneg %p59
      %p236 = pneg %p56
      %p237 = pneg %p80
      %p238 = pneg %p77
      %p239 = pneg %p101
      %p240 = pneg %p98
      %p241 = pneg %p122
      %p242 = pneg %p119
      %p243 = scmp.lt.s32.totalorder %s17, 1
      %s244 = scalar_select %p243, %s17, 1
      %s245 = smul.addr %s244, 2
      %s246 = smul.addr %s245, 4
      %s247 = scalar_lea.vmem %s5, %s246
      %p248 = pneg %p148
      %p249 = pneg %p145
      %p250 = pneg %p174
      %p251 = pneg %p171
      %p252 = scmp.lt.s32.totalorder %s17, 1
      %s253 = scalar_select %p252, %s17, 1
      %s254 = smul.addr %s253, 2
      %s255 = smul.addr %s254, 4
      %s256 = scalar_lea.vmem %s6, %s255
      %p257 = scmp.lt.s32.totalorder %s17, 1
      %s258 = scalar_select %p257, %s17, 1
      %s259 = smul.addr %s258, 12
      %s260 = smul.addr %s259, 4
      %s261 = scalar_lea.vmem %s0, %s260
      %p262 = scmp.lt.s32.totalorder %s17, 1
      %s263 = scalar_select %p262, %s17, 1
      %s264 = smul.addr %s263, 2
      %s265 = smul.addr %s264, 4
      %s266 = scalar_lea.vmem %s5, %s265
      %p267 = scmp.lt.s32.totalorder %s17, 1
      %s268 = scalar_select %p267, %s17, 1
      %s269 = smul.addr %s268, 2
      %s270 = smul.addr %s269, 4
      %s271 = scalar_lea.vmem %s6, %s270
      %v272 = vld [vmem:[%s261] sm:$0xff]
      %v273 = vld [vmem:[%s261 + $0x8] sm:$0xff]
      %v274 = vld [vmem:[%s261 + $0x10] sm:$0xff]
      %v275 = vld [vmem:[%s261 + $0x18] sm:$0xff]
      %v276 = vld [vmem:[%s261 + $0x20] sm:$0xff]
      %v277 = vld [vmem:[%s261 + $0x28] sm:$0xff]
      %v278 = vld [vmem:[%s1] sm:$0xff]
      %v279 = vld [vmem:[%s1 + $0x8] sm:$0xff]
      %v280 = vld [vmem:[%s1 + $0x10] sm:$0xff]
      %v281 = vld [vmem:[%s1 + $0x18] sm:$0xff]
      %v282 = vld [vmem:[%s1 + $0x20] sm:$0xff]
      %v283 = vld [vmem:[%s1 + $0x28] sm:$0xff]
      %v284 = vld [vmem:[%s1 + $0x30] sm:$0xff]
      %v285 = vld [vmem:[%s1 + $0x38] sm:$0xff]
      %v286 = vld [vmem:[%s1 + $0x40] sm:$0xff]
      %v287 = vld [vmem:[%s1 + $0x48] sm:$0xff]
      %v288 = vld [vmem:[%s1 + $0x50] sm:$0xff]
      %v289 = vld [vmem:[%s1 + $0x58] sm:$0xff]
      %v290 = vld [vmem:[%s1 + $0x60] sm:$0xff]
      %v291 = vld [vmem:[%s1 + $0x68] sm:$0xff]
      %v292 = vld [vmem:[%s1 + $0x70] sm:$0xff]
      %v293 = vld [vmem:[%s1 + $0x78] sm:$0xff]
      %v294 = vld [vmem:[%s1 + $0x80] sm:$0xff]
      %v295 = vld [vmem:[%s1 + $0x88] sm:$0xff]
      %v296 = vld [vmem:[%s1 + $0x90] sm:$0xff]
      %v297 = vld [vmem:[%s1 + $0x98] sm:$0xff]
      %v298 = vld [vmem:[%s1 + $0xa0] sm:$0xff]
      %v299 = vld [vmem:[%s1 + $0xa8] sm:$0xff]
      %v300 = vld [vmem:[%s1 + $0xb0] sm:$0xff]
      %v301 = vld [vmem:[%s1 + $0xb8] sm:$0xff]
      %v302 = vld [vmem:[%s1 + $0xc0] sm:$0xff]
      %v303 = vld [vmem:[%s1 + $0xc8] sm:$0xff]
      %v304 = vld [vmem:[%s1 + $0xd0] sm:$0xff]
      %v305 = vld [vmem:[%s1 + $0xd8] sm:$0xff]
      %v306 = vld [vmem:[%s1 + $0xe0] sm:$0xff]
      %v307 = vld [vmem:[%s1 + $0xe8] sm:$0xff]
      %v308 = vld [vmem:[%s1 + $0xf0] sm:$0xff]
      %v309 = vld [vmem:[%s1 + $0xf8] sm:$0xff]
      %v310 = vld [vmem:[%s1 + $0x100] sm:$0xff]
      %v311 = vld [vmem:[%s1 + $0x108] sm:$0xff]
      %v312 = vld [vmem:[%s1 + $0x110] sm:$0xff]
      %v313 = vld [vmem:[%s1 + $0x118] sm:$0xff]
      %v314 = vld [vmem:[%s1 + $0x120] sm:$0xff]
      %v315 = vld [vmem:[%s1 + $0x128] sm:$0xff]
      %v316 = vld [vmem:[%s1 + $0x130] sm:$0xff]
      %v317 = vld [vmem:[%s1 + $0x138] sm:$0xff]
      %v318 = vld [vmem:[%s1 + $0x140] sm:$0xff]
      %v319 = vld [vmem:[%s1 + $0x148] sm:$0xff]
      %v320 = vld [vmem:[%s1 + $0x150] sm:$0xff]
      %v321 = vld [vmem:[%s1 + $0x158] sm:$0xff]
      %v322 = vld [vmem:[%s1 + $0x160] sm:$0xff]
      %v323 = vld [vmem:[%s1 + $0x168] sm:$0xff]
      %v324 = vld [vmem:[%s1 + $0x170] sm:$0xff]
      %v325 = vld [vmem:[%s1 + $0x178] sm:$0xff]
      %v326 = vld [vmem:[%s1 + $0x180] sm:$0xff]
      %v327 = vld [vmem:[%s1 + $0x188] sm:$0xff]
      %v328 = vld [vmem:[%s1 + $0x190] sm:$0xff]
      %v329 = vld [vmem:[%s1 + $0x198] sm:$0xff]
      %v330 = vld [vmem:[%s1 + $0x1a0] sm:$0xff]
      %v331 = vld [vmem:[%s1 + $0x1a8] sm:$0xff]
      %v332 = vld [vmem:[%s1 + $0x1b0] sm:$0xff]
      %v333 = vld [vmem:[%s1 + $0x1b8] sm:$0xff]
      %v334 = vld [vmem:[%s1 + $0x1c0] sm:$0xff]
      %v335 = vld [vmem:[%s1 + $0x1c8] sm:$0xff]
      %v336 = vld [vmem:[%s1 + $0x1d0] sm:$0xff]
      %v337 = vld [vmem:[%s1 + $0x1d8] sm:$0xff]
      %v338 = vld [vmem:[%s1 + $0x1e0] sm:$0xff]
      %v339 = vld [vmem:[%s1 + $0x1e8] sm:$0xff]
      %v340 = vld [vmem:[%s1 + $0x1f0] sm:$0xff]
      %v341 = vld [vmem:[%s1 + $0x1f8] sm:$0xff]
      %v342 = vld [vmem:[%s1 + $0x200] sm:$0xff]
      %v343 = vld [vmem:[%s1 + $0x208] sm:$0xff]
      %v344 = vld [vmem:[%s1 + $0x210] sm:$0xff]
      %v345 = vld [vmem:[%s1 + $0x218] sm:$0xff]
      %v346 = vld [vmem:[%s1 + $0x220] sm:$0xff]
      %v347 = vld [vmem:[%s1 + $0x228] sm:$0xff]
      %v348 = vld [vmem:[%s1 + $0x230] sm:$0xff]
      %v349 = vld [vmem:[%s1 + $0x238] sm:$0xff]
      %v350 = vld [vmem:[%s1 + $0x240] sm:$0xff]
      %v351 = vld [vmem:[%s1 + $0x248] sm:$0xff]
      %v352 = vld [vmem:[%s1 + $0x250] sm:$0xff]
      %v353 = vld [vmem:[%s1 + $0x258] sm:$0xff]
      %v354 = vld [vmem:[%s1 + $0x260] sm:$0xff]
      %v355 = vld [vmem:[%s1 + $0x268] sm:$0xff]
      %v356 = vld [vmem:[%s1 + $0x270] sm:$0xff]
      %v357 = vld [vmem:[%s1 + $0x278] sm:$0xff]
      %v358 = vld [vmem:[%s1 + $0x280] sm:$0xff]
      %v359 = vld [vmem:[%s1 + $0x288] sm:$0xff]
      %v360 = vld [vmem:[%s1 + $0x290] sm:$0xff]
      %v361 = vld [vmem:[%s1 + $0x298] sm:$0xff]
      %v362 = vld [vmem:[%s1 + $0x2a0] sm:$0xff]
      %v363 = vld [vmem:[%s1 + $0x2a8] sm:$0xff]
      %v364 = vld [vmem:[%s1 + $0x2b0] sm:$0xff]
      %v365 = vld [vmem:[%s1 + $0x2b8] sm:$0xff]
      %v366 = vld [vmem:[%s1 + $0x2c0] sm:$0xff]
      %v367 = vld [vmem:[%s1 + $0x2c8] sm:$0xff]
      %v368 = vld [vmem:[%s1 + $0x2d0] sm:$0xff]
      %v369 = vld [vmem:[%s1 + $0x2d8] sm:$0xff]
      %v370 = vld [vmem:[%s1 + $0x2e0] sm:$0xff]
      %v371 = vld [vmem:[%s1 + $0x2e8] sm:$0xff]
      %v372 = vld [vmem:[%s1 + $0x2f0] sm:$0xff]
      %v373 = vld [vmem:[%s1 + $0x2f8] sm:$0xff]
      %v374 = vld [vmem:[%s1 + $0x300] sm:$0xff]
      %v375 = vld [vmem:[%s1 + $0x308] sm:$0xff]
      %v376 = vld [vmem:[%s1 + $0x310] sm:$0xff]
      %v377 = vld [vmem:[%s1 + $0x318] sm:$0xff]
      %v378 = vld [vmem:[%s1 + $0x320] sm:$0xff]
      %v379 = vld [vmem:[%s1 + $0x328] sm:$0xff]
      %v380 = vld [vmem:[%s1 + $0x330] sm:$0xff]
      %v381 = vld [vmem:[%s1 + $0x338] sm:$0xff]
      %v382 = vld [vmem:[%s1 + $0x340] sm:$0xff]
      %v383 = vld [vmem:[%s1 + $0x348] sm:$0xff]
      %v384 = vld [vmem:[%s1 + $0x350] sm:$0xff]
      %v385 = vld [vmem:[%s1 + $0x358] sm:$0xff]
      %v386 = vld [vmem:[%s1 + $0x360] sm:$0xff]
      %v387 = vld [vmem:[%s1 + $0x368] sm:$0xff]
      %v388 = vld [vmem:[%s1 + $0x370] sm:$0xff]
      %v389 = vld [vmem:[%s1 + $0x378] sm:$0xff]
      %v390 = vld [vmem:[%s1 + $0x380] sm:$0xff]
      %v391 = vld [vmem:[%s1 + $0x388] sm:$0xff]
      %v392 = vld [vmem:[%s1 + $0x390] sm:$0xff]
      %v393 = vld [vmem:[%s1 + $0x398] sm:$0xff]
      %v394 = vld [vmem:[%s1 + $0x3a0] sm:$0xff]
      %v395 = vld [vmem:[%s1 + $0x3a8] sm:$0xff]
      %v396 = vld [vmem:[%s1 + $0x3b0] sm:$0xff]
      %v397 = vld [vmem:[%s1 + $0x3b8] sm:$0xff]
      %v398 = vld [vmem:[%s1 + $0x3c0] sm:$0xff]
      %v399 = vld [vmem:[%s1 + $0x3c8] sm:$0xff]
      %v400 = vld [vmem:[%s1 + $0x3d0] sm:$0xff]
      %v401 = vld [vmem:[%s1 + $0x3d8] sm:$0xff]
      %v402 = vld [vmem:[%s1 + $0x3e0] sm:$0xff]
      %v403 = vld [vmem:[%s1 + $0x3e8] sm:$0xff]
      %v404 = vld [vmem:[%s1 + $0x3f0] sm:$0xff]
      %v405 = vld [vmem:[%s1 + $0x3f8] sm:$0xff]
      %v406 = vld [vmem:[%s1 + $0x400] sm:$0xff]
      %v407 = vld [vmem:[%s1 + $0x408] sm:$0xff]
      %v408 = vld [vmem:[%s1 + $0x410] sm:$0xff]
      %v409 = vld [vmem:[%s1 + $0x418] sm:$0xff]
      %v410 = vld [vmem:[%s1 + $0x420] sm:$0xff]
      %v411 = vld [vmem:[%s1 + $0x428] sm:$0xff]
      %v412 = vld [vmem:[%s1 + $0x430] sm:$0xff]
      %v413 = vld [vmem:[%s1 + $0x438] sm:$0xff]
      %v414 = vld [vmem:[%s1 + $0x440] sm:$0xff]
      %v415 = vld [vmem:[%s1 + $0x448] sm:$0xff]
      %v416 = vld [vmem:[%s1 + $0x450] sm:$0xff]
      %v417 = vld [vmem:[%s1 + $0x458] sm:$0xff]
      %v418 = vld [vmem:[%s1 + $0x460] sm:$0xff]
      %v419 = vld [vmem:[%s1 + $0x468] sm:$0xff]
      %v420 = vld [vmem:[%s1 + $0x470] sm:$0xff]
      %v421 = vld [vmem:[%s1 + $0x478] sm:$0xff]
      %v422 = vld [vmem:[%s1 + $0x480] sm:$0xff]
      %v423 = vld [vmem:[%s1 + $0x488] sm:$0xff]
      %v424 = vld [vmem:[%s1 + $0x490] sm:$0xff]
      %v425 = vld [vmem:[%s1 + $0x498] sm:$0xff]
      %v426 = vld [vmem:[%s1 + $0x4a0] sm:$0xff]
      %v427 = vld [vmem:[%s1 + $0x4a8] sm:$0xff]
      %v428 = vld [vmem:[%s1 + $0x4b0] sm:$0xff]
      %v429 = vld [vmem:[%s1 + $0x4b8] sm:$0xff]
      %v430 = vld [vmem:[%s1 + $0x4c0] sm:$0xff]
      %v431 = vld [vmem:[%s1 + $0x4c8] sm:$0xff]
      %v432 = vld [vmem:[%s1 + $0x4d0] sm:$0xff]
      %v433 = vld [vmem:[%s1 + $0x4d8] sm:$0xff]
      %v434 = vld [vmem:[%s1 + $0x4e0] sm:$0xff]
      %v435 = vld [vmem:[%s1 + $0x4e8] sm:$0xff]
      %v436 = vld [vmem:[%s1 + $0x4f0] sm:$0xff]
      %v437 = vld [vmem:[%s1 + $0x4f8] sm:$0xff]
      %v438 = vld [vmem:[%s1 + $0x500] sm:$0xff]
      %v439 = vld [vmem:[%s1 + $0x508] sm:$0xff]
      %v440 = vld [vmem:[%s1 + $0x510] sm:$0xff]
      %v441 = vld [vmem:[%s1 + $0x518] sm:$0xff]
      %v442 = vld [vmem:[%s1 + $0x520] sm:$0xff]
      %v443 = vld [vmem:[%s1 + $0x528] sm:$0xff]
      %v444 = vld [vmem:[%s1 + $0x530] sm:$0xff]
      %v445 = vld [vmem:[%s1 + $0x538] sm:$0xff]
      %v446 = vld [vmem:[%s1 + $0x540] sm:$0xff]
      %v447 = vld [vmem:[%s1 + $0x548] sm:$0xff]
      %v448 = vld [vmem:[%s1 + $0x550] sm:$0xff]
      %v449 = vld [vmem:[%s1 + $0x558] sm:$0xff]
      %v450 = vld [vmem:[%s1 + $0x560] sm:$0xff]
      %v451 = vld [vmem:[%s1 + $0x568] sm:$0xff]
      %v452 = vld [vmem:[%s1 + $0x570] sm:$0xff]
      %v453 = vld [vmem:[%s1 + $0x578] sm:$0xff]
      %v454 = vld [vmem:[%s1 + $0x580] sm:$0xff]
      %v455 = vld [vmem:[%s1 + $0x588] sm:$0xff]
      %v456 = vld [vmem:[%s1 + $0x590] sm:$0xff]
      %v457 = vld [vmem:[%s1 + $0x598] sm:$0xff]
      %v458 = vld [vmem:[%s1 + $0x5a0] sm:$0xff]
      %v459 = vld [vmem:[%s1 + $0x5a8] sm:$0xff]
      %v460 = vld [vmem:[%s1 + $0x5b0] sm:$0xff]
      %v461 = vld [vmem:[%s1 + $0x5b8] sm:$0xff]
      %v462 = vld [vmem:[%s1 + $0x5c0] sm:$0xff]
      %v463 = vld [vmem:[%s1 + $0x5c8] sm:$0xff]
      %v464 = vld [vmem:[%s1 + $0x5d0] sm:$0xff]
      %v465 = vld [vmem:[%s1 + $0x5d8] sm:$0xff]
      %v466 = vld [vmem:[%s1 + $0x5e0] sm:$0xff]
      %v467 = vld [vmem:[%s1 + $0x5e8] sm:$0xff]
      %v468 = vld [vmem:[%s1 + $0x5f0] sm:$0xff]
      %v469 = vld [vmem:[%s1 + $0x5f8] sm:$0xff]
      %v470 = vld [vmem:[%s2] sm:$0x3]
      %v472 = vlaneseq
      %v473 = vshrl.u32 %v472, 7
      %v474 = vsub.s32 0, %v473
      %v475 = vrot.slane %v470, %v474
      %v476 = vlaneseq
      %v477 = vshrl.u32 %v476, 7
      %v478 = vsub.s32 1, %v477
      %v479 = vrot.slane %v470, %v478
      %v488 = vunpack.c.l.b16 %v272
      %v489 = vunpack.c.h.b16 %v272
      %v490 = vunpack.c.l.b16 %v273
      %v491 = vunpack.c.h.b16 %v273
      %v492 = vunpack.c.l.b16 %v274
      %v493 = vunpack.c.h.b16 %v274
      %v494 = vunpack.c.l.b16 %v275
      %v495 = vunpack.c.h.b16 %v275
      %v496 = vunpack.c.l.b16 %v276
      %v497 = vunpack.c.h.b16 %v276
      %v498 = vunpack.c.l.b16 %v277
      %v499 = vunpack.c.h.b16 %v277
      %v500 = vpack.c.b16 %v488, %v488
      %v501 = vpack.c.b16 %v489, %v489
      %v502 = vpack.c.b16 %v490, %v490
      %v503 = vpack.c.b16 %v491, %v491
      %v504 = vpack.c.b16 %v492, %v492
      %v505 = vpack.c.b16 %v493, %v493
      %v506 = vpack.c.b16 %v494, %v494
      %v507 = vpack.c.b16 %v495, %v495
      %v508 = vpack.c.b16 %v496, %v496
      %v509 = vpack.c.b16 %v497, %v497
      %v510 = vpack.c.b16 %v498, %v498
      %v511 = vpack.c.b16 %v499, %v499
      %v716 = vunpack.c.l.b16 %v278
      %v717 = vunpack.c.h.b16 %v278
      %v718 = vunpack.c.l.b16 %v279
      %v719 = vunpack.c.h.b16 %v279
      %v720 = vunpack.c.l.b16 %v280
      %v721 = vunpack.c.h.b16 %v280
      %v722 = vunpack.c.l.b16 %v281
      %v723 = vunpack.c.h.b16 %v281
      %v724 = vunpack.c.l.b16 %v282
      %v725 = vunpack.c.h.b16 %v282
      %v726 = vunpack.c.l.b16 %v283
      %v727 = vunpack.c.h.b16 %v283
      %v728 = vunpack.c.l.b16 %v284
      %v729 = vunpack.c.h.b16 %v284
      %v730 = vunpack.c.l.b16 %v285
      %v731 = vunpack.c.h.b16 %v285
      %v732 = vunpack.c.l.b16 %v286
      %v733 = vunpack.c.h.b16 %v286
      %v734 = vunpack.c.l.b16 %v287
      %v735 = vunpack.c.h.b16 %v287
      %v736 = vunpack.c.l.b16 %v288
      %v737 = vunpack.c.h.b16 %v288
      %v738 = vunpack.c.l.b16 %v289
      %v739 = vunpack.c.h.b16 %v289
      %v740 = vunpack.c.l.b16 %v290
      %v741 = vunpack.c.h.b16 %v290
      %v742 = vunpack.c.l.b16 %v291
      %v743 = vunpack.c.h.b16 %v291
      %v744 = vunpack.c.l.b16 %v292
      %v745 = vunpack.c.h.b16 %v292
      %v746 = vunpack.c.l.b16 %v293
      %v747 = vunpack.c.h.b16 %v293
      %v748 = vunpack.c.l.b16 %v294
      %v749 = vunpack.c.h.b16 %v294
      %v750 = vunpack.c.l.b16 %v295
      %v751 = vunpack.c.h.b16 %v295
      %v752 = vunpack.c.l.b16 %v296
      %v753 = vunpack.c.h.b16 %v296
      %v754 = vunpack.c.l.b16 %v297
      %v755 = vunpack.c.h.b16 %v297
      %v756 = vunpack.c.l.b16 %v298
      %v757 = vunpack.c.h.b16 %v298
      %v758 = vunpack.c.l.b16 %v299
      %v759 = vunpack.c.h.b16 %v299
      %v760 = vunpack.c.l.b16 %v300
      %v761 = vunpack.c.h.b16 %v300
      %v762 = vunpack.c.l.b16 %v301
      %v763 = vunpack.c.h.b16 %v301
      %v764 = vunpack.c.l.b16 %v302
      %v765 = vunpack.c.h.b16 %v302
      %v766 = vunpack.c.l.b16 %v303
      %v767 = vunpack.c.h.b16 %v303
      %v768 = vunpack.c.l.b16 %v304
      %v769 = vunpack.c.h.b16 %v304
      %v770 = vunpack.c.l.b16 %v305
      %v771 = vunpack.c.h.b16 %v305
      %v772 = vunpack.c.l.b16 %v306
      %v773 = vunpack.c.h.b16 %v306
      %v774 = vunpack.c.l.b16 %v307
      %v775 = vunpack.c.h.b16 %v307
      %v776 = vunpack.c.l.b16 %v308
      %v777 = vunpack.c.h.b16 %v308
      %v778 = vunpack.c.l.b16 %v309
      %v779 = vunpack.c.h.b16 %v309
      %v780 = vunpack.c.l.b16 %v310
      %v781 = vunpack.c.h.b16 %v310
      %v782 = vunpack.c.l.b16 %v311
      %v783 = vunpack.c.h.b16 %v311
      %v784 = vunpack.c.l.b16 %v312
      %v785 = vunpack.c.h.b16 %v312
      %v786 = vunpack.c.l.b16 %v313
      %v787 = vunpack.c.h.b16 %v313
      %v788 = vunpack.c.l.b16 %v314
      %v789 = vunpack.c.h.b16 %v314
      %v790 = vunpack.c.l.b16 %v315
      %v791 = vunpack.c.h.b16 %v315
      %v792 = vunpack.c.l.b16 %v316
      %v793 = vunpack.c.h.b16 %v316
      %v794 = vunpack.c.l.b16 %v317
      %v795 = vunpack.c.h.b16 %v317
      %v796 = vunpack.c.l.b16 %v318
      %v797 = vunpack.c.h.b16 %v318
      %v798 = vunpack.c.l.b16 %v319
      %v799 = vunpack.c.h.b16 %v319
      %v800 = vunpack.c.l.b16 %v320
      %v801 = vunpack.c.h.b16 %v320
      %v802 = vunpack.c.l.b16 %v321
      %v803 = vunpack.c.h.b16 %v321
      %v804 = vunpack.c.l.b16 %v322
      %v805 = vunpack.c.h.b16 %v322
      %v806 = vunpack.c.l.b16 %v323
      %v807 = vunpack.c.h.b16 %v323
      %v808 = vunpack.c.l.b16 %v324
      %v809 = vunpack.c.h.b16 %v324
      %v810 = vunpack.c.l.b16 %v325
      %v811 = vunpack.c.h.b16 %v325
      %v812 = vunpack.c.l.b16 %v326
      %v813 = vunpack.c.h.b16 %v326
      %v814 = vunpack.c.l.b16 %v327
      %v815 = vunpack.c.h.b16 %v327
      %v816 = vunpack.c.l.b16 %v328
      %v817 = vunpack.c.h.b16 %v328
      %v818 = vunpack.c.l.b16 %v329
      %v819 = vunpack.c.h.b16 %v329
      %v820 = vunpack.c.l.b16 %v330
      %v821 = vunpack.c.h.b16 %v330
      %v822 = vunpack.c.l.b16 %v331
      %v823 = vunpack.c.h.b16 %v331
      %v824 = vunpack.c.l.b16 %v332
      %v825 = vunpack.c.h.b16 %v332
      %v826 = vunpack.c.l.b16 %v333
      %v827 = vunpack.c.h.b16 %v333
      %v828 = vunpack.c.l.b16 %v334
      %v829 = vunpack.c.h.b16 %v334
      %v830 = vunpack.c.l.b16 %v335
      %v831 = vunpack.c.h.b16 %v335
      %v832 = vunpack.c.l.b16 %v336
      %v833 = vunpack.c.h.b16 %v336
      %v834 = vunpack.c.l.b16 %v337
      %v835 = vunpack.c.h.b16 %v337
      %v836 = vunpack.c.l.b16 %v338
      %v837 = vunpack.c.h.b16 %v338
      %v838 = vunpack.c.l.b16 %v339
      %v839 = vunpack.c.h.b16 %v339
      %v840 = vunpack.c.l.b16 %v340
      %v841 = vunpack.c.h.b16 %v340
      %v842 = vunpack.c.l.b16 %v341
      %v843 = vunpack.c.h.b16 %v341
      %v844 = vunpack.c.l.b16 %v342
      %v845 = vunpack.c.h.b16 %v342
      %v846 = vunpack.c.l.b16 %v343
      %v847 = vunpack.c.h.b16 %v343
      %v848 = vunpack.c.l.b16 %v344
      %v849 = vunpack.c.h.b16 %v344
      %v850 = vunpack.c.l.b16 %v345
      %v851 = vunpack.c.h.b16 %v345
      %v852 = vunpack.c.l.b16 %v346
      %v853 = vunpack.c.h.b16 %v346
      %v854 = vunpack.c.l.b16 %v347
      %v855 = vunpack.c.h.b16 %v347
      %v856 = vunpack.c.l.b16 %v348
      %v857 = vunpack.c.h.b16 %v348
      %v858 = vunpack.c.l.b16 %v349
      %v859 = vunpack.c.h.b16 %v349
      %v860 = vunpack.c.l.b16 %v350
      %v861 = vunpack.c.h.b16 %v350
      %v862 = vunpack.c.l.b16 %v351
      %v863 = vunpack.c.h.b16 %v351
      %v864 = vunpack.c.l.b16 %v352
      %v865 = vunpack.c.h.b16 %v352
      %v866 = vunpack.c.l.b16 %v353
      %v867 = vunpack.c.h.b16 %v353
      %v868 = vunpack.c.l.b16 %v354
      %v869 = vunpack.c.h.b16 %v354
      %v870 = vunpack.c.l.b16 %v355
      %v871 = vunpack.c.h.b16 %v355
      %v872 = vunpack.c.l.b16 %v356
      %v873 = vunpack.c.h.b16 %v356
      %v874 = vunpack.c.l.b16 %v357
      %v875 = vunpack.c.h.b16 %v357
      %v876 = vunpack.c.l.b16 %v358
      %v877 = vunpack.c.h.b16 %v358
      %v878 = vunpack.c.l.b16 %v359
      %v879 = vunpack.c.h.b16 %v359
      %v880 = vunpack.c.l.b16 %v360
      %v881 = vunpack.c.h.b16 %v360
      %v882 = vunpack.c.l.b16 %v361
      %v883 = vunpack.c.h.b16 %v361
      %v884 = vunpack.c.l.b16 %v362
      %v885 = vunpack.c.h.b16 %v362
      %v886 = vunpack.c.l.b16 %v363
      %v887 = vunpack.c.h.b16 %v363
      %v888 = vunpack.c.l.b16 %v364
      %v889 = vunpack.c.h.b16 %v364
      %v890 = vunpack.c.l.b16 %v365
      %v891 = vunpack.c.h.b16 %v365
      %v892 = vunpack.c.l.b16 %v366
      %v893 = vunpack.c.h.b16 %v366
      %v894 = vunpack.c.l.b16 %v367
      %v895 = vunpack.c.h.b16 %v367
      %v896 = vunpack.c.l.b16 %v368
      %v897 = vunpack.c.h.b16 %v368
      %v898 = vunpack.c.l.b16 %v369
      %v899 = vunpack.c.h.b16 %v369
      %v900 = vunpack.c.l.b16 %v370
      %v901 = vunpack.c.h.b16 %v370
      %v902 = vunpack.c.l.b16 %v371
      %v903 = vunpack.c.h.b16 %v371
      %v904 = vunpack.c.l.b16 %v372
      %v905 = vunpack.c.h.b16 %v372
      %v906 = vunpack.c.l.b16 %v373
      %v907 = vunpack.c.h.b16 %v373
      %v908 = vunpack.c.l.b16 %v374
      %v909 = vunpack.c.h.b16 %v374
      %v910 = vunpack.c.l.b16 %v375
      %v911 = vunpack.c.h.b16 %v375
      %v912 = vunpack.c.l.b16 %v376
      %v913 = vunpack.c.h.b16 %v376
      %v914 = vunpack.c.l.b16 %v377
      %v915 = vunpack.c.h.b16 %v377
      %v916 = vunpack.c.l.b16 %v378
      %v917 = vunpack.c.h.b16 %v378
      %v918 = vunpack.c.l.b16 %v379
      %v919 = vunpack.c.h.b16 %v379
      %v920 = vunpack.c.l.b16 %v380
      %v921 = vunpack.c.h.b16 %v380
      %v922 = vunpack.c.l.b16 %v381
      %v923 = vunpack.c.h.b16 %v381
      %v924 = vunpack.c.l.b16 %v382
      %v925 = vunpack.c.h.b16 %v382
      %v926 = vunpack.c.l.b16 %v383
      %v927 = vunpack.c.h.b16 %v383
      %v928 = vunpack.c.l.b16 %v384
      %v929 = vunpack.c.h.b16 %v384
      %v930 = vunpack.c.l.b16 %v385
      %v931 = vunpack.c.h.b16 %v385
      %v932 = vunpack.c.l.b16 %v386
      %v933 = vunpack.c.h.b16 %v386
      %v934 = vunpack.c.l.b16 %v387
      %v935 = vunpack.c.h.b16 %v387
      %v936 = vunpack.c.l.b16 %v388
      %v937 = vunpack.c.h.b16 %v388
      %v938 = vunpack.c.l.b16 %v389
      %v939 = vunpack.c.h.b16 %v389
      %v940 = vunpack.c.l.b16 %v390
      %v941 = vunpack.c.h.b16 %v390
      %v942 = vunpack.c.l.b16 %v391
      %v943 = vunpack.c.h.b16 %v391
      %v944 = vunpack.c.l.b16 %v392
      %v945 = vunpack.c.h.b16 %v392
      %v946 = vunpack.c.l.b16 %v393
      %v947 = vunpack.c.h.b16 %v393
      %v948 = vunpack.c.l.b16 %v394
      %v949 = vunpack.c.h.b16 %v394
      %v950 = vunpack.c.l.b16 %v395
      %v951 = vunpack.c.h.b16 %v395
      %v952 = vunpack.c.l.b16 %v396
      %v953 = vunpack.c.h.b16 %v396
      %v954 = vunpack.c.l.b16 %v397
      %v955 = vunpack.c.h.b16 %v397
      %v956 = vunpack.c.l.b16 %v398
      %v957 = vunpack.c.h.b16 %v398
      %v958 = vunpack.c.l.b16 %v399
      %v959 = vunpack.c.h.b16 %v399
      %v960 = vunpack.c.l.b16 %v400
      %v961 = vunpack.c.h.b16 %v400
      %v962 = vunpack.c.l.b16 %v401
      %v963 = vunpack.c.h.b16 %v401
      %v964 = vunpack.c.l.b16 %v402
      %v965 = vunpack.c.h.b16 %v402
      %v966 = vunpack.c.l.b16 %v403
      %v967 = vunpack.c.h.b16 %v403
      %v968 = vunpack.c.l.b16 %v404
      %v969 = vunpack.c.h.b16 %v404
      %v970 = vunpack.c.l.b16 %v405
      %v971 = vunpack.c.h.b16 %v405
      %v972 = vunpack.c.l.b16 %v406
      %v973 = vunpack.c.h.b16 %v406
      %v974 = vunpack.c.l.b16 %v407
      %v975 = vunpack.c.h.b16 %v407
      %v976 = vunpack.c.l.b16 %v408
      %v977 = vunpack.c.h.b16 %v408
      %v978 = vunpack.c.l.b16 %v409
      %v979 = vunpack.c.h.b16 %v409
      %v980 = vunpack.c.l.b16 %v410
      %v981 = vunpack.c.h.b16 %v410
      %v982 = vunpack.c.l.b16 %v411
      %v983 = vunpack.c.h.b16 %v411
      %v984 = vunpack.c.l.b16 %v412
      %v985 = vunpack.c.h.b16 %v412
      %v986 = vunpack.c.l.b16 %v413
      %v987 = vunpack.c.h.b16 %v413
      %v988 = vunpack.c.l.b16 %v414
      %v989 = vunpack.c.h.b16 %v414
      %v990 = vunpack.c.l.b16 %v415
      %v991 = vunpack.c.h.b16 %v415
      %v992 = vunpack.c.l.b16 %v416
      %v993 = vunpack.c.h.b16 %v416
      %v994 = vunpack.c.l.b16 %v417
      %v995 = vunpack.c.h.b16 %v417
      %v996 = vunpack.c.l.b16 %v418
      %v997 = vunpack.c.h.b16 %v418
      %v998 = vunpack.c.l.b16 %v419
      %v999 = vunpack.c.h.b16 %v419
      %v1000 = vunpack.c.l.b16 %v420
      %v1001 = vunpack.c.h.b16 %v420
      %v1002 = vunpack.c.l.b16 %v421
      %v1003 = vunpack.c.h.b16 %v421
      %v1004 = vunpack.c.l.b16 %v422
      %v1005 = vunpack.c.h.b16 %v422
      %v1006 = vunpack.c.l.b16 %v423
      %v1007 = vunpack.c.h.b16 %v423
      %v1008 = vunpack.c.l.b16 %v424
      %v1009 = vunpack.c.h.b16 %v424
      %v1010 = vunpack.c.l.b16 %v425
      %v1011 = vunpack.c.h.b16 %v425
      %v1012 = vunpack.c.l.b16 %v426
      %v1013 = vunpack.c.h.b16 %v426
      %v1014 = vunpack.c.l.b16 %v427
      %v1015 = vunpack.c.h.b16 %v427
      %v1016 = vunpack.c.l.b16 %v428
      %v1017 = vunpack.c.h.b16 %v428
      %v1018 = vunpack.c.l.b16 %v429
      %v1019 = vunpack.c.h.b16 %v429
      %v1020 = vunpack.c.l.b16 %v430
      %v1021 = vunpack.c.h.b16 %v430
      %v1022 = vunpack.c.l.b16 %v431
      %v1023 = vunpack.c.h.b16 %v431
      %v1024 = vunpack.c.l.b16 %v432
      %v1025 = vunpack.c.h.b16 %v432
      %v1026 = vunpack.c.l.b16 %v433
      %v1027 = vunpack.c.h.b16 %v433
      %v1028 = vunpack.c.l.b16 %v434
      %v1029 = vunpack.c.h.b16 %v434
      %v1030 = vunpack.c.l.b16 %v435
      %v1031 = vunpack.c.h.b16 %v435
      %v1032 = vunpack.c.l.b16 %v436
      %v1033 = vunpack.c.h.b16 %v436
      %v1034 = vunpack.c.l.b16 %v437
      %v1035 = vunpack.c.h.b16 %v437
      %v1036 = vunpack.c.l.b16 %v438
      %v1037 = vunpack.c.h.b16 %v438
      %v1038 = vunpack.c.l.b16 %v439
      %v1039 = vunpack.c.h.b16 %v439
      %v1040 = vunpack.c.l.b16 %v440
      %v1041 = vunpack.c.h.b16 %v440
      %v1042 = vunpack.c.l.b16 %v441
      %v1043 = vunpack.c.h.b16 %v441
      %v1044 = vunpack.c.l.b16 %v442
      %v1045 = vunpack.c.h.b16 %v442
      %v1046 = vunpack.c.l.b16 %v443
      %v1047 = vunpack.c.h.b16 %v443
      %v1048 = vunpack.c.l.b16 %v444
      %v1049 = vunpack.c.h.b16 %v444
      %v1050 = vunpack.c.l.b16 %v445
      %v1051 = vunpack.c.h.b16 %v445
      %v1052 = vunpack.c.l.b16 %v446
      %v1053 = vunpack.c.h.b16 %v446
      %v1054 = vunpack.c.l.b16 %v447
      %v1055 = vunpack.c.h.b16 %v447
      %v1056 = vunpack.c.l.b16 %v448
      %v1057 = vunpack.c.h.b16 %v448
      %v1058 = vunpack.c.l.b16 %v449
      %v1059 = vunpack.c.h.b16 %v449
      %v1060 = vunpack.c.l.b16 %v450
      %v1061 = vunpack.c.h.b16 %v450
      %v1062 = vunpack.c.l.b16 %v451
      %v1063 = vunpack.c.h.b16 %v451
      %v1064 = vunpack.c.l.b16 %v452
      %v1065 = vunpack.c.h.b16 %v452
      %v1066 = vunpack.c.l.b16 %v453
      %v1067 = vunpack.c.h.b16 %v453
      %v1068 = vunpack.c.l.b16 %v454
      %v1069 = vunpack.c.h.b16 %v454
      %v1070 = vunpack.c.l.b16 %v455
      %v1071 = vunpack.c.h.b16 %v455
      %v1072 = vunpack.c.l.b16 %v456
      %v1073 = vunpack.c.h.b16 %v456
      %v1074 = vunpack.c.l.b16 %v457
      %v1075 = vunpack.c.h.b16 %v457
      %v1076 = vunpack.c.l.b16 %v458
      %v1077 = vunpack.c.h.b16 %v458
      %v1078 = vunpack.c.l.b16 %v459
      %v1079 = vunpack.c.h.b16 %v459
      %v1080 = vunpack.c.l.b16 %v460
      %v1081 = vunpack.c.h.b16 %v460
      %v1082 = vunpack.c.l.b16 %v461
      %v1083 = vunpack.c.h.b16 %v461
      %v1084 = vunpack.c.l.b16 %v462
      %v1085 = vunpack.c.h.b16 %v462
      %v1086 = vunpack.c.l.b16 %v463
      %v1087 = vunpack.c.h.b16 %v463
      %v1088 = vunpack.c.l.b16 %v464
      %v1089 = vunpack.c.h.b16 %v464
      %v1090 = vunpack.c.l.b16 %v465
      %v1091 = vunpack.c.h.b16 %v465
      %v1092 = vunpack.c.l.b16 %v466
      %v1093 = vunpack.c.h.b16 %v466
      %v1094 = vunpack.c.l.b16 %v467
      %v1095 = vunpack.c.h.b16 %v467
      %v1096 = vunpack.c.l.b16 %v468
      %v1097 = vunpack.c.h.b16 %v468
      %v1098 = vunpack.c.l.b16 %v469
      %v1099 = vunpack.c.h.b16 %v469
      %v1100 = vpack.c.b16 %v718, %v716
      %v1101 = vpack.c.b16 %v719, %v717
      %v1102 = vpack.c.b16 %v722, %v720
      %v1103 = vpack.c.b16 %v723, %v721
      %v1104 = vpack.c.b16 %v726, %v724
      %v1105 = vpack.c.b16 %v727, %v725
      %v1106 = vpack.c.b16 %v730, %v728
      %v1107 = vpack.c.b16 %v731, %v729
      %v1108 = vpack.c.b16 %v734, %v732
      %v1109 = vpack.c.b16 %v735, %v733
      %v1110 = vpack.c.b16 %v738, %v736
      %v1111 = vpack.c.b16 %v739, %v737
      %v1112 = vpack.c.b16 %v742, %v740
      %v1113 = vpack.c.b16 %v743, %v741
      %v1114 = vpack.c.b16 %v746, %v744
      %v1115 = vpack.c.b16 %v747, %v745
      %v1116 = vpack.c.b16 %v750, %v748
      %v1117 = vpack.c.b16 %v751, %v749
      %v1118 = vpack.c.b16 %v754, %v752
      %v1119 = vpack.c.b16 %v755, %v753
      %v1120 = vpack.c.b16 %v758, %v756
      %v1121 = vpack.c.b16 %v759, %v757
      %v1122 = vpack.c.b16 %v762, %v760
      %v1123 = vpack.c.b16 %v763, %v761
      %v1124 = vpack.c.b16 %v766, %v764
      %v1125 = vpack.c.b16 %v767, %v765
      %v1126 = vpack.c.b16 %v770, %v768
      %v1127 = vpack.c.b16 %v771, %v769
      %v1128 = vpack.c.b16 %v774, %v772
      %v1129 = vpack.c.b16 %v775, %v773
      %v1130 = vpack.c.b16 %v778, %v776
      %v1131 = vpack.c.b16 %v779, %v777
      %v1132 = vpack.c.b16 %v782, %v780
      %v1133 = vpack.c.b16 %v783, %v781
      %v1134 = vpack.c.b16 %v786, %v784
      %v1135 = vpack.c.b16 %v787, %v785
      %v1136 = vpack.c.b16 %v790, %v788
      %v1137 = vpack.c.b16 %v791, %v789
      %v1138 = vpack.c.b16 %v794, %v792
      %v1139 = vpack.c.b16 %v795, %v793
      %v1140 = vpack.c.b16 %v798, %v796
      %v1141 = vpack.c.b16 %v799, %v797
      %v1142 = vpack.c.b16 %v802, %v800
      %v1143 = vpack.c.b16 %v803, %v801
      %v1144 = vpack.c.b16 %v806, %v804
      %v1145 = vpack.c.b16 %v807, %v805
      %v1146 = vpack.c.b16 %v810, %v808
      %v1147 = vpack.c.b16 %v811, %v809
      %v1148 = vpack.c.b16 %v814, %v812
      %v1149 = vpack.c.b16 %v815, %v813
      %v1150 = vpack.c.b16 %v818, %v816
      %v1151 = vpack.c.b16 %v819, %v817
      %v1152 = vpack.c.b16 %v822, %v820
      %v1153 = vpack.c.b16 %v823, %v821
      %v1154 = vpack.c.b16 %v826, %v824
      %v1155 = vpack.c.b16 %v827, %v825
      %v1156 = vpack.c.b16 %v830, %v828
      %v1157 = vpack.c.b16 %v831, %v829
      %v1158 = vpack.c.b16 %v834, %v832
      %v1159 = vpack.c.b16 %v835, %v833
      %v1160 = vpack.c.b16 %v838, %v836
      %v1161 = vpack.c.b16 %v839, %v837
      %v1162 = vpack.c.b16 %v842, %v840
      %v1163 = vpack.c.b16 %v843, %v841
      %v1164 = vpack.c.b16 %v846, %v844
      %v1165 = vpack.c.b16 %v847, %v845
      %v1166 = vpack.c.b16 %v850, %v848
      %v1167 = vpack.c.b16 %v851, %v849
      %v1168 = vpack.c.b16 %v854, %v852
      %v1169 = vpack.c.b16 %v855, %v853
      %v1170 = vpack.c.b16 %v858, %v856
      %v1171 = vpack.c.b16 %v859, %v857
      %v1172 = vpack.c.b16 %v862, %v860
      %v1173 = vpack.c.b16 %v863, %v861
      %v1174 = vpack.c.b16 %v866, %v864
      %v1175 = vpack.c.b16 %v867, %v865
      %v1176 = vpack.c.b16 %v870, %v868
      %v1177 = vpack.c.b16 %v871, %v869
      %v1178 = vpack.c.b16 %v874, %v872
      %v1179 = vpack.c.b16 %v875, %v873
      %v1180 = vpack.c.b16 %v878, %v876
      %v1181 = vpack.c.b16 %v879, %v877
      %v1182 = vpack.c.b16 %v882, %v880
      %v1183 = vpack.c.b16 %v883, %v881
      %v1184 = vpack.c.b16 %v886, %v884
      %v1185 = vpack.c.b16 %v887, %v885
      %v1186 = vpack.c.b16 %v890, %v888
      %v1187 = vpack.c.b16 %v891, %v889
      %v1188 = vpack.c.b16 %v894, %v892
      %v1189 = vpack.c.b16 %v895, %v893
      %v1190 = vpack.c.b16 %v898, %v896
      %v1191 = vpack.c.b16 %v899, %v897
      %v1192 = vpack.c.b16 %v902, %v900
      %v1193 = vpack.c.b16 %v903, %v901
      %v1194 = vpack.c.b16 %v906, %v904
      %v1195 = vpack.c.b16 %v907, %v905
      %v1196 = vpack.c.b16 %v910, %v908
      %v1197 = vpack.c.b16 %v911, %v909
      %v1198 = vpack.c.b16 %v914, %v912
      %v1199 = vpack.c.b16 %v915, %v913
      %v1200 = vpack.c.b16 %v918, %v916
      %v1201 = vpack.c.b16 %v919, %v917
      %v1202 = vpack.c.b16 %v922, %v920
      %v1203 = vpack.c.b16 %v923, %v921
      %v1204 = vpack.c.b16 %v926, %v924
      %v1205 = vpack.c.b16 %v927, %v925
      %v1206 = vpack.c.b16 %v930, %v928
      %v1207 = vpack.c.b16 %v931, %v929
      %v1208 = vpack.c.b16 %v934, %v932
      %v1209 = vpack.c.b16 %v935, %v933
      %v1210 = vpack.c.b16 %v938, %v936
      %v1211 = vpack.c.b16 %v939, %v937
      %v1212 = vpack.c.b16 %v942, %v940
      %v1213 = vpack.c.b16 %v943, %v941
      %v1214 = vpack.c.b16 %v946, %v944
      %v1215 = vpack.c.b16 %v947, %v945
      %v1216 = vpack.c.b16 %v950, %v948
      %v1217 = vpack.c.b16 %v951, %v949
      %v1218 = vpack.c.b16 %v954, %v952
      %v1219 = vpack.c.b16 %v955, %v953
      %v1220 = vpack.c.b16 %v958, %v956
      %v1221 = vpack.c.b16 %v959, %v957
      %v1222 = vpack.c.b16 %v962, %v960
      %v1223 = vpack.c.b16 %v963, %v961
      %v1224 = vpack.c.b16 %v966, %v964
      %v1225 = vpack.c.b16 %v967, %v965
      %v1226 = vpack.c.b16 %v970, %v968
      %v1227 = vpack.c.b16 %v971, %v969
      %v1228 = vpack.c.b16 %v974, %v972
      %v1229 = vpack.c.b16 %v975, %v973
      %v1230 = vpack.c.b16 %v978, %v976
      %v1231 = vpack.c.b16 %v979, %v977
      %v1232 = vpack.c.b16 %v982, %v980
      %v1233 = vpack.c.b16 %v983, %v981
      %v1234 = vpack.c.b16 %v986, %v984
      %v1235 = vpack.c.b16 %v987, %v985
      %v1236 = vpack.c.b16 %v990, %v988
      %v1237 = vpack.c.b16 %v991, %v989
      %v1238 = vpack.c.b16 %v994, %v992
      %v1239 = vpack.c.b16 %v995, %v993
      %v1240 = vpack.c.b16 %v998, %v996
      %v1241 = vpack.c.b16 %v999, %v997
      %v1242 = vpack.c.b16 %v1002, %v1000
      %v1243 = vpack.c.b16 %v1003, %v1001
      %v1244 = vpack.c.b16 %v1006, %v1004
      %v1245 = vpack.c.b16 %v1007, %v1005
      %v1246 = vpack.c.b16 %v1010, %v1008
      %v1247 = vpack.c.b16 %v1011, %v1009
      %v1248 = vpack.c.b16 %v1014, %v1012
      %v1249 = vpack.c.b16 %v1015, %v1013
      %v1250 = vpack.c.b16 %v1018, %v1016
      %v1251 = vpack.c.b16 %v1019, %v1017
      %v1252 = vpack.c.b16 %v1022, %v1020
      %v1253 = vpack.c.b16 %v1023, %v1021
      %v1254 = vpack.c.b16 %v1026, %v1024
      %v1255 = vpack.c.b16 %v1027, %v1025
      %v1256 = vpack.c.b16 %v1030, %v1028
      %v1257 = vpack.c.b16 %v1031, %v1029
      %v1258 = vpack.c.b16 %v1034, %v1032
      %v1259 = vpack.c.b16 %v1035, %v1033
      %v1260 = vpack.c.b16 %v1038, %v1036
      %v1261 = vpack.c.b16 %v1039, %v1037
      %v1262 = vpack.c.b16 %v1042, %v1040
      %v1263 = vpack.c.b16 %v1043, %v1041
      %v1264 = vpack.c.b16 %v1046, %v1044
      %v1265 = vpack.c.b16 %v1047, %v1045
      %v1266 = vpack.c.b16 %v1050, %v1048
      %v1267 = vpack.c.b16 %v1051, %v1049
      %v1268 = vpack.c.b16 %v1054, %v1052
      %v1269 = vpack.c.b16 %v1055, %v1053
      %v1270 = vpack.c.b16 %v1058, %v1056
      %v1271 = vpack.c.b16 %v1059, %v1057
      %v1272 = vpack.c.b16 %v1062, %v1060
      %v1273 = vpack.c.b16 %v1063, %v1061
      %v1274 = vpack.c.b16 %v1066, %v1064
      %v1275 = vpack.c.b16 %v1067, %v1065
      %v1276 = vpack.c.b16 %v1070, %v1068
      %v1277 = vpack.c.b16 %v1071, %v1069
      %v1278 = vpack.c.b16 %v1074, %v1072
      %v1279 = vpack.c.b16 %v1075, %v1073
      %v1280 = vpack.c.b16 %v1078, %v1076
      %v1281 = vpack.c.b16 %v1079, %v1077
      %v1282 = vpack.c.b16 %v1082, %v1080
      %v1283 = vpack.c.b16 %v1083, %v1081
      %v1284 = vpack.c.b16 %v1086, %v1084
      %v1285 = vpack.c.b16 %v1087, %v1085
      %v1286 = vpack.c.b16 %v1090, %v1088
      %v1287 = vpack.c.b16 %v1091, %v1089
      %v1288 = vpack.c.b16 %v1094, %v1092
      %v1289 = vpack.c.b16 %v1095, %v1093
      %v1290 = vpack.c.b16 %v1098, %v1096
      %v1291 = vpack.c.b16 %v1099, %v1097
      %1484 = vmatprep.subr.bf16.mxu0 %v1101
      %1485 = vmatpush1.bf16.msra.mxu0 %v1100
      %1486 = vmatprep.subr.bf16.mxu0 %v1103
      %1487 = vmatpush1.bf16.msra.mxu0 %v1102
      %1488 = vmatprep.subr.bf16.mxu0 %v1105
      %1489 = vmatpush1.bf16.msra.mxu0 %v1104
      %1490 = vmatprep.subr.bf16.mxu0 %v1107
      %1491 = vmatpush1.bf16.msra.mxu0 %v1106
      %1492 = vmatprep.subr.bf16.mxu0 %v1109
      %1493 = vmatpush1.bf16.msra.mxu0 %v1108
      %1494 = vmatprep.subr.bf16.mxu0 %v1111
      %1495 = vmatpush1.bf16.msra.mxu0 %v1110
      %1496 = vmatprep.subr.bf16.mxu0 %v1113
      %1497 = vmatpush1.bf16.msra.mxu0 %v1112
      %1498 = vmatprep.subr.bf16.mxu0 %v1115
      %1499 = vmatpush1.bf16.msra.mxu0 %v1114
      %1500 = vmatprep.subr.bf16.mxu0 %v1117
      %1501 = vmatpush1.bf16.msra.mxu0 %v1116
      %1502 = vmatprep.subr.bf16.mxu0 %v1119
      %1503 = vmatpush1.bf16.msra.mxu0 %v1118
      %1504 = vmatprep.subr.bf16.mxu0 %v1121
      %1505 = vmatpush1.bf16.msra.mxu0 %v1120
      %1506 = vmatprep.subr.bf16.mxu0 %v1123
      %1507 = vmatpush1.bf16.msra.mxu0 %v1122
      %1508 = vmatprep.subr.bf16.mxu0 %v1125
      %1509 = vmatpush1.bf16.msra.mxu0 %v1124
      %1510 = vmatprep.subr.bf16.mxu0 %v1127
      %1511 = vmatpush1.bf16.msra.mxu0 %v1126
      %1512 = vmatprep.subr.bf16.mxu0 %v1129
      %1513 = vmatpush1.bf16.msra.mxu0 %v1128
      %1514 = vmatprep.subr.bf16.mxu0 %v1131
      %1515 = vmatpush1.bf16.msra.mxu0 %v1130
      %1516 = vmatprep.mubr.bf16.mxu0 %v501
      %1517 = vmatmul.mubr.bf16.gmra.mrb[0].mxu0 %v500
      %v1518 = vpop.f32.mrb[0].mxu0
      %v1519 = vadd.f32 %v475, %v1518
      %v1520 = vpop.f32.mrb[0].mxu0
      %v1521 = vadd.f32 %v479, %v1520
      %v1522 = vpop.f32.mrb[0].mxu0
      %v1523 = vpop.f32.mrb[0].mxu0
      %1524 = vdwg.mxu0
      %1525 = vmatprep.subr.bf16.mxu0 %v1133
      %1526 = vmatpush1.bf16.msra.mxu0 %v1132
      %1527 = vmatprep.subr.bf16.mxu0 %v1135
      %1528 = vmatpush1.bf16.msra.mxu0 %v1134
      %1529 = vmatprep.subr.bf16.mxu0 %v1137
      %1530 = vmatpush1.bf16.msra.mxu0 %v1136
      %1531 = vmatprep.subr.bf16.mxu0 %v1139
      %1532 = vmatpush1.bf16.msra.mxu0 %v1138
      %1533 = vmatprep.subr.bf16.mxu0 %v1141
      %1534 = vmatpush1.bf16.msra.mxu0 %v1140
      %1535 = vmatprep.subr.bf16.mxu0 %v1143
      %1536 = vmatpush1.bf16.msra.mxu0 %v1142
      %1537 = vmatprep.subr.bf16.mxu0 %v1145
      %1538 = vmatpush1.bf16.msra.mxu0 %v1144
      %1539 = vmatprep.subr.bf16.mxu0 %v1147
      %1540 = vmatpush1.bf16.msra.mxu0 %v1146
      %1541 = vmatprep.subr.bf16.mxu0 %v1149
      %1542 = vmatpush1.bf16.msra.mxu0 %v1148
      %1543 = vmatprep.subr.bf16.mxu0 %v1151
      %1544 = vmatpush1.bf16.msra.mxu0 %v1150
      %1545 = vmatprep.subr.bf16.mxu0 %v1153
      %1546 = vmatpush1.bf16.msra.mxu0 %v1152
      %1547 = vmatprep.subr.bf16.mxu0 %v1155
      %1548 = vmatpush1.bf16.msra.mxu0 %v1154
      %1549 = vmatprep.subr.bf16.mxu0 %v1157
      %1550 = vmatpush1.bf16.msra.mxu0 %v1156
      %1551 = vmatprep.subr.bf16.mxu0 %v1159
      %1552 = vmatpush1.bf16.msra.mxu0 %v1158
      %1553 = vmatprep.subr.bf16.mxu0 %v1161
      %1554 = vmatpush1.bf16.msra.mxu0 %v1160
      %1555 = vmatprep.subr.bf16.mxu0 %v1163
      %1556 = vmatpush1.bf16.msra.mxu0 %v1162
      %1557 = vmatprep.mubr.bf16.mxu0 %v503
      %1558 = vmatmul.mubr.bf16.gmra.mrb[0].mxu0 %v502
      %v1559 = vpop.f32.mrb[0].mxu0
      %v1560 = vadd.f32 %v1519, %v1559
      %v1561 = vpop.f32.mrb[0].mxu0
      %v1562 = vadd.f32 %v1521, %v1561
      %v1563 = vpop.f32.mrb[0].mxu0
      %v1564 = vpop.f32.mrb[0].mxu0
      %1565 = vdwg.mxu0
      %1566 = vmatprep.subr.bf16.mxu0 %v1165
      %1567 = vmatpush1.bf16.msra.mxu0 %v1164
      %1568 = vmatprep.subr.bf16.mxu0 %v1167
      %1569 = vmatpush1.bf16.msra.mxu0 %v1166
      %1570 = vmatprep.subr.bf16.mxu0 %v1169
      %1571 = vmatpush1.bf16.msra.mxu0 %v1168
      %1572 = vmatprep.subr.bf16.mxu0 %v1171
      %1573 = vmatpush1.bf16.msra.mxu0 %v1170
      %1574 = vmatprep.subr.bf16.mxu0 %v1173
      %1575 = vmatpush1.bf16.msra.mxu0 %v1172
      %1576 = vmatprep.subr.bf16.mxu0 %v1175
      %1577 = vmatpush1.bf16.msra.mxu0 %v1174
      %1578 = vmatprep.subr.bf16.mxu0 %v1177
      %1579 = vmatpush1.bf16.msra.mxu0 %v1176
      %1580 = vmatprep.subr.bf16.mxu0 %v1179
      %1581 = vmatpush1.bf16.msra.mxu0 %v1178
      %1582 = vmatprep.subr.bf16.mxu0 %v1181
      %1583 = vmatpush1.bf16.msra.mxu0 %v1180
      %1584 = vmatprep.subr.bf16.mxu0 %v1183
      %1585 = vmatpush1.bf16.msra.mxu0 %v1182
      %1586 = vmatprep.subr.bf16.mxu0 %v1185
      %1587 = vmatpush1.bf16.msra.mxu0 %v1184
      %1588 = vmatprep.subr.bf16.mxu0 %v1187
      %1589 = vmatpush1.bf16.msra.mxu0 %v1186
      %1590 = vmatprep.subr.bf16.mxu0 %v1189
      %1591 = vmatpush1.bf16.msra.mxu0 %v1188
      %1592 = vmatprep.subr.bf16.mxu0 %v1191
      %1593 = vmatpush1.bf16.msra.mxu0 %v1190
      %1594 = vmatprep.subr.bf16.mxu0 %v1193
      %1595 = vmatpush1.bf16.msra.mxu0 %v1192
      %1596 = vmatprep.subr.bf16.mxu0 %v1195
      %1597 = vmatpush1.bf16.msra.mxu0 %v1194
      %1598 = vmatprep.mubr.bf16.mxu0 %v505
      %1599 = vmatmul.mubr.bf16.gmra.mrb[0].mxu0 %v504
      %v1600 = vpop.f32.mrb[0].mxu0
      %v1601 = vadd.f32 %v1560, %v1600
      %v1602 = vpop.f32.mrb[0].mxu0
      %v1603 = vadd.f32 %v1562, %v1602
      %v1604 = vpop.f32.mrb[0].mxu0
      %v1605 = vpop.f32.mrb[0].mxu0
      %1606 = vdwg.mxu0
      %1607 = vmatprep.subr.bf16.mxu0 %v1197
      %1608 = vmatpush1.bf16.msra.mxu0 %v1196
      %1609 = vmatprep.subr.bf16.mxu0 %v1199
      %1610 = vmatpush1.bf16.msra.mxu0 %v1198
      %1611 = vmatprep.subr.bf16.mxu0 %v1201
      %1612 = vmatpush1.bf16.msra.mxu0 %v1200
      %1613 = vmatprep.subr.bf16.mxu0 %v1203
      %1614 = vmatpush1.bf16.msra.mxu0 %v1202
      %1615 = vmatprep.subr.bf16.mxu0 %v1205
      %1616 = vmatpush1.bf16.msra.mxu0 %v1204
      %1617 = vmatprep.subr.bf16.mxu0 %v1207
      %1618 = vmatpush1.bf16.msra.mxu0 %v1206
      %1619 = vmatprep.subr.bf16.mxu0 %v1209
      %1620 = vmatpush1.bf16.msra.mxu0 %v1208
      %1621 = vmatprep.subr.bf16.mxu0 %v1211
      %1622 = vmatpush1.bf16.msra.mxu0 %v1210
      %1623 = vmatprep.subr.bf16.mxu0 %v1213
      %1624 = vmatpush1.bf16.msra.mxu0 %v1212
      %1625 = vmatprep.subr.bf16.mxu0 %v1215
      %1626 = vmatpush1.bf16.msra.mxu0 %v1214
      %1627 = vmatprep.subr.bf16.mxu0 %v1217
      %1628 = vmatpush1.bf16.msra.mxu0 %v1216
      %1629 = vmatprep.subr.bf16.mxu0 %v1219
      %1630 = vmatpush1.bf16.msra.mxu0 %v1218
      %1631 = vmatprep.subr.bf16.mxu0 %v1221
      %1632 = vmatpush1.bf16.msra.mxu0 %v1220
      %1633 = vmatprep.subr.bf16.mxu0 %v1223
      %1634 = vmatpush1.bf16.msra.mxu0 %v1222
      %1635 = vmatprep.subr.bf16.mxu0 %v1225
      %1636 = vmatpush1.bf16.msra.mxu0 %v1224
      %1637 = vmatprep.subr.bf16.mxu0 %v1227
      %1638 = vmatpush1.bf16.msra.mxu0 %v1226
      %1639 = vmatprep.mubr.bf16.mxu0 %v507
      %1640 = vmatmul.mubr.bf16.gmra.mrb[0].mxu0 %v506
      %v1641 = vpop.f32.mrb[0].mxu0
      %v1642 = vadd.f32 %v1601, %v1641
      %v1643 = vpop.f32.mrb[0].mxu0
      %v1644 = vadd.f32 %v1603, %v1643
      %v1645 = vpop.f32.mrb[0].mxu0
      %v1646 = vpop.f32.mrb[0].mxu0
      %1647 = vdwg.mxu0
      %1648 = vmatprep.subr.bf16.mxu0 %v1229
      %1649 = vmatpush1.bf16.msra.mxu0 %v1228
      %1650 = vmatprep.subr.bf16.mxu0 %v1231
      %1651 = vmatpush1.bf16.msra.mxu0 %v1230
      %1652 = vmatprep.subr.bf16.mxu0 %v1233
      %1653 = vmatpush1.bf16.msra.mxu0 %v1232
      %1654 = vmatprep.subr.bf16.mxu0 %v1235
      %1655 = vmatpush1.bf16.msra.mxu0 %v1234
      %1656 = vmatprep.subr.bf16.mxu0 %v1237
      %1657 = vmatpush1.bf16.msra.mxu0 %v1236
      %1658 = vmatprep.subr.bf16.mxu0 %v1239
      %1659 = vmatpush1.bf16.msra.mxu0 %v1238
      %1660 = vmatprep.subr.bf16.mxu0 %v1241
      %1661 = vmatpush1.bf16.msra.mxu0 %v1240
      %1662 = vmatprep.subr.bf16.mxu0 %v1243
      %1663 = vmatpush1.bf16.msra.mxu0 %v1242
      %1664 = vmatprep.subr.bf16.mxu0 %v1245
      %1665 = vmatpush1.bf16.msra.mxu0 %v1244
      %1666 = vmatprep.subr.bf16.mxu0 %v1247
      %1667 = vmatpush1.bf16.msra.mxu0 %v1246
      %1668 = vmatprep.subr.bf16.mxu0 %v1249
      %1669 = vmatpush1.bf16.msra.mxu0 %v1248
      %1670 = vmatprep.subr.bf16.mxu0 %v1251
      %1671 = vmatpush1.bf16.msra.mxu0 %v1250
      %1672 = vmatprep.subr.bf16.mxu0 %v1253
      %1673 = vmatpush1.bf16.msra.mxu0 %v1252
      %1674 = vmatprep.subr.bf16.mxu0 %v1255
      %1675 = vmatpush1.bf16.msra.mxu0 %v1254
      %1676 = vmatprep.subr.bf16.mxu0 %v1257
      %1677 = vmatpush1.bf16.msra.mxu0 %v1256
      %1678 = vmatprep.subr.bf16.mxu0 %v1259
      %1679 = vmatpush1.bf16.msra.mxu0 %v1258
      %1680 = vmatprep.mubr.bf16.mxu0 %v509
      %1681 = vmatmul.mubr.bf16.gmra.mrb[0].mxu0 %v508
      %v1682 = vpop.f32.mrb[0].mxu0
      %v1683 = vadd.f32 %v1642, %v1682
      %v1684 = vpop.f32.mrb[0].mxu0
      %v1685 = vadd.f32 %v1644, %v1684
      %v1686 = vpop.f32.mrb[0].mxu0
      %v1687 = vpop.f32.mrb[0].mxu0
      %1688 = vdwg.mxu0
      %1689 = vmatprep.subr.bf16.mxu0 %v1261
      %1690 = vmatpush1.bf16.msra.mxu0 %v1260
      %1691 = vmatprep.subr.bf16.mxu0 %v1263
      %1692 = vmatpush1.bf16.msra.mxu0 %v1262
      %1693 = vmatprep.subr.bf16.mxu0 %v1265
      %1694 = vmatpush1.bf16.msra.mxu0 %v1264
      %1695 = vmatprep.subr.bf16.mxu0 %v1267
      %1696 = vmatpush1.bf16.msra.mxu0 %v1266
      %1697 = vmatprep.subr.bf16.mxu0 %v1269
      %1698 = vmatpush1.bf16.msra.mxu0 %v1268
      %1699 = vmatprep.subr.bf16.mxu0 %v1271
      %1700 = vmatpush1.bf16.msra.mxu0 %v1270
      %1701 = vmatprep.subr.bf16.mxu0 %v1273
      %1702 = vmatpush1.bf16.msra.mxu0 %v1272
      %1703 = vmatprep.subr.bf16.mxu0 %v1275
      %1704 = vmatpush1.bf16.msra.mxu0 %v1274
      %1705 = vmatprep.subr.bf16.mxu0 %v1277
      %1706 = vmatpush1.bf16.msra.mxu0 %v1276
      %1707 = vmatprep.subr.bf16.mxu0 %v1279
      %1708 = vmatpush1.bf16.msra.mxu0 %v1278
      %1709 = vmatprep.subr.bf16.mxu0 %v1281
      %1710 = vmatpush1.bf16.msra.mxu0 %v1280
      %1711 = vmatprep.subr.bf16.mxu0 %v1283
      %1712 = vmatpush1.bf16.msra.mxu0 %v1282
      %1713 = vmatprep.subr.bf16.mxu0 %v1285
      %1714 = vmatpush1.bf16.msra.mxu0 %v1284
      %1715 = vmatprep.subr.bf16.mxu0 %v1287
      %1716 = vmatpush1.bf16.msra.mxu0 %v1286
      %1717 = vmatprep.subr.bf16.mxu0 %v1289
      %1718 = vmatpush1.bf16.msra.mxu0 %v1288
      %1719 = vmatprep.subr.bf16.mxu0 %v1291
      %1720 = vmatpush1.bf16.msra.mxu0 %v1290
      %1721 = vmatprep.mubr.bf16.mxu0 %v511
      %1722 = vmatmul.mubr.bf16.gmra.mrb[0].mxu0 %v510
      %v1723 = vpop.f32.mrb[0].mxu0
      %v1724 = vadd.f32 %v1683, %v1723
      %v1725 = vpop.f32.mrb[0].mxu0
      %v1726 = vadd.f32 %v1685, %v1725
      %v1727 = vpop.f32.mrb[0].mxu0
      %v1728 = vpop.f32.mrb[0].mxu0
      %1729 = vdwg.mxu0
      %vm1730 = vcmp.ge.f32.partialorder %v1724, 0.0
      %vm1731 = vcmp.ge.f32.partialorder %v1726, 0.0
      %v1732 = vld [vmem:[%s3] sm:$0x3]
      %v1734 = vlaneseq
      %v1735 = vshrl.u32 %v1734, 7
      %v1736 = vsub.s32 0, %v1735
      %v1737 = vrot.slane %v1732, %v1736
      %v1738 = vlaneseq
      %v1739 = vshrl.u32 %v1738, 7
      %v1740 = vsub.s32 1, %v1739
      %v1741 = vrot.slane %v1732, %v1740
      %v1744 = vmul.f32 %v1737, %v1724
      %v1745 = vmul.f32 %v1741, %v1726
      %v1746 = vsel %vm1730, %v1724, %v1744
      %v1747 = vsel %vm1731, %v1726, %v1745
      %v1748 = vpack.c.bf16 %v1746, %v1746
      %v1749 = vpack.c.bf16 %v1747, %v1747
      %v1750 = vld [vmem:[%s4] sm:$0xff]
      %v1751 = vld [vmem:[%s4 + $0x8] sm:$0xff]
      %v1752 = vld [vmem:[%s4 + $0x10] sm:$0xff]
      %v1753 = vld [vmem:[%s4 + $0x18] sm:$0xff]
      %v1754 = vld [vmem:[%s4 + $0x20] sm:$0xff]
      %v1755 = vld [vmem:[%s4 + $0x28] sm:$0xff]
      %v1756 = vld [vmem:[%s4 + $0x30] sm:$0xff]
      %v1757 = vld [vmem:[%s4 + $0x38] sm:$0xff]
      %v1758 = vld [vmem:[%s4 + $0x40] sm:$0xff]
      %v1759 = vld [vmem:[%s4 + $0x48] sm:$0xff]
      %v1760 = vld [vmem:[%s4 + $0x50] sm:$0xff]
      %v1761 = vld [vmem:[%s4 + $0x58] sm:$0xff]
      %v1762 = vld [vmem:[%s4 + $0x60] sm:$0xff]
      %v1763 = vld [vmem:[%s4 + $0x68] sm:$0xff]
      %v1764 = vld [vmem:[%s4 + $0x70] sm:$0xff]
      %v1765 = vld [vmem:[%s4 + $0x78] sm:$0xff]
      %v1766 = vld [vmem:[%s4 + $0x80] sm:$0xff]
      %v1767 = vld [vmem:[%s4 + $0x88] sm:$0xff]
      %v1768 = vld [vmem:[%s4 + $0x90] sm:$0xff]
      %v1769 = vld [vmem:[%s4 + $0x98] sm:$0xff]
      %v1770 = vld [vmem:[%s4 + $0xa0] sm:$0xff]
      %v1771 = vld [vmem:[%s4 + $0xa8] sm:$0xff]
      %v1772 = vld [vmem:[%s4 + $0xb0] sm:$0xff]
      %v1773 = vld [vmem:[%s4 + $0xb8] sm:$0xff]
      %v1774 = vld [vmem:[%s4 + $0xc0] sm:$0xff]
      %v1775 = vld [vmem:[%s4 + $0xc8] sm:$0xff]
      %v1776 = vld [vmem:[%s4 + $0xd0] sm:$0xff]
      %v1777 = vld [vmem:[%s4 + $0xd8] sm:$0xff]
      %v1778 = vld [vmem:[%s4 + $0xe0] sm:$0xff]
      %v1779 = vld [vmem:[%s4 + $0xe8] sm:$0xff]
      %v1780 = vld [vmem:[%s4 + $0xf0] sm:$0xff]
      %v1781 = vld [vmem:[%s4 + $0xf8] sm:$0xff]
      %v1782 = vld [vmem:[%s266] sm:$0xff]
      %v1783 = vunpack.c.l.bf16 %v1782
      %v1784 = vunpack.c.h.bf16 %v1782
      %v1817 = vunpack.c.l.b16 %v1750
      %v1818 = vunpack.c.h.b16 %v1750
      %v1819 = vunpack.c.l.b16 %v1751
      %v1820 = vunpack.c.h.b16 %v1751
      %v1821 = vunpack.c.l.b16 %v1752
      %v1822 = vunpack.c.h.b16 %v1752
      %v1823 = vunpack.c.l.b16 %v1753
      %v1824 = vunpack.c.h.b16 %v1753
      %v1825 = vunpack.c.l.b16 %v1754
      %v1826 = vunpack.c.h.b16 %v1754
      %v1827 = vunpack.c.l.b16 %v1755
      %v1828 = vunpack.c.h.b16 %v1755
      %v1829 = vunpack.c.l.b16 %v1756
      %v1830 = vunpack.c.h.b16 %v1756
      %v1831 = vunpack.c.l.b16 %v1757
      %v1832 = vunpack.c.h.b16 %v1757
      %v1833 = vunpack.c.l.b16 %v1758
      %v1834 = vunpack.c.h.b16 %v1758
      %v1835 = vunpack.c.l.b16 %v1759
      %v1836 = vunpack.c.h.b16 %v1759
      %v1837 = vunpack.c.l.b16 %v1760
      %v1838 = vunpack.c.h.b16 %v1760
      %v1839 = vunpack.c.l.b16 %v1761
      %v1840 = vunpack.c.h.b16 %v1761
      %v1841 = vunpack.c.l.b16 %v1762
      %v1842 = vunpack.c.h.b16 %v1762
      %v1843 = vunpack.c.l.b16 %v1763
      %v1844 = vunpack.c.h.b16 %v1763
      %v1845 = vunpack.c.l.b16 %v1764
      %v1846 = vunpack.c.h.b16 %v1764
      %v1847 = vunpack.c.l.b16 %v1765
      %v1848 = vunpack.c.h.b16 %v1765
      %v1849 = vunpack.c.l.b16 %v1766
      %v1850 = vunpack.c.h.b16 %v1766
      %v1851 = vunpack.c.l.b16 %v1767
      %v1852 = vunpack.c.h.b16 %v1767
      %v1853 = vunpack.c.l.b16 %v1768
      %v1854 = vunpack.c.h.b16 %v1768
      %v1855 = vunpack.c.l.b16 %v1769
      %v1856 = vunpack.c.h.b16 %v1769
      %v1857 = vunpack.c.l.b16 %v1770
      %v1858 = vunpack.c.h.b16 %v1770
      %v1859 = vunpack.c.l.b16 %v1771
      %v1860 = vunpack.c.h.b16 %v1771
      %v1861 = vunpack.c.l.b16 %v1772
      %v1862 = vunpack.c.h.b16 %v1772
      %v1863 = vunpack.c.l.b16 %v1773
      %v1864 = vunpack.c.h.b16 %v1773
      %v1865 = vunpack.c.l.b16 %v1774
      %v1866 = vunpack.c.h.b16 %v1774
      %v1867 = vunpack.c.l.b16 %v1775
      %v1868 = vunpack.c.h.b16 %v1775
      %v1869 = vunpack.c.l.b16 %v1776
      %v1870 = vunpack.c.h.b16 %v1776
      %v1871 = vunpack.c.l.b16 %v1777
      %v1872 = vunpack.c.h.b16 %v1777
      %v1873 = vunpack.c.l.b16 %v1778
      %v1874 = vunpack.c.h.b16 %v1778
      %v1875 = vunpack.c.l.b16 %v1779
      %v1876 = vunpack.c.h.b16 %v1779
      %v1877 = vunpack.c.l.b16 %v1780
      %v1878 = vunpack.c.h.b16 %v1780
      %v1879 = vunpack.c.l.b16 %v1781
      %v1880 = vunpack.c.h.b16 %v1781
      %v1881 = vpack.c.b16 %v1819, %v1817
      %v1882 = vpack.c.b16 %v1820, %v1818
      %v1883 = vpack.c.b16 %v1823, %v1821
      %v1884 = vpack.c.b16 %v1824, %v1822
      %v1885 = vpack.c.b16 %v1827, %v1825
      %v1886 = vpack.c.b16 %v1828, %v1826
      %v1887 = vpack.c.b16 %v1831, %v1829
      %v1888 = vpack.c.b16 %v1832, %v1830
      %v1889 = vpack.c.b16 %v1835, %v1833
      %v1890 = vpack.c.b16 %v1836, %v1834
      %v1891 = vpack.c.b16 %v1839, %v1837
      %v1892 = vpack.c.b16 %v1840, %v1838
      %v1893 = vpack.c.b16 %v1843, %v1841
      %v1894 = vpack.c.b16 %v1844, %v1842
      %v1895 = vpack.c.b16 %v1847, %v1845
      %v1896 = vpack.c.b16 %v1848, %v1846
      %v1897 = vpack.c.b16 %v1851, %v1849
      %v1898 = vpack.c.b16 %v1852, %v1850
      %v1899 = vpack.c.b16 %v1855, %v1853
      %v1900 = vpack.c.b16 %v1856, %v1854
      %v1901 = vpack.c.b16 %v1859, %v1857
      %v1902 = vpack.c.b16 %v1860, %v1858
      %v1903 = vpack.c.b16 %v1863, %v1861
      %v1904 = vpack.c.b16 %v1864, %v1862
      %v1905 = vpack.c.b16 %v1867, %v1865
      %v1906 = vpack.c.b16 %v1868, %v1866
      %v1907 = vpack.c.b16 %v1871, %v1869
      %v1908 = vpack.c.b16 %v1872, %v1870
      %v1909 = vpack.c.b16 %v1875, %v1873
      %v1910 = vpack.c.b16 %v1876, %v1874
      %v1911 = vpack.c.b16 %v1879, %v1877
      %v1912 = vpack.c.b16 %v1880, %v1878
      %1945 = vmatprep.subr.bf16.mxu0 %v1882
      %1946 = vmatpush1.bf16.msra.mxu0 %v1881
      %1947 = vmatprep.subr.bf16.mxu0 %v1884
      %1948 = vmatpush1.bf16.msra.mxu0 %v1883
      %1949 = vmatprep.subr.bf16.mxu0 %v1886
      %1950 = vmatpush1.bf16.msra.mxu0 %v1885
      %1951 = vmatprep.subr.bf16.mxu0 %v1888
      %1952 = vmatpush1.bf16.msra.mxu0 %v1887
      %1953 = vmatprep.subr.bf16.mxu0 %v1890
      %1954 = vmatpush1.bf16.msra.mxu0 %v1889
      %1955 = vmatprep.subr.bf16.mxu0 %v1892
      %1956 = vmatpush1.bf16.msra.mxu0 %v1891
      %1957 = vmatprep.subr.bf16.mxu0 %v1894
      %1958 = vmatpush1.bf16.msra.mxu0 %v1893
      %1959 = vmatprep.subr.bf16.mxu0 %v1896
      %1960 = vmatpush1.bf16.msra.mxu0 %v1895
      %1961 = vmatprep.subr.bf16.mxu0 %v1898
      %1962 = vmatpush1.bf16.msra.mxu0 %v1897
      %1963 = vmatprep.subr.bf16.mxu0 %v1900
      %1964 = vmatpush1.bf16.msra.mxu0 %v1899
      %1965 = vmatprep.subr.bf16.mxu0 %v1902
      %1966 = vmatpush1.bf16.msra.mxu0 %v1901
      %1967 = vmatprep.subr.bf16.mxu0 %v1904
      %1968 = vmatpush1.bf16.msra.mxu0 %v1903
      %1969 = vmatprep.subr.bf16.mxu0 %v1906
      %1970 = vmatpush1.bf16.msra.mxu0 %v1905
      %1971 = vmatprep.subr.bf16.mxu0 %v1908
      %1972 = vmatpush1.bf16.msra.mxu0 %v1907
      %1973 = vmatprep.subr.bf16.mxu0 %v1910
      %1974 = vmatpush1.bf16.msra.mxu0 %v1909
      %1975 = vmatprep.subr.bf16.mxu0 %v1912
      %1976 = vmatpush1.bf16.msra.mxu0 %v1911
      %1977 = vmatprep.mubr.bf16.mxu0 %v1749
      %1978 = vmatmul.mubr.bf16.gmra.mrb[0].mxu0 %v1748
      %v1979 = vpop.f32.mrb[0].mxu0
      %v1980 = vadd.f32 %v1783, %v1979
      %v1981 = vpop.f32.mrb[0].mxu0
      %v1982 = vadd.f32 %v1784, %v1981
      %v1983 = vpop.f32.mrb[0].mxu0
      %v1984 = vpop.f32.mrb[0].mxu0
      %1985 = vdwg.mxu0
      %v1986 = vpack.c.bf16 %v1980, %v1980
      %v1987 = vpack.c.bf16 %v1982, %v1982
      %v1990 = vunpack.c.l.b16 %v1986
      %v1991 = vunpack.c.l.b16 %v1987
      %v1992 = vpack.c.b16 %v1991, %v1990
      %1994 = vst [vmem:[%s271] sm:$0xff] %v1992
      %p1995 = scmp.lt.s32.totalorder %s17, 1
      %s1996 = scalar_select %p1995, %s17, 1
      %s1997 = smul.addr %s1996, 2
      %s1998 = smul.addr %s1997, 4
      %s1999 = scalar_lea.vmem %s6, %s1998
      // Predicated region
      $region45: #{l2block_forward.5} parent=43 // pred_check
        %p2000 = pneg %p171
      $region46: #{l2block_forward.5} parent=43 // pred_check_branch
        %2002 = sbr.rel (%p2000) target = $region48
      $region47: #{l2block_forward.5} parent=43 // pred_region
        _
      $region48: #{l2block_forward.5} parent=43 // pred_fallthru
        _
    $region44: #{l2block_forward.5} parent=5 // pred_fallthru
      _
    %p2003 = scmp.le.s32.totalorder 2, %s12
    // Predicated region
    $region49: #{l2block_forward.5} parent=5 // pred_check
      %p2004 = pneg %p2003
    $region50: #{l2block_forward.5} parent=5 // pred_check_branch
      %2006 = sbr.rel (%p2004) target = $region52
    $region51: #{l2block_forward.5} parent=5 // pred_region
      %s2007 = ssub.s32 %s12, 2
      // Predicated region
      $region53: #{l2block_forward.5} parent=51 // pred_check
        %p2008 = pneg %p177
      $region54: #{l2block_forward.5} parent=51 // pred_check_branch
        %2010 = sbr.rel (%p2008) target = $region56
      $region55: #{l2block_forward.5} parent=51 // pred_region
        %p2011 = scmp.lt.s32.totalorder %s18, 1
        %s2012 = scalar_select %p2011, %s18, 1
        %s2013 = smul.addr %s2012, 2
        %s2014 = smul.addr %s2013, 4
        %s2015 = scalar_lea.vmem %s6, %s2014
      $region56: #{l2block_forward.5} parent=51 // pred_fallthru
        _
    $region52: #{l2block_forward.5} parent=5 // pred_fallthru
      _
  $region6: #{l2block_forward.5} parent=0 // loop_footer
    %s16 = sadd.s32 1, %s12
  $region7: #{l2block_forward.5} parent=0 // loop_footer_branch
    %11 = sbr.rel target = $region3
  $region8: #{l2block_forward.5} parent=0 // loop_exit
    _

</llo_original>
